<compile_context>
chip_gen: v7x
topology: tpu7x:2x2x1
jax: 0.10.0
libtpu: 0.0.40
codegen_flags: <defaults>
</compile_context>

<pallas_src>
import math

import jax
import jax.numpy as jnp
from jax import lax
from jax.experimental import pallas as pl
from jax.experimental.pallas import tpu as pltpu


# ----------------------------------------------------------------------------
# Fused forward kernel
# ----------------------------------------------------------------------------

def _fused_forward_kernel(
    # data
    pe_ref, e_ref, src_ref, dst_ref,
    # node / edge encoders
    w1n_ref, b1n_ref, w2n_ref, b2n_ref,
    w1e_ref, b1e_ref, w2e_ref, b2e_ref,
    # stacked GT layer weights [L, ...]
    wq_ref, wk_ref, wv_ref, wo_ref,
    wff1_ref, bff1_ref, wff2_ref, bff2_ref,
    we_ref, be_ref,
    # score predictor (W1 pre-split into src/dst/edge slices, W2 pre-transposed)
    pw1s_ref, pw1d_ref, pw1e_ref, pb1_ref, pw2t_ref, pb2_ref,
    # output
    out_ref,
):
    f32 = jnp.float32

    # ---- node encoder: x = linear2_node(relu(linear1_node(pe)))  (input x is discarded)
    hn = jnp.maximum(
        jnp.dot(pe_ref[...], w1n_ref[...], preferred_element_type=f32) + b1n_ref[...], 0.0)
    x = jnp.dot(hn, w2n_ref[...], preferred_element_type=f32) + b2n_ref[...]

    # ---- edge encoder: e = linear2_edge(relu(linear1_edge(e)))
    he = jnp.maximum(
        jnp.dot(e_ref[...], w1e_ref[...], preferred_element_type=f32) + b1e_ref[...], 0.0)
    e = jnp.dot(he, w2e_ref[...], preferred_element_type=f32) + b2e_ref[...]

    # ---- graph-transformer processor (all layers resident; statically unrolled)
    # TODO(synk): GT_processor internals were not provided in the spec; this is a
    # standard dense graph-transformer layer (full attention over nodes, residual FFN,
    # residual edge MLP).
    num_layers = wq_ref.shape[0]
    for l in range(num_layers):
        q = jnp.dot(x, wq_ref[l], preferred_element_type=f32)   # 1/sqrt(d) folded into wq
        k = jnp.dot(x, wk_ref[l], preferred_element_type=f32)
        v = jnp.dot(x, wv_ref[l], preferred_element_type=f32)

        # q @ k^T via transposed contraction (no explicit k.T in VMEM)
        s = lax.dot_general(q, k, (((1,), (1,)), ((), ())), preferred_element_type=f32)
        s = s - jnp.max(s, axis=-1, keepdims=True)
        p = jnp.exp(s)
        a = p * pl.reciprocal(jnp.sum(p, axis=-1, keepdims=True), approx=True)
        attn = jnp.dot(a, v, preferred_element_type=f32)

        hx = x + jnp.dot(attn, wo_ref[l], preferred_element_type=f32)
        ff = jnp.maximum(
            jnp.dot(hx, wff1_ref[l], preferred_element_type=f32) + bff1_ref[l], 0.0)
        x = hx + jnp.dot(ff, wff2_ref[l], preferred_element_type=f32) + bff2_ref[l]

        e = e + jnp.maximum(
            jnp.dot(e, we_ref[l], preferred_element_type=f32) + be_ref[l], 0.0)

    # ---- per-edge gather x[src], x[dst] via one-hot selection matmuls on the MXU
    E = src_ref.shape[0]
    N = x.shape[0]
    col = lax.broadcasted_iota(jnp.int32, (E, N), 1)
    oh_src = (col == src_ref[...]).astype(f32)            # [E, N]
    oh_dst = (col == dst_ref[...]).astype(f32)            # [E, N]
    xs = jnp.dot(oh_src, x, preferred_element_type=f32)   # [E, h]
    xd = jnp.dot(oh_dst, x, preferred_element_type=f32)   # [E, h]

    # ---- ScorePredictor: W2(relu(W1([x_src ; x_dst ; e]))) with W1 pre-split
    # TODO(synk): layers.ScorePredictor internals were not provided; standard 2-layer
    # MLP over concatenated (src, dst, edge) features assumed.
    h1 = (jnp.dot(xs, pw1s_ref[...], preferred_element_type=f32)
          + jnp.dot(xd, pw1d_ref[...], preferred_element_type=f32)
          + jnp.dot(e, pw1e_ref[...], preferred_element_type=f32)
          + pb1_ref[...])
    h1 = jnp.maximum(h1, 0.0)

    # lane-dense [1, E] output: contract W2^T (1, hs) against hidden axis of h1 (E, hs)
    scores = lax.dot_general(pw2t_ref[...], h1, (((1,), (1,)), ((), ())),
                             preferred_element_type=f32) + pb2_ref[...]
    out_ref[...] = scores.astype(out_ref.dtype)


_VMEM_SPEC = pl.BlockSpec(memory_space=pltpu.MemorySpace.VMEM)


# ----------------------------------------------------------------------------
# Forward (mirrors MyTransformerModelNet.forward) -- single fused pallas_call
# ----------------------------------------------------------------------------

@jax.jit
def forward(params, graph, x, e, pe):
    del x  # reference overwrites x with the encoded positional encoding
    src, dst = graph
    E = src.shape[0]
    src_col = src.reshape(E, 1).astype(jnp.int32)
    dst_col = dst.reshape(E, 1).astype(jnp.int32)

    args = (
        pe, e, src_col, dst_col,
        params["lin1_node_w"], params["lin1_node_b"],
        params["lin2_node_w"], params["lin2_node_b"],
        params["lin1_edge_w"], params["lin1_edge_b"],
        params["lin2_edge_w"], params["lin2_edge_b"],
        params["wq"], params["wk"], params["wv"], params["wo"],
        params["wff1"], params["bff1"], params["wff2"], params["bff2"],
        params["we"], params["be"],
        params["pred_w1_src"], params["pred_w1_dst"], params["pred_w1_e"],
        params["pred_b1"], params["pred_w2t"], params["pred_b2"],
    )

    scores_row = pl.pallas_call(
        _fused_forward_kernel,
        out_shape=jax.ShapeDtypeStruct((1, E), jnp.float32),
        in_specs=[_VMEM_SPEC] * len(args),
        out_specs=_VMEM_SPEC,
        compiler_params=pltpu.CompilerParams(vmem_limit_bytes=64 << 20),
    )(*args)

    return scores_row.reshape(E, 1)  # [E, 1], matching the PyTorch predictor output


# ----------------------------------------------------------------------------
# Parameter init (deterministic; mirrors PyTorch nn.Linear default U(-1/sqrt(fan_in), .))
# ----------------------------------------------------------------------------

def _init_linear(key, fan_in, fan_out):
    kw, kb = jax.random.split(key)
    bound = 1.0 / math.sqrt(fan_in)
    w = jax.random.uniform(kw, (fan_in, fan_out), jnp.float32, -bound, bound)
    b = jax.random.uniform(kb, (1, fan_out), jnp.float32, -bound, bound)
    return w, b


def init_params(key, node_features, edge_features, hidden_features,
                hidden_edge_features, num_layers, hidden_edge_scores):
    hidden_node_features = hidden_edge_features
    keys = jax.random.split(key, 6 + num_layers)
    p = {}
    p["lin1_node_w"], p["lin1_node_b"] = _init_linear(keys[0], node_features, hidden_node_features)
    p["lin2_node_w"], p["lin2_node_b"] = _init_linear(keys[1], hidden_node_features, hidden_features)
    p["lin1_edge_w"], p["lin1_edge_b"] = _init_linear(keys[2], edge_features, hidden_edge_features)
    p["lin2_edge_w"], p["lin2_edge_b"] = _init_linear(keys[3], hidden_edge_features, hidden_features)

    # Stacked GT layer weights [L, h, h] / biases [L, 1, h].
    h = hidden_features
    stacks = {n: [] for n in ("wq", "wk", "wv", "wo", "wff1", "bff1", "wff2", "bff2", "we", "be")}
    inv_sqrt_d = 1.0 / math.sqrt(h)
    for li in range(num_layers):
        lk = jax.random.split(keys[4 + li], 7)
        wq, _ = _init_linear(lk[0], h, h)
        wk, _ = _init_linear(lk[1], h, h)
        wv, _ = _init_linear(lk[2], h, h)
        wo, _ = _init_linear(lk[3], h, h)
        wff1, bff1 = _init_linear(lk[4], h, h)
        wff2, bff2 = _init_linear(lk[5], h, h)
        we, be = _init_linear(lk[6], h, h)
        stacks["wq"].append(wq * inv_sqrt_d)   # fold attention 1/sqrt(d) scale into wq
        stacks["wk"].append(wk)
        stacks["wv"].append(wv)
        stacks["wo"].append(wo)
        stacks["wff1"].append(wff1)
        stacks["bff1"].append(bff1)
        stacks["wff2"].append(wff2)
        stacks["bff2"].append(bff2)
        stacks["we"].append(we)
        stacks["be"].append(be)
    for n, lst in stacks.items():
        p[n] = jnp.stack(lst, axis=0)

    # ScorePredictor: W1(3*hidden -> hidden_edge_scores), W2(hidden_edge_scores -> 1).
    # W1 is initialized as one Linear(3h, hes) (same fan_in bound) then split for the
    # concat-free formulation; W2 is stored transposed so the kernel emits a lane-dense
    # [1, E] score row.
    pw1, pb1 = _init_linear(keys[4 + num_layers], 3 * hidden_features, hidden_edge_scores)
    p["pred_w1_src"] = pw1[:hidden_features]
    p["pred_w1_dst"] = pw1[hidden_features:2 * hidden_features]
    p["pred_w1_e"] = pw1[2 * hidden_features:]
    p["pred_b1"] = pb1
    pw2, pb2 = _init_linear(keys[5 + num_layers], hidden_edge_scores, 1)
    p["pred_w2t"] = pw2.T          # [1, hidden_edge_scores]
    p["pred_b2"] = pb2             # [1, 1]
    return p


# ----------------------------------------------------------------------------
# Main
# ----------------------------------------------------------------------------

if __name__ == "__main__":
    node_features = 8
    edge_features = 4
    hidden_features = 32
    hidden_edge_features = 16
    num_layers = 2
    hidden_edge_scores = 16
    nb_pos_enc = node_features  # pe is fed to linear1_node(node_features, ...) in the reference
    N, E = 16, 32

    root = jax.random.PRNGKey(0)
    kp, kx, ke, kpe, ks, kd = jax.random.split(root, 6)

    params = init_params(kp, node_features, edge_features, hidden_features,
                         hidden_edge_features, num_layers, hidden_edge_scores)

    x_in = jax.random.normal(kx, (N, node_features), jnp.float32)   # unused (x = pe), API parity
    e_in = jax.random.normal(ke, (E, edge_features), jnp.float32)
    pe_in = jax.random.normal(kpe, (N, nb_pos_enc), jnp.float32)
    src = jax.random.randint(ks, (E,), 0, N, dtype=jnp.int32)
    dst = jax.random.randint(kd, (E,), 0, N, dtype=jnp.int32)

    scores = forward(params, (src, dst), x_in, e_in, pe_in)
    scores = jax.block_until_ready(scores)
    assert scores.shape == (E, 1) and scores.dtype == jnp.float32
    assert bool(jnp.all(jnp.isfinite(scores)))
    print("KERNEL_OK")
</pallas_src>

<mosaic_0001>
module attributes {stable_mosaic.version = 11 : i64} {
  func.func @_fused_forward_kernel(%arg0: memref<16x8xf32, #tpu.memory_space<vmem>>, %arg1: memref<32x4xf32, #tpu.memory_space<vmem>>, %arg2: memref<32x1xi32, #tpu.memory_space<vmem>>, %arg3: memref<32x1xi32, #tpu.memory_space<vmem>>, %arg4: memref<8x16xf32, #tpu.memory_space<vmem>>, %arg5: memref<1x16xf32, #tpu.memory_space<vmem>>, %arg6: memref<16x32xf32, #tpu.memory_space<vmem>>, %arg7: memref<1x32xf32, #tpu.memory_space<vmem>>, %arg8: memref<4x16xf32, #tpu.memory_space<vmem>>, %arg9: memref<1x16xf32, #tpu.memory_space<vmem>>, %arg10: memref<16x32xf32, #tpu.memory_space<vmem>>, %arg11: memref<1x32xf32, #tpu.memory_space<vmem>>, %arg12: memref<2x32x32xf32, #tpu.memory_space<vmem>>, %arg13: memref<2x32x32xf32, #tpu.memory_space<vmem>>, %arg14: memref<2x32x32xf32, #tpu.memory_space<vmem>>, %arg15: memref<2x32x32xf32, #tpu.memory_space<vmem>>, %arg16: memref<2x32x32xf32, #tpu.memory_space<vmem>>, %arg17: memref<2x1x32xf32, #tpu.memory_space<vmem>>, %arg18: memref<2x32x32xf32, #tpu.memory_space<vmem>>, %arg19: memref<2x1x32xf32, #tpu.memory_space<vmem>>, %arg20: memref<2x32x32xf32, #tpu.memory_space<vmem>>, %arg21: memref<2x1x32xf32, #tpu.memory_space<vmem>>, %arg22: memref<32x16xf32, #tpu.memory_space<vmem>>, %arg23: memref<32x16xf32, #tpu.memory_space<vmem>>, %arg24: memref<32x16xf32, #tpu.memory_space<vmem>>, %arg25: memref<1x16xf32, #tpu.memory_space<vmem>>, %arg26: memref<1x16xf32, #tpu.memory_space<vmem>>, %arg27: memref<1x1xf32, #tpu.memory_space<vmem>>, %arg28: memref<1x32xf32, #tpu.memory_space<vmem>>) attributes {dimension_semantics = [], scalar_prefetch = 0 : i64, scratch_operands = 0 : i64, tpu.core_type = #tpu.core_type<tc>} {
    %c0 = arith.constant 0 : index
    %c0_0 = arith.constant 0 : index
    %0 = vector.load %arg0[%c0, %c0_0] : memref<16x8xf32, #tpu.memory_space<vmem>>, vector<16x8xf32>
    %c0_1 = arith.constant 0 : index
    %c0_2 = arith.constant 0 : index
    %1 = vector.load %arg4[%c0_1, %c0_2] : memref<8x16xf32, #tpu.memory_space<vmem>>, vector<8x16xf32>
    %cst = arith.constant dense<0.000000e+00> : vector<16x16xf32>
    %2 = tpu.matmul %0, %1, %cst {dimension_numbers = #tpu.dot_dimension_numbers<[1], [0], [0], [1], [0, 0, 1, 1], [], []>} : vector<16x8xf32>, vector<8x16xf32>, vector<16x16xf32> -> vector<16x16xf32>
    %c0_3 = arith.constant 0 : index
    %c0_4 = arith.constant 0 : index
    %3 = vector.load %arg5[%c0_3, %c0_4] : memref<1x16xf32, #tpu.memory_space<vmem>>, vector<1x16xf32>
    %4 = vector.broadcast %3 : vector<1x16xf32> to vector<16x16xf32>
    %5 = arith.addf %2, %4 : vector<16x16xf32>
    %cst_5 = arith.constant 0.000000e+00 : f32
    %6 = vector.broadcast %cst_5 : f32 to vector<16x16xf32>
    %7 = arith.maximumf %5, %6 : vector<16x16xf32>
    %c0_6 = arith.constant 0 : index
    %c0_7 = arith.constant 0 : index
    %8 = vector.load %arg6[%c0_6, %c0_7] : memref<16x32xf32, #tpu.memory_space<vmem>>, vector<16x32xf32>
    %cst_8 = arith.constant dense<0.000000e+00> : vector<16x32xf32>
    %9 = tpu.matmul %7, %8, %cst_8 {dimension_numbers = #tpu.dot_dimension_numbers<[1], [0], [0], [1], [0, 0, 1, 1], [], []>} : vector<16x16xf32>, vector<16x32xf32>, vector<16x32xf32> -> vector<16x32xf32>
    %c0_9 = arith.constant 0 : index
    %c0_10 = arith.constant 0 : index
    %10 = vector.load %arg7[%c0_9, %c0_10] : memref<1x32xf32, #tpu.memory_space<vmem>>, vector<1x32xf32>
    %11 = vector.broadcast %10 : vector<1x32xf32> to vector<16x32xf32>
    %12 = arith.addf %9, %11 : vector<16x32xf32>
    %c0_11 = arith.constant 0 : index
    %c0_12 = arith.constant 0 : index
    %13 = vector.load %arg1[%c0_11, %c0_12] : memref<32x4xf32, #tpu.memory_space<vmem>>, vector<32x4xf32>
    %c0_13 = arith.constant 0 : index
    %c0_14 = arith.constant 0 : index
    %14 = vector.load %arg8[%c0_13, %c0_14] : memref<4x16xf32, #tpu.memory_space<vmem>>, vector<4x16xf32>
    %cst_15 = arith.constant dense<0.000000e+00> : vector<32x16xf32>
    %15 = tpu.matmul %13, %14, %cst_15 {dimension_numbers = #tpu.dot_dimension_numbers<[1], [0], [0], [1], [0, 0, 1, 1], [], []>} : vector<32x4xf32>, vector<4x16xf32>, vector<32x16xf32> -> vector<32x16xf32>
    %c0_16 = arith.constant 0 : index
    %c0_17 = arith.constant 0 : index
    %16 = vector.load %arg9[%c0_16, %c0_17] : memref<1x16xf32, #tpu.memory_space<vmem>>, vector<1x16xf32>
    %17 = vector.broadcast %16 : vector<1x16xf32> to vector<32x16xf32>
    %18 = arith.addf %15, %17 : vector<32x16xf32>
    %cst_18 = arith.constant 0.000000e+00 : f32
    %19 = vector.broadcast %cst_18 : f32 to vector<32x16xf32>
    %20 = arith.maximumf %18, %19 : vector<32x16xf32>
    %c0_19 = arith.constant 0 : index
    %c0_20 = arith.constant 0 : index
    %21 = vector.load %arg10[%c0_19, %c0_20] : memref<16x32xf32, #tpu.memory_space<vmem>>, vector<16x32xf32>
    %cst_21 = arith.constant dense<0.000000e+00> : vector<32x32xf32>
    %22 = tpu.matmul %20, %21, %cst_21 {dimension_numbers = #tpu.dot_dimension_numbers<[1], [0], [0], [1], [0, 0, 1, 1], [], []>} : vector<32x16xf32>, vector<16x32xf32>, vector<32x32xf32> -> vector<32x32xf32>
    %c0_22 = arith.constant 0 : index
    %c0_23 = arith.constant 0 : index
    %23 = vector.load %arg11[%c0_22, %c0_23] : memref<1x32xf32, #tpu.memory_space<vmem>>, vector<1x32xf32>
    %24 = vector.broadcast %23 : vector<1x32xf32> to vector<32x32xf32>
    %25 = arith.addf %22, %24 : vector<32x32xf32>
    %c0_24 = arith.constant 0 : index
    %c0_25 = arith.constant 0 : index
    %c0_26 = arith.constant 0 : index
    %26 = vector.load %arg12[%c0_24, %c0_25, %c0_26] : memref<2x32x32xf32, #tpu.memory_space<vmem>>, vector<1x32x32xf32>
    %27 = vector.shape_cast %26 : vector<1x32x32xf32> to vector<32x32xf32>
    %cst_27 = arith.constant dense<0.000000e+00> : vector<16x32xf32>
    %28 = tpu.matmul %12, %27, %cst_27 {dimension_numbers = #tpu.dot_dimension_numbers<[1], [0], [0], [1], [0, 0, 1, 1], [], []>} : vector<16x32xf32>, vector<32x32xf32>, vector<16x32xf32> -> vector<16x32xf32>
    %c0_28 = arith.constant 0 : index
    %c0_29 = arith.constant 0 : index
    %c0_30 = arith.constant 0 : index
    %29 = vector.load %arg13[%c0_28, %c0_29, %c0_30] : memref<2x32x32xf32, #tpu.memory_space<vmem>>, vector<1x32x32xf32>
    %30 = vector.shape_cast %29 : vector<1x32x32xf32> to vector<32x32xf32>
    %cst_31 = arith.constant dense<0.000000e+00> : vector<16x32xf32>
    %31 = tpu.matmul %12, %30, %cst_31 {dimension_numbers = #tpu.dot_dimension_numbers<[1], [0], [0], [1], [0, 0, 1, 1], [], []>} : vector<16x32xf32>, vector<32x32xf32>, vector<16x32xf32> -> vector<16x32xf32>
    %c0_32 = arith.constant 0 : index
    %c0_33 = arith.constant 0 : index
    %c0_34 = arith.constant 0 : index
    %32 = vector.load %arg14[%c0_32, %c0_33, %c0_34] : memref<2x32x32xf32, #tpu.memory_space<vmem>>, vector<1x32x32xf32>
    %33 = vector.shape_cast %32 : vector<1x32x32xf32> to vector<32x32xf32>
    %cst_35 = arith.constant dense<0.000000e+00> : vector<16x32xf32>
    %34 = tpu.matmul %12, %33, %cst_35 {dimension_numbers = #tpu.dot_dimension_numbers<[1], [0], [0], [1], [0, 0, 1, 1], [], []>} : vector<16x32xf32>, vector<32x32xf32>, vector<16x32xf32> -> vector<16x32xf32>
    %cst_36 = arith.constant dense<0.000000e+00> : vector<16x16xf32>
    %35 = tpu.matmul %28, %31, %cst_36 {dimension_numbers = #tpu.dot_dimension_numbers<[1], [1], [0], [0], [0, 0, 1, 0], [], []>} : vector<16x32xf32>, vector<16x32xf32>, vector<16x16xf32> -> vector<16x16xf32>
    %cst_37 = arith.constant dense<0xFF800000> : vector<16xf32>
    %36 = vector.multi_reduction <maximumf>, %35, %cst_37 [1] : vector<16x16xf32> to vector<16xf32>
    %37 = vector.shape_cast %36 : vector<16xf32> to vector<16x1xf32>
    %38 = vector.broadcast %37 : vector<16x1xf32> to vector<16x16xf32>
    %39 = arith.subf %35, %38 : vector<16x16xf32>
    %40 = math.exp %39 : vector<16x16xf32>
    %cst_38 = arith.constant dense<0.000000e+00> : vector<16xf32>
    %41 = vector.multi_reduction <add>, %40, %cst_38 [1] : vector<16x16xf32> to vector<16xf32>
    %42 = vector.shape_cast %41 : vector<16xf32> to vector<16x1xf32>
    %43 = tpu.reciprocal %42 {approx = true} : vector<16x1xf32> -> vector<16x1xf32>
    %44 = vector.broadcast %43 : vector<16x1xf32> to vector<16x16xf32>
    %45 = arith.mulf %40, %44 : vector<16x16xf32>
    %cst_39 = arith.constant dense<0.000000e+00> : vector<16x32xf32>
    %46 = tpu.matmul %45, %34, %cst_39 {dimension_numbers = #tpu.dot_dimension_numbers<[1], [0], [0], [1], [0, 0, 1, 1], [], []>} : vector<16x16xf32>, vector<16x32xf32>, vector<16x32xf32> -> vector<16x32xf32>
    %c0_40 = arith.constant 0 : index
    %c0_41 = arith.constant 0 : index
    %c0_42 = arith.constant 0 : index
    %47 = vector.load %arg15[%c0_40, %c0_41, %c0_42] : memref<2x32x32xf32, #tpu.memory_space<vmem>>, vector<1x32x32xf32>
    %48 = vector.shape_cast %47 : vector<1x32x32xf32> to vector<32x32xf32>
    %cst_43 = arith.constant dense<0.000000e+00> : vector<16x32xf32>
    %49 = tpu.matmul %46, %48, %cst_43 {dimension_numbers = #tpu.dot_dimension_numbers<[1], [0], [0], [1], [0, 0, 1, 1], [], []>} : vector<16x32xf32>, vector<32x32xf32>, vector<16x32xf32> -> vector<16x32xf32>
    %50 = arith.addf %12, %49 : vector<16x32xf32>
    %c0_44 = arith.constant 0 : index
    %c0_45 = arith.constant 0 : index
    %c0_46 = arith.constant 0 : index
    %51 = vector.load %arg16[%c0_44, %c0_45, %c0_46] : memref<2x32x32xf32, #tpu.memory_space<vmem>>, vector<1x32x32xf32>
    %52 = vector.shape_cast %51 : vector<1x32x32xf32> to vector<32x32xf32>
    %cst_47 = arith.constant dense<0.000000e+00> : vector<16x32xf32>
    %53 = tpu.matmul %50, %52, %cst_47 {dimension_numbers = #tpu.dot_dimension_numbers<[1], [0], [0], [1], [0, 0, 1, 1], [], []>} : vector<16x32xf32>, vector<32x32xf32>, vector<16x32xf32> -> vector<16x32xf32>
    %c0_48 = arith.constant 0 : index
    %c0_49 = arith.constant 0 : index
    %c0_50 = arith.constant 0 : index
    %54 = vector.load %arg17[%c0_48, %c0_49, %c0_50] : memref<2x1x32xf32, #tpu.memory_space<vmem>>, vector<1x1x32xf32>
    %55 = vector.shape_cast %54 : vector<1x1x32xf32> to vector<1x32xf32>
    %56 = vector.broadcast %55 : vector<1x32xf32> to vector<16x32xf32>
    %57 = arith.addf %53, %56 : vector<16x32xf32>
    %cst_51 = arith.constant 0.000000e+00 : f32
    %58 = vector.broadcast %cst_51 : f32 to vector<16x32xf32>
    %59 = arith.maximumf %57, %58 : vector<16x32xf32>
    %c0_52 = arith.constant 0 : index
    %c0_53 = arith.constant 0 : index
    %c0_54 = arith.constant 0 : index
    %60 = vector.load %arg18[%c0_52, %c0_53, %c0_54] : memref<2x32x32xf32, #tpu.memory_space<vmem>>, vector<1x32x32xf32>
    %61 = vector.shape_cast %60 : vector<1x32x32xf32> to vector<32x32xf32>
    %cst_55 = arith.constant dense<0.000000e+00> : vector<16x32xf32>
    %62 = tpu.matmul %59, %61, %cst_55 {dimension_numbers = #tpu.dot_dimension_numbers<[1], [0], [0], [1], [0, 0, 1, 1], [], []>} : vector<16x32xf32>, vector<32x32xf32>, vector<16x32xf32> -> vector<16x32xf32>
    %63 = arith.addf %50, %62 : vector<16x32xf32>
    %c0_56 = arith.constant 0 : index
    %c0_57 = arith.constant 0 : index
    %c0_58 = arith.constant 0 : index
    %64 = vector.load %arg19[%c0_56, %c0_57, %c0_58] : memref<2x1x32xf32, #tpu.memory_space<vmem>>, vector<1x1x32xf32>
    %65 = vector.shape_cast %64 : vector<1x1x32xf32> to vector<1x32xf32>
    %66 = vector.broadcast %65 : vector<1x32xf32> to vector<16x32xf32>
    %67 = arith.addf %63, %66 : vector<16x32xf32>
    %c0_59 = arith.constant 0 : index
    %c0_60 = arith.constant 0 : index
    %c0_61 = arith.constant 0 : index
    %68 = vector.load %arg20[%c0_59, %c0_60, %c0_61] : memref<2x32x32xf32, #tpu.memory_space<vmem>>, vector<1x32x32xf32>
    %69 = vector.shape_cast %68 : vector<1x32x32xf32> to vector<32x32xf32>
    %cst_62 = arith.constant dense<0.000000e+00> : vector<32x32xf32>
    %70 = tpu.matmul %25, %69, %cst_62 {dimension_numbers = #tpu.dot_dimension_numbers<[1], [0], [0], [1], [0, 0, 1, 1], [], []>} : vector<32x32xf32>, vector<32x32xf32>, vector<32x32xf32> -> vector<32x32xf32>
    %c0_63 = arith.constant 0 : index
    %c0_64 = arith.constant 0 : index
    %c0_65 = arith.constant 0 : index
    %71 = vector.load %arg21[%c0_63, %c0_64, %c0_65] : memref<2x1x32xf32, #tpu.memory_space<vmem>>, vector<1x1x32xf32>
    %72 = vector.shape_cast %71 : vector<1x1x32xf32> to vector<1x32xf32>
    %73 = vector.broadcast %72 : vector<1x32xf32> to vector<32x32xf32>
    %74 = arith.addf %70, %73 : vector<32x32xf32>
    %cst_66 = arith.constant 0.000000e+00 : f32
    %75 = vector.broadcast %cst_66 : f32 to vector<32x32xf32>
    %76 = arith.maximumf %74, %75 : vector<32x32xf32>
    %77 = arith.addf %25, %76 : vector<32x32xf32>
    %c1 = arith.constant 1 : index
    %c0_67 = arith.constant 0 : index
    %c0_68 = arith.constant 0 : index
    %78 = vector.load %arg12[%c1, %c0_67, %c0_68] : memref<2x32x32xf32, #tpu.memory_space<vmem>>, vector<1x32x32xf32>
    %79 = vector.shape_cast %78 : vector<1x32x32xf32> to vector<32x32xf32>
    %cst_69 = arith.constant dense<0.000000e+00> : vector<16x32xf32>
    %80 = tpu.matmul %67, %79, %cst_69 {dimension_numbers = #tpu.dot_dimension_numbers<[1], [0], [0], [1], [0, 0, 1, 1], [], []>} : vector<16x32xf32>, vector<32x32xf32>, vector<16x32xf32> -> vector<16x32xf32>
    %c1_70 = arith.constant 1 : index
    %c0_71 = arith.constant 0 : index
    %c0_72 = arith.constant 0 : index
    %81 = vector.load %arg13[%c1_70, %c0_71, %c0_72] : memref<2x32x32xf32, #tpu.memory_space<vmem>>, vector<1x32x32xf32>
    %82 = vector.shape_cast %81 : vector<1x32x32xf32> to vector<32x32xf32>
    %cst_73 = arith.constant dense<0.000000e+00> : vector<16x32xf32>
    %83 = tpu.matmul %67, %82, %cst_73 {dimension_numbers = #tpu.dot_dimension_numbers<[1], [0], [0], [1], [0, 0, 1, 1], [], []>} : vector<16x32xf32>, vector<32x32xf32>, vector<16x32xf32> -> vector<16x32xf32>
    %c1_74 = arith.constant 1 : index
    %c0_75 = arith.constant 0 : index
    %c0_76 = arith.constant 0 : index
    %84 = vector.load %arg14[%c1_74, %c0_75, %c0_76] : memref<2x32x32xf32, #tpu.memory_space<vmem>>, vector<1x32x32xf32>
    %85 = vector.shape_cast %84 : vector<1x32x32xf32> to vector<32x32xf32>
    %cst_77 = arith.constant dense<0.000000e+00> : vector<16x32xf32>
    %86 = tpu.matmul %67, %85, %cst_77 {dimension_numbers = #tpu.dot_dimension_numbers<[1], [0], [0], [1], [0, 0, 1, 1], [], []>} : vector<16x32xf32>, vector<32x32xf32>, vector<16x32xf32> -> vector<16x32xf32>
    %cst_78 = arith.constant dense<0.000000e+00> : vector<16x16xf32>
    %87 = tpu.matmul %80, %83, %cst_78 {dimension_numbers = #tpu.dot_dimension_numbers<[1], [1], [0], [0], [0, 0, 1, 0], [], []>} : vector<16x32xf32>, vector<16x32xf32>, vector<16x16xf32> -> vector<16x16xf32>
    %cst_79 = arith.constant dense<0xFF800000> : vector<16xf32>
    %88 = vector.multi_reduction <maximumf>, %87, %cst_79 [1] : vector<16x16xf32> to vector<16xf32>
    %89 = vector.shape_cast %88 : vector<16xf32> to vector<16x1xf32>
    %90 = vector.broadcast %89 : vector<16x1xf32> to vector<16x16xf32>
    %91 = arith.subf %87, %90 : vector<16x16xf32>
    %92 = math.exp %91 : vector<16x16xf32>
    %cst_80 = arith.constant dense<0.000000e+00> : vector<16xf32>
    %93 = vector.multi_reduction <add>, %92, %cst_80 [1] : vector<16x16xf32> to vector<16xf32>
    %94 = vector.shape_cast %93 : vector<16xf32> to vector<16x1xf32>
    %95 = tpu.reciprocal %94 {approx = true} : vector<16x1xf32> -> vector<16x1xf32>
    %96 = vector.broadcast %95 : vector<16x1xf32> to vector<16x16xf32>
    %97 = arith.mulf %92, %96 : vector<16x16xf32>
    %cst_81 = arith.constant dense<0.000000e+00> : vector<16x32xf32>
    %98 = tpu.matmul %97, %86, %cst_81 {dimension_numbers = #tpu.dot_dimension_numbers<[1], [0], [0], [1], [0, 0, 1, 1], [], []>} : vector<16x16xf32>, vector<16x32xf32>, vector<16x32xf32> -> vector<16x32xf32>
    %c1_82 = arith.constant 1 : index
    %c0_83 = arith.constant 0 : index
    %c0_84 = arith.constant 0 : index
    %99 = vector.load %arg15[%c1_82, %c0_83, %c0_84] : memref<2x32x32xf32, #tpu.memory_space<vmem>>, vector<1x32x32xf32>
    %100 = vector.shape_cast %99 : vector<1x32x32xf32> to vector<32x32xf32>
    %cst_85 = arith.constant dense<0.000000e+00> : vector<16x32xf32>
    %101 = tpu.matmul %98, %100, %cst_85 {dimension_numbers = #tpu.dot_dimension_numbers<[1], [0], [0], [1], [0, 0, 1, 1], [], []>} : vector<16x32xf32>, vector<32x32xf32>, vector<16x32xf32> -> vector<16x32xf32>
    %102 = arith.addf %67, %101 : vector<16x32xf32>
    %c1_86 = arith.constant 1 : index
    %c0_87 = arith.constant 0 : index
    %c0_88 = arith.constant 0 : index
    %103 = vector.load %arg16[%c1_86, %c0_87, %c0_88] : memref<2x32x32xf32, #tpu.memory_space<vmem>>, vector<1x32x32xf32>
    %104 = vector.shape_cast %103 : vector<1x32x32xf32> to vector<32x32xf32>
    %cst_89 = arith.constant dense<0.000000e+00> : vector<16x32xf32>
    %105 = tpu.matmul %102, %104, %cst_89 {dimension_numbers = #tpu.dot_dimension_numbers<[1], [0], [0], [1], [0, 0, 1, 1], [], []>} : vector<16x32xf32>, vector<32x32xf32>, vector<16x32xf32> -> vector<16x32xf32>
    %c1_90 = arith.constant 1 : index
    %c0_91 = arith.constant 0 : index
    %c0_92 = arith.constant 0 : index
    %106 = vector.load %arg17[%c1_90, %c0_91, %c0_92] : memref<2x1x32xf32, #tpu.memory_space<vmem>>, vector<1x1x32xf32>
    %107 = vector.shape_cast %106 : vector<1x1x32xf32> to vector<1x32xf32>
    %108 = vector.broadcast %107 : vector<1x32xf32> to vector<16x32xf32>
    %109 = arith.addf %105, %108 : vector<16x32xf32>
    %cst_93 = arith.constant 0.000000e+00 : f32
    %110 = vector.broadcast %cst_93 : f32 to vector<16x32xf32>
    %111 = arith.maximumf %109, %110 : vector<16x32xf32>
    %c1_94 = arith.constant 1 : index
    %c0_95 = arith.constant 0 : index
    %c0_96 = arith.constant 0 : index
    %112 = vector.load %arg18[%c1_94, %c0_95, %c0_96] : memref<2x32x32xf32, #tpu.memory_space<vmem>>, vector<1x32x32xf32>
    %113 = vector.shape_cast %112 : vector<1x32x32xf32> to vector<32x32xf32>
    %cst_97 = arith.constant dense<0.000000e+00> : vector<16x32xf32>
    %114 = tpu.matmul %111, %113, %cst_97 {dimension_numbers = #tpu.dot_dimension_numbers<[1], [0], [0], [1], [0, 0, 1, 1], [], []>} : vector<16x32xf32>, vector<32x32xf32>, vector<16x32xf32> -> vector<16x32xf32>
    %115 = arith.addf %102, %114 : vector<16x32xf32>
    %c1_98 = arith.constant 1 : index
    %c0_99 = arith.constant 0 : index
    %c0_100 = arith.constant 0 : index
    %116 = vector.load %arg19[%c1_98, %c0_99, %c0_100] : memref<2x1x32xf32, #tpu.memory_space<vmem>>, vector<1x1x32xf32>
    %117 = vector.shape_cast %116 : vector<1x1x32xf32> to vector<1x32xf32>
    %118 = vector.broadcast %117 : vector<1x32xf32> to vector<16x32xf32>
    %119 = arith.addf %115, %118 : vector<16x32xf32>
    %c1_101 = arith.constant 1 : index
    %c0_102 = arith.constant 0 : index
    %c0_103 = arith.constant 0 : index
    %120 = vector.load %arg20[%c1_101, %c0_102, %c0_103] : memref<2x32x32xf32, #tpu.memory_space<vmem>>, vector<1x32x32xf32>
    %121 = vector.shape_cast %120 : vector<1x32x32xf32> to vector<32x32xf32>
    %cst_104 = arith.constant dense<0.000000e+00> : vector<32x32xf32>
    %122 = tpu.matmul %77, %121, %cst_104 {dimension_numbers = #tpu.dot_dimension_numbers<[1], [0], [0], [1], [0, 0, 1, 1], [], []>} : vector<32x32xf32>, vector<32x32xf32>, vector<32x32xf32> -> vector<32x32xf32>
    %c1_105 = arith.constant 1 : index
    %c0_106 = arith.constant 0 : index
    %c0_107 = arith.constant 0 : index
    %123 = vector.load %arg21[%c1_105, %c0_106, %c0_107] : memref<2x1x32xf32, #tpu.memory_space<vmem>>, vector<1x1x32xf32>
    %124 = vector.shape_cast %123 : vector<1x1x32xf32> to vector<1x32xf32>
    %125 = vector.broadcast %124 : vector<1x32xf32> to vector<32x32xf32>
    %126 = arith.addf %122, %125 : vector<32x32xf32>
    %cst_108 = arith.constant 0.000000e+00 : f32
    %127 = vector.broadcast %cst_108 : f32 to vector<32x32xf32>
    %128 = arith.maximumf %126, %127 : vector<32x32xf32>
    %129 = arith.addf %77, %128 : vector<32x32xf32>
    %130 = tpu.iota {dimensions = array<i32: 1>} : vector<32x16xi32>
    %c0_109 = arith.constant 0 : index
    %c0_110 = arith.constant 0 : index
    %131 = vector.load %arg2[%c0_109, %c0_110] : memref<32x1xi32, #tpu.memory_space<vmem>>, vector<32x1xi32>
    %132 = vector.broadcast %131 : vector<32x1xi32> to vector<32x16xi32>
    %133 = arith.cmpi eq, %130, %132 : vector<32x16xi32>
    %134 = arith.extui %133 : vector<32x16xi1> to vector<32x16xi32>
    %135 = arith.sitofp %134 : vector<32x16xi32> to vector<32x16xf32>
    %c0_111 = arith.constant 0 : index
    %c0_112 = arith.constant 0 : index
    %136 = vector.load %arg3[%c0_111, %c0_112] : memref<32x1xi32, #tpu.memory_space<vmem>>, vector<32x1xi32>
    %137 = vector.broadcast %136 : vector<32x1xi32> to vector<32x16xi32>
    %138 = arith.cmpi eq, %130, %137 : vector<32x16xi32>
    %139 = arith.extui %138 : vector<32x16xi1> to vector<32x16xi32>
    %140 = arith.sitofp %139 : vector<32x16xi32> to vector<32x16xf32>
    %cst_113 = arith.constant dense<0.000000e+00> : vector<32x32xf32>
    %141 = tpu.matmul %135, %119, %cst_113 {dimension_numbers = #tpu.dot_dimension_numbers<[1], [0], [0], [1], [0, 0, 1, 1], [], []>} : vector<32x16xf32>, vector<16x32xf32>, vector<32x32xf32> -> vector<32x32xf32>
    %cst_114 = arith.constant dense<0.000000e+00> : vector<32x32xf32>
    %142 = tpu.matmul %140, %119, %cst_114 {dimension_numbers = #tpu.dot_dimension_numbers<[1], [0], [0], [1], [0, 0, 1, 1], [], []>} : vector<32x16xf32>, vector<16x32xf32>, vector<32x32xf32> -> vector<32x32xf32>
    %c0_115 = arith.constant 0 : index
    %c0_116 = arith.constant 0 : index
    %143 = vector.load %arg22[%c0_115, %c0_116] : memref<32x16xf32, #tpu.memory_space<vmem>>, vector<32x16xf32>
    %cst_117 = arith.constant dense<0.000000e+00> : vector<32x16xf32>
    %144 = tpu.matmul %141, %143, %cst_117 {dimension_numbers = #tpu.dot_dimension_numbers<[1], [0], [0], [1], [0, 0, 1, 1], [], []>} : vector<32x32xf32>, vector<32x16xf32>, vector<32x16xf32> -> vector<32x16xf32>
    %c0_118 = arith.constant 0 : index
    %c0_119 = arith.constant 0 : index
    %145 = vector.load %arg23[%c0_118, %c0_119] : memref<32x16xf32, #tpu.memory_space<vmem>>, vector<32x16xf32>
    %cst_120 = arith.constant dense<0.000000e+00> : vector<32x16xf32>
    %146 = tpu.matmul %142, %145, %cst_120 {dimension_numbers = #tpu.dot_dimension_numbers<[1], [0], [0], [1], [0, 0, 1, 1], [], []>} : vector<32x32xf32>, vector<32x16xf32>, vector<32x16xf32> -> vector<32x16xf32>
    %147 = arith.addf %144, %146 : vector<32x16xf32>
    %c0_121 = arith.constant 0 : index
    %c0_122 = arith.constant 0 : index
    %148 = vector.load %arg24[%c0_121, %c0_122] : memref<32x16xf32, #tpu.memory_space<vmem>>, vector<32x16xf32>
    %cst_123 = arith.constant dense<0.000000e+00> : vector<32x16xf32>
    %149 = tpu.matmul %129, %148, %cst_123 {dimension_numbers = #tpu.dot_dimension_numbers<[1], [0], [0], [1], [0, 0, 1, 1], [], []>} : vector<32x32xf32>, vector<32x16xf32>, vector<32x16xf32> -> vector<32x16xf32>
    %150 = arith.addf %147, %149 : vector<32x16xf32>
    %c0_124 = arith.constant 0 : index
    %c0_125 = arith.constant 0 : index
    %151 = vector.load %arg25[%c0_124, %c0_125] : memref<1x16xf32, #tpu.memory_space<vmem>>, vector<1x16xf32>
    %152 = vector.broadcast %151 : vector<1x16xf32> to vector<32x16xf32>
    %153 = arith.addf %150, %152 : vector<32x16xf32>
    %cst_126 = arith.constant 0.000000e+00 : f32
    %154 = vector.broadcast %cst_126 : f32 to vector<32x16xf32>
    %155 = arith.maximumf %153, %154 : vector<32x16xf32>
    %c0_127 = arith.constant 0 : index
    %c0_128 = arith.constant 0 : index
    %156 = vector.load %arg26[%c0_127, %c0_128] : memref<1x16xf32, #tpu.memory_space<vmem>>, vector<1x16xf32>
    %cst_129 = arith.constant dense<0.000000e+00> : vector<1x32xf32>
    %157 = tpu.matmul %156, %155, %cst_129 {dimension_numbers = #tpu.dot_dimension_numbers<[1], [1], [0], [0], [0, 0, 1, 0], [], []>} : vector<1x16xf32>, vector<32x16xf32>, vector<1x32xf32> -> vector<1x32xf32>
    %c0_130 = arith.constant 0 : index
    %c0_131 = arith.constant 0 : index
    %158 = vector.load %arg27[%c0_130, %c0_131] : memref<1x1xf32, #tpu.memory_space<vmem>>, vector<1x1xf32>
    %159 = vector.broadcast %158 : vector<1x1xf32> to vector<1x32xf32>
    %160 = arith.addf %157, %159 : vector<1x32xf32>
    %c0_132 = arith.constant 0 : index
    %c0_133 = arith.constant 0 : index
    %161 = vector.load %arg28[%c0_132, %c0_133] : memref<1x32xf32, #tpu.memory_space<vmem>>, vector<1x32xf32>
    tpu.vector_store %arg28[%c0_132, %c0_133], %160 {strides = array<i32>} : memref<1x32xf32, #tpu.memory_space<vmem>>, vector<1x32xf32>,
    return
  }
}

</mosaic_0001>

<llo_original>
// kernel: forward.1
$region0: #{forward.1}
  #allocation0 [shape = 'u32[]', space=smem, size = 0x4, offset = 0x4, fixed_abs, tag = 'smem constant byte address 0x4 - core index']
  #allocation1 [shape = 'u32[144,128]{1,0:T(1,128)}', space=vmem, size = 0x12000, scoped, tag = 'internal scratch']
  #allocation2 [shape = 'f32[1,1]{1,0:T(1,128)S(1)}', space=vmem, size = 0x200, scoped, tag = 'scoped memory for forward.1']
  %s0 = inlined_call_operand.hbm [shape: f32[16,8], index: 0, kind: input, shape index: {}]
  %s1 = inlined_call_operand.hbm [shape: f32[32,4], index: 1, kind: input, shape index: {}]
  %s2 = inlined_call_operand.hbm [shape: s32[32,1], index: 2, kind: input, shape index: {}]
  %s3 = inlined_call_operand.hbm [shape: s32[32,1], index: 3, kind: input, shape index: {}]
  %s4 = inlined_call_operand.hbm [shape: f32[8,16], index: 4, kind: input, shape index: {}]
  %s5 = inlined_call_operand.hbm [shape: f32[1,16], index: 5, kind: input, shape index: {}]
  %s6 = inlined_call_operand.hbm [shape: f32[16,32], index: 6, kind: input, shape index: {}]
  %s7 = inlined_call_operand.hbm [shape: f32[1,32], index: 7, kind: input, shape index: {}]
  %s8 = inlined_call_operand.hbm [shape: f32[4,16], index: 8, kind: input, shape index: {}]
  %s9 = inlined_call_operand.hbm [shape: f32[1,16], index: 9, kind: input, shape index: {}]
  %s10 = inlined_call_operand.hbm [shape: f32[16,32], index: 10, kind: input, shape index: {}]
  %s11 = inlined_call_operand.hbm [shape: f32[1,32], index: 11, kind: input, shape index: {}]
  %s12 = inlined_call_operand.hbm [shape: f32[2,32,32], index: 12, kind: input, shape index: {}]
  %s13 = inlined_call_operand.hbm [shape: f32[2,32,32], index: 13, kind: input, shape index: {}]
  %s14 = inlined_call_operand.hbm [shape: f32[2,32,32], index: 14, kind: input, shape index: {}]
  %s15 = inlined_call_operand.hbm [shape: f32[2,32,32], index: 15, kind: input, shape index: {}]
  %s16 = inlined_call_operand.hbm [shape: f32[2,32,32], index: 16, kind: input, shape index: {}]
  %s17 = inlined_call_operand.hbm [shape: f32[2,1,32], index: 17, kind: input, shape index: {}]
  %s18 = inlined_call_operand.hbm [shape: f32[2,32,32], index: 18, kind: input, shape index: {}]
  %s19 = inlined_call_operand.hbm [shape: f32[2,1,32], index: 19, kind: input, shape index: {}]
  %s20 = inlined_call_operand.hbm [shape: f32[2,32,32], index: 20, kind: input, shape index: {}]
  %s21 = inlined_call_operand.hbm [shape: f32[2,1,32], index: 21, kind: input, shape index: {}]
  %s22 = inlined_call_operand.hbm [shape: f32[32,16], index: 22, kind: input, shape index: {}]
  %s23 = inlined_call_operand.hbm [shape: f32[32,16], index: 23, kind: input, shape index: {}]
  %s24 = inlined_call_operand.hbm [shape: f32[32,16], index: 24, kind: input, shape index: {}]
  %s25 = inlined_call_operand.hbm [shape: f32[1,16], index: 25, kind: input, shape index: {}]
  %s26 = inlined_call_operand.hbm [shape: f32[1,16], index: 26, kind: input, shape index: {}]
  %s27 = inlined_call_operand.<no memory space> [shape: f32[1,1], index: 27, kind: input, shape index: {}]
  %s28 = inlined_call_operand.hbm [shape: f32[1,32], index: 28, kind: output, shape index: {}]
  %s29 = sld [smem:[#allocation0]]
  $region230: #{forward.1} parent=0
    _
  %s31 = ssub.s32 1, %s29
  %s32 = scalar_select 0, %s31, %s29
  %v33 = vstv %s27
  %34 = vst [vmem:[#allocation2] sm:$0x1] %v33
  $region1: #{forward.1} parent=0
    #allocation3 [shape = 'u8[8192]{0}', space=vmem, size = 0x2000, scoped, tag = 'input window, operand 0, single buffered']
    #allocation4 [shape = 's32[1]{0}', space=sflag, size = 0x4, scoped, tag = 'scoped memory for forward.1']
    #allocation5 [shape = 's32[1]{0}', space=sflag, size = 0x4, scoped, tag = 'scoped memory for forward.1']
    #allocation6 [shape = 'u8[16384]{0}', space=vmem, size = 0x4000, scoped, tag = 'input window, operand 1, single buffered']
    #allocation7 [shape = 's32[1]{0}', space=sflag, size = 0x4, scoped, tag = 'scoped memory for forward.1']
    #allocation8 [shape = 'u8[16384]{0}', space=vmem, size = 0x4000, scoped, tag = 'input window, operand 2, single buffered']
    #allocation9 [shape = 'u8[16384]{0}', space=vmem, size = 0x4000, scoped, tag = 'input window, operand 3, single buffered']
    #allocation10 [shape = 's32[1]{0}', space=sflag, size = 0x4, scoped, tag = 'scoped memory for forward.1']
    #allocation11 [shape = 'u8[4096]{0}', space=vmem, size = 0x1000, scoped, tag = 'input window, operand 4, single buffered']
    #allocation12 [shape = 'u8[512]{0}', space=vmem, size = 0x400, scoped, tag = 'input window, operand 5, single buffered']
    #allocation13 [shape = 's32[1]{0}', space=sflag, size = 0x4, scoped, tag = 'scoped memory for forward.1']
    #allocation14 [shape = 'u8[8192]{0}', space=vmem, size = 0x2000, scoped, tag = 'input window, operand 6, single buffered']
    #allocation15 [shape = 'u8[512]{0}', space=vmem, size = 0x400, scoped, tag = 'input window, operand 7, single buffered']
    #allocation16 [shape = 's32[1]{0}', space=sflag, size = 0x4, scoped, tag = 'scoped memory for forward.1']
    #allocation17 [shape = 'u8[2048]{0}', space=vmem, size = 0x800, scoped, tag = 'input window, operand 8, single buffered']
    #allocation18 [shape = 'u8[512]{0}', space=vmem, size = 0x400, scoped, tag = 'input window, operand 9, single buffered']
    #allocation19 [shape = 's32[1]{0}', space=sflag, size = 0x4, scoped, tag = 'scoped memory for forward.1']
    #allocation20 [shape = 'u8[8192]{0}', space=vmem, size = 0x2000, scoped, tag = 'input window, operand 10, single buffered']
    #allocation21 [shape = 'u8[512]{0}', space=vmem, size = 0x400, scoped, tag = 'input window, operand 11, single buffered']
    #allocation22 [shape = 's32[1]{0}', space=sflag, size = 0x4, scoped, tag = 'scoped memory for forward.1']
    #allocation23 [shape = 'u8[32768]{0}', space=vmem, size = 0x8000, scoped, tag = 'input window, operand 12, single buffered']
    #allocation24 [shape = 'u8[32768]{0}', space=vmem, size = 0x8000, scoped, tag = 'input window, operand 13, single buffered']
    #allocation25 [shape = 's32[1]{0}', space=sflag, size = 0x4, scoped, tag = 'scoped memory for forward.1']
    #allocation26 [shape = 'u8[32768]{0}', space=vmem, size = 0x8000, scoped, tag = 'input window, operand 14, single buffered']
    #allocation27 [shape = 'u8[32768]{0}', space=vmem, size = 0x8000, scoped, tag = 'input window, operand 15, single buffered']
    #allocation28 [shape = 's32[1]{0}', space=sflag, size = 0x4, scoped, tag = 'scoped memory for forward.1']
    #allocation29 [shape = 'u8[32768]{0}', space=vmem, size = 0x8000, scoped, tag = 'input window, operand 16, single buffered']
    #allocation30 [shape = 'u8[1024]{0}', space=vmem, size = 0x400, scoped, tag = 'input window, operand 17, single buffered']
    #allocation31 [shape = 's32[1]{0}', space=sflag, size = 0x4, scoped, tag = 'scoped memory for forward.1']
    #allocation32 [shape = 'u8[32768]{0}', space=vmem, size = 0x8000, scoped, tag = 'input window, operand 18, single buffered']
    #allocation33 [shape = 'u8[1024]{0}', space=vmem, size = 0x400, scoped, tag = 'input window, operand 19, single buffered']
    #allocation34 [shape = 's32[1]{0}', space=sflag, size = 0x4, scoped, tag = 'scoped memory for forward.1']
    #allocation35 [shape = 'u8[32768]{0}', space=vmem, size = 0x8000, scoped, tag = 'input window, operand 20, single buffered']
    #allocation36 [shape = 'u8[1024]{0}', space=vmem, size = 0x400, scoped, tag = 'input window, operand 21, single buffered']
    #allocation37 [shape = 's32[1]{0}', space=sflag, size = 0x4, scoped, tag = 'scoped memory for forward.1']
    #allocation38 [shape = 'u8[16384]{0}', space=vmem, size = 0x4000, scoped, tag = 'input window, operand 22, single buffered']
    #allocation39 [shape = 'u8[16384]{0}', space=vmem, size = 0x4000, scoped, tag = 'input window, operand 23, single buffered']
    #allocation40 [shape = 's32[1]{0}', space=sflag, size = 0x4, scoped, tag = 'scoped memory for forward.1']
    #allocation41 [shape = 'u8[16384]{0}', space=vmem, size = 0x4000, scoped, tag = 'input window, operand 24, single buffered']
    #allocation42 [shape = 'u8[512]{0}', space=vmem, size = 0x400, scoped, tag = 'input window, operand 25, single buffered']
    #allocation43 [shape = 's32[1]{0}', space=sflag, size = 0x4, scoped, tag = 'scoped memory for forward.1']
    #allocation44 [shape = 'u8[512]{0}', space=vmem, size = 0x400, scoped, tag = 'input window, operand 26, single buffered']
    #allocation45 [shape = 'u8[512]{0}', space=vmem, size = 0x400, scoped, tag = 'output window, operand 0, single buffered']
    %35 = vsyncpa [#allocation4], 0
    %36 = vsyncpa [#allocation7], 0
    %37 = vsyncpa [#allocation10], 0
    %38 = vsyncpa [#allocation13], 0
    %39 = vsyncpa [#allocation16], 0
    %40 = vsyncpa [#allocation19], 0
    %41 = vsyncpa [#allocation22], 0
    %42 = vsyncpa [#allocation25], 0
    %43 = vsyncpa [#allocation28], 0
    %44 = vsyncpa [#allocation31], 0
    %45 = vsyncpa [#allocation34], 0
    %46 = vsyncpa [#allocation37], 0
    %47 = vsyncpa [#allocation40], 0
    %48 = vsyncpa [#allocation43], 0
    %49 = vsyncpa [#allocation5], 0
    // Predicated region
    $region2: #{forward.1} parent=1 // pred_check
      _
    $region3: #{forward.1} parent=1 // pred_check_branch
      %51 = sbr.rel (0) target = $region5
    $region4: #{forward.1} parent=1 // pred_region
      %s53 = ssub.s32 256, 256
      %54 = vsyncadd [#allocation4], %s53
      %s55 = sshll.u32 [#allocation3], 4
      %s56 = int_to_ptr.vmem [resolvable:$true] %s55
      %61 = dma.hbm_to_vmem [thread:$0]  %s0, 256, %s56, [#allocation4], 128, 128, 8
    $region5: #{forward.1} parent=1 // pred_fallthru
      _
    // Predicated region
    $region6: #{forward.1} parent=1 // pred_check
      _
    $region7: #{forward.1} parent=1 // pred_check_branch
      %63 = sbr.rel (0) target = $region9
    $region8: #{forward.1} parent=1 // pred_region
      %s65 = ssub.s32 512, 512
      %66 = vsyncadd [#allocation7], %s65
      %s67 = sshll.u32 [#allocation6], 4
      %s68 = int_to_ptr.vmem [resolvable:$true] %s67
      %73 = dma.hbm_to_vmem [thread:$0]  %s1, 512, %s68, [#allocation7], 128, 128, 8
    $region9: #{forward.1} parent=1 // pred_fallthru
      _
    // Predicated region
    $region10: #{forward.1} parent=1 // pred_check
      _
    $region11: #{forward.1} parent=1 // pred_check_branch
      %75 = sbr.rel (0) target = $region13
    $region12: #{forward.1} parent=1 // pred_region
      %s77 = ssub.s32 512, 512
      %78 = vsyncadd [#allocation7], %s77
      %s79 = sshll.u32 [#allocation8], 4
      %s80 = int_to_ptr.vmem [resolvable:$true] %s79
      %85 = dma.hbm_to_vmem [thread:$0]  %s2, 512, %s80, [#allocation7], 128, 128, 8
    $region13: #{forward.1} parent=1 // pred_fallthru
      _
    // Predicated region
    $region14: #{forward.1} parent=1 // pred_check
      _
    $region15: #{forward.1} parent=1 // pred_check_branch
      %87 = sbr.rel (0) target = $region17
    $region16: #{forward.1} parent=1 // pred_region
      %s89 = ssub.s32 512, 512
      %90 = vsyncadd [#allocation10], %s89
      %s91 = sshll.u32 [#allocation9], 4
      %s92 = int_to_ptr.vmem [resolvable:$true] %s91
      %97 = dma.hbm_to_vmem [thread:$0]  %s3, 512, %s92, [#allocation10], 128, 128, 8
    $region17: #{forward.1} parent=1 // pred_fallthru
      _
    // Predicated region
    $region18: #{forward.1} parent=1 // pred_check
      _
    $region19: #{forward.1} parent=1 // pred_check_branch
      %99 = sbr.rel (0) target = $region21
    $region20: #{forward.1} parent=1 // pred_region
      %s101 = ssub.s32 128, 128
      %102 = vsyncadd [#allocation10], %s101
      %s104 = sshll.u32 [#allocation11], 4
      %s105 = int_to_ptr.vmem [resolvable:$true] %s104
      %107 = dma.hbm_to_vmem [thread:$0]  %s4, 128, %s105, [#allocation10]
    $region21: #{forward.1} parent=1 // pred_fallthru
      _
    // Predicated region
    $region22: #{forward.1} parent=1 // pred_check
      _
    $region23: #{forward.1} parent=1 // pred_check_branch
      %109 = sbr.rel (0) target = $region25
    $region24: #{forward.1} parent=1 // pred_region
      %s111 = ssub.s32 16, 16
      %112 = vsyncadd [#allocation13], %s111
      %s114 = sshll.u32 [#allocation12], 4
      %s115 = int_to_ptr.vmem [resolvable:$true] %s114
      %117 = dma.hbm_to_vmem [thread:$0]  %s5, 16, %s115, [#allocation13]
    $region25: #{forward.1} parent=1 // pred_fallthru
      _
    // Predicated region
    $region26: #{forward.1} parent=1 // pred_check
      _
    $region27: #{forward.1} parent=1 // pred_check_branch
      %119 = sbr.rel (0) target = $region29
    $region28: #{forward.1} parent=1 // pred_region
      %s121 = ssub.s32 256, 256
      %122 = vsyncadd [#allocation13], %s121
      %s123 = sshll.u32 [#allocation14], 4
      %s124 = int_to_ptr.vmem [resolvable:$true] %s123
      %129 = dma.hbm_to_vmem [thread:$0]  %s6, 256, %s124, [#allocation13], 128, 128, 8
    $region29: #{forward.1} parent=1 // pred_fallthru
      _
    // Predicated region
    $region30: #{forward.1} parent=1 // pred_check
      _
    $region31: #{forward.1} parent=1 // pred_check_branch
      %131 = sbr.rel (0) target = $region33
    $region32: #{forward.1} parent=1 // pred_region
      %s133 = ssub.s32 16, 16
      %134 = vsyncadd [#allocation16], %s133
      %s136 = sshll.u32 [#allocation15], 4
      %s137 = int_to_ptr.vmem [resolvable:$true] %s136
      %139 = dma.hbm_to_vmem [thread:$0]  %s7, 16, %s137, [#allocation16]
    $region33: #{forward.1} parent=1 // pred_fallthru
      _
    // Predicated region
    $region34: #{forward.1} parent=1 // pred_check
      _
    $region35: #{forward.1} parent=1 // pred_check_branch
      %141 = sbr.rel (0) target = $region37
    $region36: #{forward.1} parent=1 // pred_region
      %s143 = ssub.s32 64, 64
      %144 = vsyncadd [#allocation16], %s143
      %s146 = sshll.u32 [#allocation17], 4
      %s147 = int_to_ptr.vmem [resolvable:$true] %s146
      %149 = dma.hbm_to_vmem [thread:$0]  %s8, 64, %s147, [#allocation16]
    $region37: #{forward.1} parent=1 // pred_fallthru
      _
    // Predicated region
    $region38: #{forward.1} parent=1 // pred_check
      _
    $region39: #{forward.1} parent=1 // pred_check_branch
      %151 = sbr.rel (0) target = $region41
    $region40: #{forward.1} parent=1 // pred_region
      %s153 = ssub.s32 16, 16
      %154 = vsyncadd [#allocation19], %s153
      %s156 = sshll.u32 [#allocation18], 4
      %s157 = int_to_ptr.vmem [resolvable:$true] %s156
      %159 = dma.hbm_to_vmem [thread:$0]  %s9, 16, %s157, [#allocation19]
    $region41: #{forward.1} parent=1 // pred_fallthru
      _
    // Predicated region
    $region42: #{forward.1} parent=1 // pred_check
      _
    $region43: #{forward.1} parent=1 // pred_check_branch
      %161 = sbr.rel (0) target = $region45
    $region44: #{forward.1} parent=1 // pred_region
      %s163 = ssub.s32 256, 256
      %164 = vsyncadd [#allocation19], %s163
      %s165 = sshll.u32 [#allocation20], 4
      %s166 = int_to_ptr.vmem [resolvable:$true] %s165
      %171 = dma.hbm_to_vmem [thread:$0]  %s10, 256, %s166, [#allocation19], 128, 128, 8
    $region45: #{forward.1} parent=1 // pred_fallthru
      _
    // Predicated region
    $region46: #{forward.1} parent=1 // pred_check
      _
    $region47: #{forward.1} parent=1 // pred_check_branch
      %173 = sbr.rel (0) target = $region49
    $region48: #{forward.1} parent=1 // pred_region
      %s175 = ssub.s32 16, 16
      %176 = vsyncadd [#allocation22], %s175
      %s178 = sshll.u32 [#allocation21], 4
      %s179 = int_to_ptr.vmem [resolvable:$true] %s178
      %181 = dma.hbm_to_vmem [thread:$0]  %s11, 16, %s179, [#allocation22]
    $region49: #{forward.1} parent=1 // pred_fallthru
      _
    // Predicated region
    $region50: #{forward.1} parent=1 // pred_check
      _
    $region51: #{forward.1} parent=1 // pred_check_branch
      %183 = sbr.rel (0) target = $region53
    $region52: #{forward.1} parent=1 // pred_region
      %s185 = ssub.s32 1024, 1024
      %186 = vsyncadd [#allocation22], %s185
      %s187 = sshll.u32 [#allocation23], 4
      %s188 = int_to_ptr.vmem [resolvable:$true] %s187
      %193 = dma.hbm_to_vmem [thread:$0]  %s12, 1024, %s188, [#allocation22], 128, 128, 8
    $region53: #{forward.1} parent=1 // pred_fallthru
      _
    // Predicated region
    $region54: #{forward.1} parent=1 // pred_check
      _
    $region55: #{forward.1} parent=1 // pred_check_branch
      %195 = sbr.rel (0) target = $region57
    $region56: #{forward.1} parent=1 // pred_region
      %s197 = ssub.s32 1024, 1024
      %198 = vsyncadd [#allocation25], %s197
      %s199 = sshll.u32 [#allocation24], 4
      %s200 = int_to_ptr.vmem [resolvable:$true] %s199
      %205 = dma.hbm_to_vmem [thread:$0]  %s13, 1024, %s200, [#allocation25], 128, 128, 8
    $region57: #{forward.1} parent=1 // pred_fallthru
      _
    // Predicated region
    $region58: #{forward.1} parent=1 // pred_check
      _
    $region59: #{forward.1} parent=1 // pred_check_branch
      %207 = sbr.rel (0) target = $region61
    $region60: #{forward.1} parent=1 // pred_region
      %s209 = ssub.s32 1024, 1024
      %210 = vsyncadd [#allocation25], %s209
      %s211 = sshll.u32 [#allocation26], 4
      %s212 = int_to_ptr.vmem [resolvable:$true] %s211
      %217 = dma.hbm_to_vmem [thread:$0]  %s14, 1024, %s212, [#allocation25], 128, 128, 8
    $region61: #{forward.1} parent=1 // pred_fallthru
      _
    // Predicated region
    $region62: #{forward.1} parent=1 // pred_check
      _
    $region63: #{forward.1} parent=1 // pred_check_branch
      %219 = sbr.rel (0) target = $region65
    $region64: #{forward.1} parent=1 // pred_region
      %s221 = ssub.s32 1024, 1024
      %222 = vsyncadd [#allocation28], %s221
      %s223 = sshll.u32 [#allocation27], 4
      %s224 = int_to_ptr.vmem [resolvable:$true] %s223
      %229 = dma.hbm_to_vmem [thread:$0]  %s15, 1024, %s224, [#allocation28], 128, 128, 8
    $region65: #{forward.1} parent=1 // pred_fallthru
      _
    // Predicated region
    $region66: #{forward.1} parent=1 // pred_check
      _
    $region67: #{forward.1} parent=1 // pred_check_branch
      %231 = sbr.rel (0) target = $region69
    $region68: #{forward.1} parent=1 // pred_region
      %s233 = ssub.s32 1024, 1024
      %234 = vsyncadd [#allocation28], %s233
      %s235 = sshll.u32 [#allocation29], 4
      %s236 = int_to_ptr.vmem [resolvable:$true] %s235
      %241 = dma.hbm_to_vmem [thread:$0]  %s16, 1024, %s236, [#allocation28], 128, 128, 8
    $region69: #{forward.1} parent=1 // pred_fallthru
      _
    // Predicated region
    $region70: #{forward.1} parent=1 // pred_check
      _
    $region71: #{forward.1} parent=1 // pred_check_branch
      %243 = sbr.rel (0) target = $region73
    $region72: #{forward.1} parent=1 // pred_region
      %s245 = ssub.s32 32, 32
      %246 = vsyncadd [#allocation31], %s245
      %s247 = sshll.u32 [#allocation30], 4
      %s248 = int_to_ptr.vmem [resolvable:$true] %s247
      %253 = dma.hbm_to_vmem [thread:$0]  %s17, 32, %s248, [#allocation31], 16, 16, 1
    $region73: #{forward.1} parent=1 // pred_fallthru
      _
    // Predicated region
    $region74: #{forward.1} parent=1 // pred_check
      _
    $region75: #{forward.1} parent=1 // pred_check_branch
      %255 = sbr.rel (0) target = $region77
    $region76: #{forward.1} parent=1 // pred_region
      %s257 = ssub.s32 1024, 1024
      %258 = vsyncadd [#allocation31], %s257
      %s259 = sshll.u32 [#allocation32], 4
      %s260 = int_to_ptr.vmem [resolvable:$true] %s259
      %265 = dma.hbm_to_vmem [thread:$0]  %s18, 1024, %s260, [#allocation31], 128, 128, 8
    $region77: #{forward.1} parent=1 // pred_fallthru
      _
    // Predicated region
    $region78: #{forward.1} parent=1 // pred_check
      _
    $region79: #{forward.1} parent=1 // pred_check_branch
      %267 = sbr.rel (0) target = $region81
    $region80: #{forward.1} parent=1 // pred_region
      %s269 = ssub.s32 32, 32
      %270 = vsyncadd [#allocation34], %s269
      %s271 = sshll.u32 [#allocation33], 4
      %s272 = int_to_ptr.vmem [resolvable:$true] %s271
      %277 = dma.hbm_to_vmem [thread:$0]  %s19, 32, %s272, [#allocation34], 16, 16, 1
    $region81: #{forward.1} parent=1 // pred_fallthru
      _
    // Predicated region
    $region82: #{forward.1} parent=1 // pred_check
      _
    $region83: #{forward.1} parent=1 // pred_check_branch
      %279 = sbr.rel (0) target = $region85
    $region84: #{forward.1} parent=1 // pred_region
      %s281 = ssub.s32 1024, 1024
      %282 = vsyncadd [#allocation34], %s281
      %s283 = sshll.u32 [#allocation35], 4
      %s284 = int_to_ptr.vmem [resolvable:$true] %s283
      %289 = dma.hbm_to_vmem [thread:$0]  %s20, 1024, %s284, [#allocation34], 128, 128, 8
    $region85: #{forward.1} parent=1 // pred_fallthru
      _
    // Predicated region
    $region86: #{forward.1} parent=1 // pred_check
      _
    $region87: #{forward.1} parent=1 // pred_check_branch
      %291 = sbr.rel (0) target = $region89
    $region88: #{forward.1} parent=1 // pred_region
      %s293 = ssub.s32 32, 32
      %294 = vsyncadd [#allocation37], %s293
      %s295 = sshll.u32 [#allocation36], 4
      %s296 = int_to_ptr.vmem [resolvable:$true] %s295
      %301 = dma.hbm_to_vmem [thread:$0]  %s21, 32, %s296, [#allocation37], 16, 16, 1
    $region89: #{forward.1} parent=1 // pred_fallthru
      _
    // Predicated region
    $region90: #{forward.1} parent=1 // pred_check
      _
    $region91: #{forward.1} parent=1 // pred_check_branch
      %303 = sbr.rel (0) target = $region93
    $region92: #{forward.1} parent=1 // pred_region
      %s305 = ssub.s32 512, 512
      %306 = vsyncadd [#allocation37], %s305
      %s307 = sshll.u32 [#allocation38], 4
      %s308 = int_to_ptr.vmem [resolvable:$true] %s307
      %313 = dma.hbm_to_vmem [thread:$0]  %s22, 512, %s308, [#allocation37], 128, 128, 8
    $region93: #{forward.1} parent=1 // pred_fallthru
      _
    // Predicated region
    $region94: #{forward.1} parent=1 // pred_check
      _
    $region95: #{forward.1} parent=1 // pred_check_branch
      %315 = sbr.rel (0) target = $region97
    $region96: #{forward.1} parent=1 // pred_region
      %s317 = ssub.s32 512, 512
      %318 = vsyncadd [#allocation40], %s317
      %s319 = sshll.u32 [#allocation39], 4
      %s320 = int_to_ptr.vmem [resolvable:$true] %s319
      %325 = dma.hbm_to_vmem [thread:$0]  %s23, 512, %s320, [#allocation40], 128, 128, 8
    $region97: #{forward.1} parent=1 // pred_fallthru
      _
    // Predicated region
    $region98: #{forward.1} parent=1 // pred_check
      _
    $region99: #{forward.1} parent=1 // pred_check_branch
      %327 = sbr.rel (0) target = $region101
    $region100: #{forward.1} parent=1 // pred_region
      %s329 = ssub.s32 512, 512
      %330 = vsyncadd [#allocation40], %s329
      %s331 = sshll.u32 [#allocation41], 4
      %s332 = int_to_ptr.vmem [resolvable:$true] %s331
      %337 = dma.hbm_to_vmem [thread:$0]  %s24, 512, %s332, [#allocation40], 128, 128, 8
    $region101: #{forward.1} parent=1 // pred_fallthru
      _
    // Predicated region
    $region102: #{forward.1} parent=1 // pred_check
      _
    $region103: #{forward.1} parent=1 // pred_check_branch
      %339 = sbr.rel (0) target = $region105
    $region104: #{forward.1} parent=1 // pred_region
      %s341 = ssub.s32 16, 16
      %342 = vsyncadd [#allocation43], %s341
      %s344 = sshll.u32 [#allocation42], 4
      %s345 = int_to_ptr.vmem [resolvable:$true] %s344
      %347 = dma.hbm_to_vmem [thread:$0]  %s25, 16, %s345, [#allocation43]
    $region105: #{forward.1} parent=1 // pred_fallthru
      _
    // Predicated region
    $region106: #{forward.1} parent=1 // pred_check
      _
    $region107: #{forward.1} parent=1 // pred_check_branch
      %349 = sbr.rel (0) target = $region109
    $region108: #{forward.1} parent=1 // pred_region
      %s351 = ssub.s32 16, 16
      %352 = vsyncadd [#allocation43], %s351
      %s354 = sshll.u32 [#allocation44], 4
      %s355 = int_to_ptr.vmem [resolvable:$true] %s354
      %357 = dma.hbm_to_vmem [thread:$0]  %s26, 16, %s355, [#allocation43]
    $region109: #{forward.1} parent=1 // pred_fallthru
      _
    // Predicated region
    $region110: #{forward.1} parent=1 // pred_check
      _
    $region111: #{forward.1} parent=1 // pred_check_branch
      %359 = sbr.rel (0) target = $region113
    $region112: #{forward.1} parent=1 // pred_region
      _
    $region113: #{forward.1} parent=1 // pred_fallthru
      _
    // Predicated region
    $region114: #{forward.1} parent=1 // pred_check
      _
    $region115: #{forward.1} parent=1 // pred_check_branch
      %361 = sbr.rel (0) target = $region117
    $region116: #{forward.1} parent=1 // pred_region
      %362 = dma.done [#allocation4], 256
    $region117: #{forward.1} parent=1 // pred_fallthru
      _
    // Predicated region
    $region118: #{forward.1} parent=1 // pred_check
      _
    $region119: #{forward.1} parent=1 // pred_check_branch
      %364 = sbr.rel (0) target = $region121
    $region120: #{forward.1} parent=1 // pred_region
      %365 = dma.done [#allocation7], 512
    $region121: #{forward.1} parent=1 // pred_fallthru
      _
    // Predicated region
    $region122: #{forward.1} parent=1 // pred_check
      _
    $region123: #{forward.1} parent=1 // pred_check_branch
      %367 = sbr.rel (0) target = $region125
    $region124: #{forward.1} parent=1 // pred_region
      %368 = dma.done [#allocation7], 512
    $region125: #{forward.1} parent=1 // pred_fallthru
      _
    // Predicated region
    $region126: #{forward.1} parent=1 // pred_check
      _
    $region127: #{forward.1} parent=1 // pred_check_branch
      %370 = sbr.rel (0) target = $region129
    $region128: #{forward.1} parent=1 // pred_region
      %371 = dma.done [#allocation10], 512
    $region129: #{forward.1} parent=1 // pred_fallthru
      _
    // Predicated region
    $region130: #{forward.1} parent=1 // pred_check
      _
    $region131: #{forward.1} parent=1 // pred_check_branch
      %373 = sbr.rel (0) target = $region133
    $region132: #{forward.1} parent=1 // pred_region
      %374 = dma.done [#allocation10], 128
    $region133: #{forward.1} parent=1 // pred_fallthru
      _
    // Predicated region
    $region134: #{forward.1} parent=1 // pred_check
      _
    $region135: #{forward.1} parent=1 // pred_check_branch
      %376 = sbr.rel (0) target = $region137
    $region136: #{forward.1} parent=1 // pred_region
      %377 = dma.done [#allocation13], 16
    $region137: #{forward.1} parent=1 // pred_fallthru
      _
    // Predicated region
    $region138: #{forward.1} parent=1 // pred_check
      _
    $region139: #{forward.1} parent=1 // pred_check_branch
      %379 = sbr.rel (0) target = $region141
    $region140: #{forward.1} parent=1 // pred_region
      %380 = dma.done [#allocation13], 256
    $region141: #{forward.1} parent=1 // pred_fallthru
      _
    // Predicated region
    $region142: #{forward.1} parent=1 // pred_check
      _
    $region143: #{forward.1} parent=1 // pred_check_branch
      %382 = sbr.rel (0) target = $region145
    $region144: #{forward.1} parent=1 // pred_region
      %383 = dma.done [#allocation16], 16
    $region145: #{forward.1} parent=1 // pred_fallthru
      _
    // Predicated region
    $region146: #{forward.1} parent=1 // pred_check
      _
    $region147: #{forward.1} parent=1 // pred_check_branch
      %385 = sbr.rel (0) target = $region149
    $region148: #{forward.1} parent=1 // pred_region
      %386 = dma.done [#allocation16], 64
    $region149: #{forward.1} parent=1 // pred_fallthru
      _
    // Predicated region
    $region150: #{forward.1} parent=1 // pred_check
      _
    $region151: #{forward.1} parent=1 // pred_check_branch
      %388 = sbr.rel (0) target = $region153
    $region152: #{forward.1} parent=1 // pred_region
      %389 = dma.done [#allocation19], 16
    $region153: #{forward.1} parent=1 // pred_fallthru
      _
    // Predicated region
    $region154: #{forward.1} parent=1 // pred_check
      _
    $region155: #{forward.1} parent=1 // pred_check_branch
      %391 = sbr.rel (0) target = $region157
    $region156: #{forward.1} parent=1 // pred_region
      %392 = dma.done [#allocation19], 256
    $region157: #{forward.1} parent=1 // pred_fallthru
      _
    // Predicated region
    $region158: #{forward.1} parent=1 // pred_check
      _
    $region159: #{forward.1} parent=1 // pred_check_branch
      %394 = sbr.rel (0) target = $region161
    $region160: #{forward.1} parent=1 // pred_region
      %395 = dma.done [#allocation22], 16
    $region161: #{forward.1} parent=1 // pred_fallthru
      _
    // Predicated region
    $region162: #{forward.1} parent=1 // pred_check
      _
    $region163: #{forward.1} parent=1 // pred_check_branch
      %397 = sbr.rel (0) target = $region165
    $region164: #{forward.1} parent=1 // pred_region
      %398 = dma.done [#allocation22], 1024
    $region165: #{forward.1} parent=1 // pred_fallthru
      _
    // Predicated region
    $region166: #{forward.1} parent=1 // pred_check
      _
    $region167: #{forward.1} parent=1 // pred_check_branch
      %400 = sbr.rel (0) target = $region169
    $region168: #{forward.1} parent=1 // pred_region
      %401 = dma.done [#allocation25], 1024
    $region169: #{forward.1} parent=1 // pred_fallthru
      _
    // Predicated region
    $region170: #{forward.1} parent=1 // pred_check
      _
    $region171: #{forward.1} parent=1 // pred_check_branch
      %403 = sbr.rel (0) target = $region173
    $region172: #{forward.1} parent=1 // pred_region
      %404 = dma.done [#allocation25], 1024
    $region173: #{forward.1} parent=1 // pred_fallthru
      _
    // Predicated region
    $region174: #{forward.1} parent=1 // pred_check
      _
    $region175: #{forward.1} parent=1 // pred_check_branch
      %406 = sbr.rel (0) target = $region177
    $region176: #{forward.1} parent=1 // pred_region
      %407 = dma.done [#allocation28], 1024
    $region177: #{forward.1} parent=1 // pred_fallthru
      _
    // Predicated region
    $region178: #{forward.1} parent=1 // pred_check
      _
    $region179: #{forward.1} parent=1 // pred_check_branch
      %409 = sbr.rel (0) target = $region181
    $region180: #{forward.1} parent=1 // pred_region
      %410 = dma.done [#allocation28], 1024
    $region181: #{forward.1} parent=1 // pred_fallthru
      _
    // Predicated region
    $region182: #{forward.1} parent=1 // pred_check
      _
    $region183: #{forward.1} parent=1 // pred_check_branch
      %412 = sbr.rel (0) target = $region185
    $region184: #{forward.1} parent=1 // pred_region
      %413 = dma.done [#allocation31], 32
    $region185: #{forward.1} parent=1 // pred_fallthru
      _
    // Predicated region
    $region186: #{forward.1} parent=1 // pred_check
      _
    $region187: #{forward.1} parent=1 // pred_check_branch
      %415 = sbr.rel (0) target = $region189
    $region188: #{forward.1} parent=1 // pred_region
      %416 = dma.done [#allocation31], 1024
    $region189: #{forward.1} parent=1 // pred_fallthru
      _
    // Predicated region
    $region190: #{forward.1} parent=1 // pred_check
      _
    $region191: #{forward.1} parent=1 // pred_check_branch
      %418 = sbr.rel (0) target = $region193
    $region192: #{forward.1} parent=1 // pred_region
      %419 = dma.done [#allocation34], 32
    $region193: #{forward.1} parent=1 // pred_fallthru
      _
    // Predicated region
    $region194: #{forward.1} parent=1 // pred_check
      _
    $region195: #{forward.1} parent=1 // pred_check_branch
      %421 = sbr.rel (0) target = $region197
    $region196: #{forward.1} parent=1 // pred_region
      %422 = dma.done [#allocation34], 1024
    $region197: #{forward.1} parent=1 // pred_fallthru
      _
    // Predicated region
    $region198: #{forward.1} parent=1 // pred_check
      _
    $region199: #{forward.1} parent=1 // pred_check_branch
      %424 = sbr.rel (0) target = $region201
    $region200: #{forward.1} parent=1 // pred_region
      %425 = dma.done [#allocation37], 32
    $region201: #{forward.1} parent=1 // pred_fallthru
      _
    // Predicated region
    $region202: #{forward.1} parent=1 // pred_check
      _
    $region203: #{forward.1} parent=1 // pred_check_branch
      %427 = sbr.rel (0) target = $region205
    $region204: #{forward.1} parent=1 // pred_region
      %428 = dma.done [#allocation37], 512
    $region205: #{forward.1} parent=1 // pred_fallthru
      _
    // Predicated region
    $region206: #{forward.1} parent=1 // pred_check
      _
    $region207: #{forward.1} parent=1 // pred_check_branch
      %430 = sbr.rel (0) target = $region209
    $region208: #{forward.1} parent=1 // pred_region
      %431 = dma.done [#allocation40], 512
    $region209: #{forward.1} parent=1 // pred_fallthru
      _
    // Predicated region
    $region210: #{forward.1} parent=1 // pred_check
      _
    $region211: #{forward.1} parent=1 // pred_check_branch
      %433 = sbr.rel (0) target = $region213
    $region212: #{forward.1} parent=1 // pred_region
      %434 = dma.done [#allocation40], 512
    $region213: #{forward.1} parent=1 // pred_fallthru
      _
    // Predicated region
    $region214: #{forward.1} parent=1 // pred_check
      _
    $region215: #{forward.1} parent=1 // pred_check_branch
      %436 = sbr.rel (0) target = $region217
    $region216: #{forward.1} parent=1 // pred_region
      %437 = dma.done [#allocation43], 16
    $region217: #{forward.1} parent=1 // pred_fallthru
      _
    // Predicated region
    $region218: #{forward.1} parent=1 // pred_check
      _
    $region219: #{forward.1} parent=1 // pred_check_branch
      %439 = sbr.rel (0) target = $region221
    $region220: #{forward.1} parent=1 // pred_region
      %440 = dma.done [#allocation43], 16
    $region221: #{forward.1} parent=1 // pred_fallthru
      _
    %v441 = vld [vmem:[#allocation3] sm:$0xff]
    %v442 = vld [vmem:[#allocation3 + $0x8] sm:$0xff]
    %v443 = vld [vmem:[#allocation11] sm:$0xff]
    %v444 = vld [vmem:[#allocation12] sm:$0x1]
    %v446 = vlaneseq
    %v447 = vshrl.u32 %v446, 7
    %v448 = vsub.s32 0, %v447
    %v449 = vrot.slane %v444, %v448
    %vm451 = vcmask 64512
    %v453 = vsel %vm451, %v441, 0
    %v456 = vsel %vm451, %v442, 0
    %458 = vmatprep.subr.mxu0 0.0
    %459 = vmatpush1.msra.mxu0 %v443
    %460 = vmatprep.subr.mxu0 0.0
    %461 = vmatpush1.msra.mxu0 0.0
    %462 = vmatprep.subr.mxu0 0.0
    %463 = vmatpush1.msra.mxu0 0.0
    %464 = vmatprep.subr.mxu0 0.0
    %465 = vmatpush1.msra.mxu0 0.0
    %466 = vmatprep.subr.mxu0 0.0
    %467 = vmatpush1.msra.mxu0 0.0
    %468 = vmatprep.subr.mxu0 0.0
    %469 = vmatpush1.msra.mxu0 0.0
    %470 = vmatprep.subr.mxu0 0.0
    %471 = vmatpush1.msra.mxu0 0.0
    %472 = vmatprep.subr.mxu0 0.0
    %473 = vmatpush1.msra.mxu0 0.0
    %474 = vmatprep.subr.mxu0 0.0
    %475 = vmatpush1.msra.mxu0 0.0
    %476 = vmatprep.subr.mxu0 0.0
    %477 = vmatpush1.msra.mxu0 0.0
    %478 = vmatprep.subr.mxu0 0.0
    %479 = vmatpush1.msra.mxu0 0.0
    %480 = vmatprep.subr.mxu0 0.0
    %481 = vmatpush1.msra.mxu0 0.0
    %482 = vmatprep.subr.mxu0 0.0
    %483 = vmatpush1.msra.mxu0 0.0
    %484 = vmatprep.subr.mxu0 0.0
    %485 = vmatpush1.msra.mxu0 0.0
    %486 = vmatprep.subr.mxu0 0.0
    %487 = vmatpush1.msra.mxu0 0.0
    %488 = vmatprep.subr.mxu0 0.0
    %489 = vmatpush1.msra.mxu0 0.0
    %490 = vmatprep.subr.mxu0 0.0
    %491 = vmatpush1.msra.mxu0 0.0
    %492 = vmatprep.subr.mxu0 0.0
    %493 = vmatpush1.msra.mxu0 0.0
    %494 = vmatprep.subr.mxu0 0.0
    %495 = vmatpush1.msra.mxu0 0.0
    %496 = vmatprep.subr.mxu0 0.0
    %497 = vmatpush1.msra.mxu0 0.0
    %498 = vmatprep.subr.mxu0 0.0
    %499 = vmatpush1.msra.mxu0 0.0
    %500 = vmatprep.subr.mxu0 0.0
    %501 = vmatpush1.msra.mxu0 0.0
    %502 = vmatprep.subr.mxu0 0.0
    %503 = vmatpush1.msra.mxu0 0.0
    %504 = vmatprep.subr.mxu0 0.0
    %505 = vmatpush1.msra.mxu0 0.0
    %506 = vmatprep.subr.mxu0 0.0
    %507 = vmatpush1.msra.mxu0 0.0
    %508 = vmatprep.subr.mxu0 0.0
    %509 = vmatpush1.msra.mxu0 0.0
    %510 = vmatprep.subr.mxu0 0.0
    %511 = vmatpush1.msra.mxu0 0.0
    %512 = vmatprep.subr.mxu0 0.0
    %513 = vmatpush1.msra.mxu0 0.0
    %514 = vmatprep.subr.mxu0 0.0
    %515 = vmatpush1.msra.mxu0 0.0
    %516 = vmatprep.subr.mxu0 0.0
    %517 = vmatpush1.msra.mxu0 0.0
    %518 = vmatprep.subr.mxu0 0.0
    %519 = vmatpush1.msra.mxu0 0.0
    %520 = vmatprep.subr.mxu0 0.0
    %521 = vmatpush1.msra.mxu0 0.0
    %522 = vmatprep.mubr.f32.mxu0 0.0
    %523 = vmatmul.mubr.f32.gmra.mrb[0].mxu0 %v453
    %v524 = vpop.f32.mrb[0].mxu0
    %v525 = vadd.f32 %v449, %v524
    %v526 = vpop.f32.mrb[0].mxu0
    %527 = vmatprep.mubr.f32.mxu0 0.0
    %528 = vmatmul.mubr.f32.gmra.mrb[0].mxu0 %v456
    %v529 = vpop.f32.mrb[0].mxu0
    %v530 = vadd.f32 %v449, %v529
    %v531 = vpop.f32.mrb[0].mxu0
    %532 = vdwg.mxu0
    %v533 = vmax.f32 %v525, 0.0
    %v534 = vmax.f32 %v530, 0.0
    %v535 = vld [vmem:[#allocation14] sm:$0xff]
    %v536 = vld [vmem:[#allocation14 + $0x8] sm:$0xff]
    %v537 = vld [vmem:[#allocation15] sm:$0x1]
    %v539 = vlaneseq
    %v540 = vshrl.u32 %v539, 7
    %v541 = vsub.s32 0, %v540
    %v542 = vrot.slane %v537, %v541
    %vm544 = vcmask 130048
    %v546 = vsel %vm544, %v533, 0
    %v549 = vsel %vm544, %v534, 0
    %551 = vmatprep.subr.mxu0 0.0
    %552 = vmatpush1.msra.mxu0 %v535
    %553 = vmatprep.subr.mxu0 0.0
    %554 = vmatpush1.msra.mxu0 %v536
    %555 = vmatprep.subr.mxu0 0.0
    %556 = vmatpush1.msra.mxu0 0.0
    %557 = vmatprep.subr.mxu0 0.0
    %558 = vmatpush1.msra.mxu0 0.0
    %559 = vmatprep.subr.mxu0 0.0
    %560 = vmatpush1.msra.mxu0 0.0
    %561 = vmatprep.subr.mxu0 0.0
    %562 = vmatpush1.msra.mxu0 0.0
    %563 = vmatprep.subr.mxu0 0.0
    %564 = vmatpush1.msra.mxu0 0.0
    %565 = vmatprep.subr.mxu0 0.0
    %566 = vmatpush1.msra.mxu0 0.0
    %567 = vmatprep.subr.mxu0 0.0
    %568 = vmatpush1.msra.mxu0 0.0
    %569 = vmatprep.subr.mxu0 0.0
    %570 = vmatpush1.msra.mxu0 0.0
    %571 = vmatprep.subr.mxu0 0.0
    %572 = vmatpush1.msra.mxu0 0.0
    %573 = vmatprep.subr.mxu0 0.0
    %574 = vmatpush1.msra.mxu0 0.0
    %575 = vmatprep.subr.mxu0 0.0
    %576 = vmatpush1.msra.mxu0 0.0
    %577 = vmatprep.subr.mxu0 0.0
    %578 = vmatpush1.msra.mxu0 0.0
    %579 = vmatprep.subr.mxu0 0.0
    %580 = vmatpush1.msra.mxu0 0.0
    %581 = vmatprep.subr.mxu0 0.0
    %582 = vmatpush1.msra.mxu0 0.0
    %583 = vmatprep.subr.mxu0 0.0
    %584 = vmatpush1.msra.mxu0 0.0
    %585 = vmatprep.subr.mxu0 0.0
    %586 = vmatpush1.msra.mxu0 0.0
    %587 = vmatprep.subr.mxu0 0.0
    %588 = vmatpush1.msra.mxu0 0.0
    %589 = vmatprep.subr.mxu0 0.0
    %590 = vmatpush1.msra.mxu0 0.0
    %591 = vmatprep.subr.mxu0 0.0
    %592 = vmatpush1.msra.mxu0 0.0
    %593 = vmatprep.subr.mxu0 0.0
    %594 = vmatpush1.msra.mxu0 0.0
    %595 = vmatprep.subr.mxu0 0.0
    %596 = vmatpush1.msra.mxu0 0.0
    %597 = vmatprep.subr.mxu0 0.0
    %598 = vmatpush1.msra.mxu0 0.0
    %599 = vmatprep.subr.mxu0 0.0
    %600 = vmatpush1.msra.mxu0 0.0
    %601 = vmatprep.subr.mxu0 0.0
    %602 = vmatpush1.msra.mxu0 0.0
    %603 = vmatprep.subr.mxu0 0.0
    %604 = vmatpush1.msra.mxu0 0.0
    %605 = vmatprep.subr.mxu0 0.0
    %606 = vmatpush1.msra.mxu0 0.0
    %607 = vmatprep.subr.mxu0 0.0
    %608 = vmatpush1.msra.mxu0 0.0
    %609 = vmatprep.subr.mxu0 0.0
    %610 = vmatpush1.msra.mxu0 0.0
    %611 = vmatprep.subr.mxu0 0.0
    %612 = vmatpush1.msra.mxu0 0.0
    %613 = vmatprep.subr.mxu0 0.0
    %614 = vmatpush1.msra.mxu0 0.0
    %615 = vmatprep.mubr.f32.mxu0 0.0
    %616 = vmatmul.mubr.f32.gmra.mrb[0].mxu0 %v546
    %v617 = vpop.f32.mrb[0].mxu0
    %v618 = vadd.f32 %v542, %v617
    %v619 = vpop.f32.mrb[0].mxu0
    %620 = vmatprep.mubr.f32.mxu0 0.0
    %621 = vmatmul.mubr.f32.gmra.mrb[0].mxu0 %v549
    %v622 = vpop.f32.mrb[0].mxu0
    %v623 = vadd.f32 %v542, %v622
    %v624 = vpop.f32.mrb[0].mxu0
    %625 = vdwg.mxu0
    %v626 = vld [vmem:[#allocation6] sm:$0xff]
    %v627 = vld [vmem:[#allocation6 + $0x8] sm:$0xff]
    %v628 = vld [vmem:[#allocation6 + $0x10] sm:$0xff]
    %v629 = vld [vmem:[#allocation6 + $0x18] sm:$0xff]
    %v630 = vld [vmem:[#allocation17] sm:$0xf]
    %v631 = vld [vmem:[#allocation18] sm:$0x1]
    %v633 = vlaneseq
    %v634 = vshrl.u32 %v633, 7
    %v635 = vsub.s32 0, %v634
    %v636 = vrot.slane %v631, %v635
    %vm638 = vcmask 31744
    %v640 = vsel %vm638, %v626, 0
    %v643 = vsel %vm638, %v627, 0
    %v646 = vsel %vm638, %v628, 0
    %v649 = vsel %vm638, %v629, 0
    %vm651 = vcmask 1043456
    %v653 = vsel %vm651, %v630, 0
    %655 = vmatprep.subr.mxu0 0.0
    %656 = vmatpush1.msra.mxu0 %v653
    %657 = vmatprep.subr.mxu0 0.0
    %658 = vmatpush1.msra.mxu0 0.0
    %659 = vmatprep.subr.mxu0 0.0
    %660 = vmatpush1.msra.mxu0 0.0
    %661 = vmatprep.subr.mxu0 0.0
    %662 = vmatpush1.msra.mxu0 0.0
    %663 = vmatprep.subr.mxu0 0.0
    %664 = vmatpush1.msra.mxu0 0.0
    %665 = vmatprep.subr.mxu0 0.0
    %666 = vmatpush1.msra.mxu0 0.0
    %667 = vmatprep.subr.mxu0 0.0
    %668 = vmatpush1.msra.mxu0 0.0
    %669 = vmatprep.subr.mxu0 0.0
    %670 = vmatpush1.msra.mxu0 0.0
    %671 = vmatprep.subr.mxu0 0.0
    %672 = vmatpush1.msra.mxu0 0.0
    %673 = vmatprep.subr.mxu0 0.0
    %674 = vmatpush1.msra.mxu0 0.0
    %675 = vmatprep.subr.mxu0 0.0
    %676 = vmatpush1.msra.mxu0 0.0
    %677 = vmatprep.subr.mxu0 0.0
    %678 = vmatpush1.msra.mxu0 0.0
    %679 = vmatprep.subr.mxu0 0.0
    %680 = vmatpush1.msra.mxu0 0.0
    %681 = vmatprep.subr.mxu0 0.0
    %682 = vmatpush1.msra.mxu0 0.0
    %683 = vmatprep.subr.mxu0 0.0
    %684 = vmatpush1.msra.mxu0 0.0
    %685 = vmatprep.subr.mxu0 0.0
    %686 = vmatpush1.msra.mxu0 0.0
    %687 = vmatprep.subr.mxu0 0.0
    %688 = vmatpush1.msra.mxu0 0.0
    %689 = vmatprep.subr.mxu0 0.0
    %690 = vmatpush1.msra.mxu0 0.0
    %691 = vmatprep.subr.mxu0 0.0
    %692 = vmatpush1.msra.mxu0 0.0
    %693 = vmatprep.subr.mxu0 0.0
    %694 = vmatpush1.msra.mxu0 0.0
    %695 = vmatprep.subr.mxu0 0.0
    %696 = vmatpush1.msra.mxu0 0.0
    %697 = vmatprep.subr.mxu0 0.0
    %698 = vmatpush1.msra.mxu0 0.0
    %699 = vmatprep.subr.mxu0 0.0
    %700 = vmatpush1.msra.mxu0 0.0
    %701 = vmatprep.subr.mxu0 0.0
    %702 = vmatpush1.msra.mxu0 0.0
    %703 = vmatprep.subr.mxu0 0.0
    %704 = vmatpush1.msra.mxu0 0.0
    %705 = vmatprep.subr.mxu0 0.0
    %706 = vmatpush1.msra.mxu0 0.0
    %707 = vmatprep.subr.mxu0 0.0
    %708 = vmatpush1.msra.mxu0 0.0
    %709 = vmatprep.subr.mxu0 0.0
    %710 = vmatpush1.msra.mxu0 0.0
    %711 = vmatprep.subr.mxu0 0.0
    %712 = vmatpush1.msra.mxu0 0.0
    %713 = vmatprep.subr.mxu0 0.0
    %714 = vmatpush1.msra.mxu0 0.0
    %715 = vmatprep.subr.mxu0 0.0
    %716 = vmatpush1.msra.mxu0 0.0
    %717 = vmatprep.subr.mxu0 0.0
    %718 = vmatpush1.msra.mxu0 0.0
    %719 = vmatprep.mubr.f32.mxu0 0.0
    %720 = vmatmul.mubr.f32.gmra.mrb[0].mxu0 %v640
    %v721 = vpop.f32.mrb[0].mxu0
    %v722 = vadd.f32 %v636, %v721
    %v723 = vpop.f32.mrb[0].mxu0
    %724 = vmatprep.mubr.f32.mxu0 0.0
    %725 = vmatmul.mubr.f32.gmra.mrb[0].mxu0 %v643
    %v726 = vpop.f32.mrb[0].mxu0
    %v727 = vadd.f32 %v636, %v726
    %v728 = vpop.f32.mrb[0].mxu0
    %729 = vmatprep.mubr.f32.mxu0 0.0
    %730 = vmatmul.mubr.f32.gmra.mrb[0].mxu0 %v646
    %v731 = vpop.f32.mrb[0].mxu0
    %v732 = vadd.f32 %v636, %v731
    %v733 = vpop.f32.mrb[0].mxu0
    %734 = vmatprep.mubr.f32.mxu0 0.0
    %735 = vmatmul.mubr.f32.gmra.mrb[0].mxu0 %v649
    %v736 = vpop.f32.mrb[0].mxu0
    %v737 = vadd.f32 %v636, %v736
    %v738 = vpop.f32.mrb[0].mxu0
    %739 = vdwg.mxu0
    %v740 = vmax.f32 %v722, 0.0
    %v741 = vmax.f32 %v727, 0.0
    %v742 = vmax.f32 %v732, 0.0
    %v743 = vmax.f32 %v737, 0.0
    %v744 = vld [vmem:[#allocation20] sm:$0xff]
    %v745 = vld [vmem:[#allocation20 + $0x8] sm:$0xff]
    %v746 = vld [vmem:[#allocation21] sm:$0x1]
    %v748 = vlaneseq
    %v749 = vshrl.u32 %v748, 7
    %v750 = vsub.s32 0, %v749
    %v751 = vrot.slane %v746, %v750
    %v754 = vsel %vm544, %v740, 0
    %v757 = vsel %vm544, %v741, 0
    %v760 = vsel %vm544, %v742, 0
    %v763 = vsel %vm544, %v743, 0
    %765 = vmatprep.subr.mxu0 0.0
    %766 = vmatpush1.msra.mxu0 %v744
    %767 = vmatprep.subr.mxu0 0.0
    %768 = vmatpush1.msra.mxu0 %v745
    %769 = vmatprep.subr.mxu0 0.0
    %770 = vmatpush1.msra.mxu0 0.0
    %771 = vmatprep.subr.mxu0 0.0
    %772 = vmatpush1.msra.mxu0 0.0
    %773 = vmatprep.subr.mxu0 0.0
    %774 = vmatpush1.msra.mxu0 0.0
    %775 = vmatprep.subr.mxu0 0.0
    %776 = vmatpush1.msra.mxu0 0.0
    %777 = vmatprep.subr.mxu0 0.0
    %778 = vmatpush1.msra.mxu0 0.0
    %779 = vmatprep.subr.mxu0 0.0
    %780 = vmatpush1.msra.mxu0 0.0
    %781 = vmatprep.subr.mxu0 0.0
    %782 = vmatpush1.msra.mxu0 0.0
    %783 = vmatprep.subr.mxu0 0.0
    %784 = vmatpush1.msra.mxu0 0.0
    %785 = vmatprep.subr.mxu0 0.0
    %786 = vmatpush1.msra.mxu0 0.0
    %787 = vmatprep.subr.mxu0 0.0
    %788 = vmatpush1.msra.mxu0 0.0
    %789 = vmatprep.subr.mxu0 0.0
    %790 = vmatpush1.msra.mxu0 0.0
    %791 = vmatprep.subr.mxu0 0.0
    %792 = vmatpush1.msra.mxu0 0.0
    %793 = vmatprep.subr.mxu0 0.0
    %794 = vmatpush1.msra.mxu0 0.0
    %795 = vmatprep.subr.mxu0 0.0
    %796 = vmatpush1.msra.mxu0 0.0
    %797 = vmatprep.subr.mxu0 0.0
    %798 = vmatpush1.msra.mxu0 0.0
    %799 = vmatprep.subr.mxu0 0.0
    %800 = vmatpush1.msra.mxu0 0.0
    %801 = vmatprep.subr.mxu0 0.0
    %802 = vmatpush1.msra.mxu0 0.0
    %803 = vmatprep.subr.mxu0 0.0
    %804 = vmatpush1.msra.mxu0 0.0
    %805 = vmatprep.subr.mxu0 0.0
    %806 = vmatpush1.msra.mxu0 0.0
    %807 = vmatprep.subr.mxu0 0.0
    %808 = vmatpush1.msra.mxu0 0.0
    %809 = vmatprep.subr.mxu0 0.0
    %810 = vmatpush1.msra.mxu0 0.0
    %811 = vmatprep.subr.mxu0 0.0
    %812 = vmatpush1.msra.mxu0 0.0
    %813 = vmatprep.subr.mxu0 0.0
    %814 = vmatpush1.msra.mxu0 0.0
    %815 = vmatprep.subr.mxu0 0.0
    %816 = vmatpush1.msra.mxu0 0.0
    %817 = vmatprep.subr.mxu0 0.0
    %818 = vmatpush1.msra.mxu0 0.0
    %819 = vmatprep.subr.mxu0 0.0
    %820 = vmatpush1.msra.mxu0 0.0
    %821 = vmatprep.subr.mxu0 0.0
    %822 = vmatpush1.msra.mxu0 0.0
    %823 = vmatprep.subr.mxu0 0.0
    %824 = vmatpush1.msra.mxu0 0.0
    %825 = vmatprep.subr.mxu0 0.0
    %826 = vmatpush1.msra.mxu0 0.0
    %827 = vmatprep.subr.mxu0 0.0
    %828 = vmatpush1.msra.mxu0 0.0
    %829 = vmatprep.mubr.f32.mxu0 0.0
    %830 = vmatmul.mubr.f32.gmra.mrb[0].mxu0 %v754
    %v831 = vpop.f32.mrb[0].mxu0
    %v832 = vadd.f32 %v751, %v831
    %v833 = vpop.f32.mrb[0].mxu0
    %834 = vmatprep.mubr.f32.mxu0 0.0
    %835 = vmatmul.mubr.f32.gmra.mrb[0].mxu0 %v757
    %v836 = vpop.f32.mrb[0].mxu0
    %v837 = vadd.f32 %v751, %v836
    %v838 = vpop.f32.mrb[0].mxu0
    %839 = vmatprep.mubr.f32.mxu0 0.0
    %840 = vmatmul.mubr.f32.gmra.mrb[0].mxu0 %v760
    %v841 = vpop.f32.mrb[0].mxu0
    %v842 = vadd.f32 %v751, %v841
    %v843 = vpop.f32.mrb[0].mxu0
    %844 = vmatprep.mubr.f32.mxu0 0.0
    %845 = vmatmul.mubr.f32.gmra.mrb[0].mxu0 %v763
    %v846 = vpop.f32.mrb[0].mxu0
    %v847 = vadd.f32 %v751, %v846
    %v848 = vpop.f32.mrb[0].mxu0
    %849 = vdwg.mxu0
    %v850 = vld [vmem:[#allocation23] sm:$0xff]
    %v851 = vld [vmem:[#allocation23 + $0x8] sm:$0xff]
    %v852 = vld [vmem:[#allocation23 + $0x10] sm:$0xff]
    %v853 = vld [vmem:[#allocation23 + $0x18] sm:$0xff]
    %vm854 = vcmask 261120
    %v856 = vsel %vm854, %v618, 0
    %v859 = vsel %vm854, %v623, 0
    %861 = vmatprep.subr.mxu0 0.0
    %862 = vmatpush1.msra.mxu0 %v850
    %863 = vmatprep.subr.mxu0 0.0
    %864 = vmatpush1.msra.mxu0 %v851
    %865 = vmatprep.subr.mxu0 0.0
    %866 = vmatpush1.msra.mxu0 %v852
    %867 = vmatprep.subr.mxu0 0.0
    %868 = vmatpush1.msra.mxu0 %v853
    %869 = vmatprep.subr.mxu0 0.0
    %870 = vmatpush1.msra.mxu0 0.0
    %871 = vmatprep.subr.mxu0 0.0
    %872 = vmatpush1.msra.mxu0 0.0
    %873 = vmatprep.subr.mxu0 0.0
    %874 = vmatpush1.msra.mxu0 0.0
    %875 = vmatprep.subr.mxu0 0.0
    %876 = vmatpush1.msra.mxu0 0.0
    %877 = vmatprep.subr.mxu0 0.0
    %878 = vmatpush1.msra.mxu0 0.0
    %879 = vmatprep.subr.mxu0 0.0
    %880 = vmatpush1.msra.mxu0 0.0
    %881 = vmatprep.subr.mxu0 0.0
    %882 = vmatpush1.msra.mxu0 0.0
    %883 = vmatprep.subr.mxu0 0.0
    %884 = vmatpush1.msra.mxu0 0.0
    %885 = vmatprep.subr.mxu0 0.0
    %886 = vmatpush1.msra.mxu0 0.0
    %887 = vmatprep.subr.mxu0 0.0
    %888 = vmatpush1.msra.mxu0 0.0
    %889 = vmatprep.subr.mxu0 0.0
    %890 = vmatpush1.msra.mxu0 0.0
    %891 = vmatprep.subr.mxu0 0.0
    %892 = vmatpush1.msra.mxu0 0.0
    %893 = vmatprep.subr.mxu0 0.0
    %894 = vmatpush1.msra.mxu0 0.0
    %895 = vmatprep.subr.mxu0 0.0
    %896 = vmatpush1.msra.mxu0 0.0
    %897 = vmatprep.subr.mxu0 0.0
    %898 = vmatpush1.msra.mxu0 0.0
    %899 = vmatprep.subr.mxu0 0.0
    %900 = vmatpush1.msra.mxu0 0.0
    %901 = vmatprep.subr.mxu0 0.0
    %902 = vmatpush1.msra.mxu0 0.0
    %903 = vmatprep.subr.mxu0 0.0
    %904 = vmatpush1.msra.mxu0 0.0
    %905 = vmatprep.subr.mxu0 0.0
    %906 = vmatpush1.msra.mxu0 0.0
    %907 = vmatprep.subr.mxu0 0.0
    %908 = vmatpush1.msra.mxu0 0.0
    %909 = vmatprep.subr.mxu0 0.0
    %910 = vmatpush1.msra.mxu0 0.0
    %911 = vmatprep.subr.mxu0 0.0
    %912 = vmatpush1.msra.mxu0 0.0
    %913 = vmatprep.subr.mxu0 0.0
    %914 = vmatpush1.msra.mxu0 0.0
    %915 = vmatprep.subr.mxu0 0.0
    %916 = vmatpush1.msra.mxu0 0.0
    %917 = vmatprep.subr.mxu0 0.0
    %918 = vmatpush1.msra.mxu0 0.0
    %919 = vmatprep.subr.mxu0 0.0
    %920 = vmatpush1.msra.mxu0 0.0
    %921 = vmatprep.subr.mxu0 0.0
    %922 = vmatpush1.msra.mxu0 0.0
    %923 = vmatprep.subr.mxu0 0.0
    %924 = vmatpush1.msra.mxu0 0.0
    %925 = vmatprep.mubr.f32.mxu0 0.0
    %926 = vmatmul.mubr.f32.gmra.mrb[0].mxu0 %v856
    %v927 = vpop.f32.mrb[0].mxu0
    %v928 = vadd.f32 0.0, %v927
    %v929 = vpop.f32.mrb[0].mxu0
    %930 = vmatprep.mubr.f32.mxu0 0.0
    %931 = vmatmul.mubr.f32.gmra.mrb[0].mxu0 %v859
    %v932 = vpop.f32.mrb[0].mxu0
    %v933 = vadd.f32 0.0, %v932
    %v934 = vpop.f32.mrb[0].mxu0
    %935 = vdwg.mxu0
    %v936 = vld [vmem:[#allocation24] sm:$0xff]
    %v937 = vld [vmem:[#allocation24 + $0x8] sm:$0xff]
    %v938 = vld [vmem:[#allocation24 + $0x10] sm:$0xff]
    %v939 = vld [vmem:[#allocation24 + $0x18] sm:$0xff]
    %940 = vmatprep.subr.mxu0 0.0
    %941 = vmatpush1.msra.mxu0 %v936
    %942 = vmatprep.subr.mxu0 0.0
    %943 = vmatpush1.msra.mxu0 %v937
    %944 = vmatprep.subr.mxu0 0.0
    %945 = vmatpush1.msra.mxu0 %v938
    %946 = vmatprep.subr.mxu0 0.0
    %947 = vmatpush1.msra.mxu0 %v939
    %948 = vmatprep.subr.mxu0 0.0
    %949 = vmatpush1.msra.mxu0 0.0
    %950 = vmatprep.subr.mxu0 0.0
    %951 = vmatpush1.msra.mxu0 0.0
    %952 = vmatprep.subr.mxu0 0.0
    %953 = vmatpush1.msra.mxu0 0.0
    %954 = vmatprep.subr.mxu0 0.0
    %955 = vmatpush1.msra.mxu0 0.0
    %956 = vmatprep.subr.mxu0 0.0
    %957 = vmatpush1.msra.mxu0 0.0
    %958 = vmatprep.subr.mxu0 0.0
    %959 = vmatpush1.msra.mxu0 0.0
    %960 = vmatprep.subr.mxu0 0.0
    %961 = vmatpush1.msra.mxu0 0.0
    %962 = vmatprep.subr.mxu0 0.0
    %963 = vmatpush1.msra.mxu0 0.0
    %964 = vmatprep.subr.mxu0 0.0
    %965 = vmatpush1.msra.mxu0 0.0
    %966 = vmatprep.subr.mxu0 0.0
    %967 = vmatpush1.msra.mxu0 0.0
    %968 = vmatprep.subr.mxu0 0.0
    %969 = vmatpush1.msra.mxu0 0.0
    %970 = vmatprep.subr.mxu0 0.0
    %971 = vmatpush1.msra.mxu0 0.0
    %972 = vmatprep.subr.mxu0 0.0
    %973 = vmatpush1.msra.mxu0 0.0
    %974 = vmatprep.subr.mxu0 0.0
    %975 = vmatpush1.msra.mxu0 0.0
    %976 = vmatprep.subr.mxu0 0.0
    %977 = vmatpush1.msra.mxu0 0.0
    %978 = vmatprep.subr.mxu0 0.0
    %979 = vmatpush1.msra.mxu0 0.0
    %980 = vmatprep.subr.mxu0 0.0
    %981 = vmatpush1.msra.mxu0 0.0
    %982 = vmatprep.subr.mxu0 0.0
    %983 = vmatpush1.msra.mxu0 0.0
    %984 = vmatprep.subr.mxu0 0.0
    %985 = vmatpush1.msra.mxu0 0.0
    %986 = vmatprep.subr.mxu0 0.0
    %987 = vmatpush1.msra.mxu0 0.0
    %988 = vmatprep.subr.mxu0 0.0
    %989 = vmatpush1.msra.mxu0 0.0
    %990 = vmatprep.subr.mxu0 0.0
    %991 = vmatpush1.msra.mxu0 0.0
    %992 = vmatprep.subr.mxu0 0.0
    %993 = vmatpush1.msra.mxu0 0.0
    %994 = vmatprep.subr.mxu0 0.0
    %995 = vmatpush1.msra.mxu0 0.0
    %996 = vmatprep.subr.mxu0 0.0
    %997 = vmatpush1.msra.mxu0 0.0
    %998 = vmatprep.subr.mxu0 0.0
    %999 = vmatpush1.msra.mxu0 0.0
    %1000 = vmatprep.subr.mxu0 0.0
    %1001 = vmatpush1.msra.mxu0 0.0
    %1002 = vmatprep.subr.mxu0 0.0
    %1003 = vmatpush1.msra.mxu0 0.0
    %1004 = vmatprep.mubr.f32.mxu0 0.0
    %1005 = vmatmul.mubr.f32.gmra.mrb[0].mxu0 %v856
    %v1006 = vpop.f32.mrb[0].mxu0
    %v1007 = vadd.f32 0.0, %v1006
    %v1008 = vpop.f32.mrb[0].mxu0
    %1009 = vmatprep.mubr.f32.mxu0 0.0
    %1010 = vmatmul.mubr.f32.gmra.mrb[0].mxu0 %v859
    %v1011 = vpop.f32.mrb[0].mxu0
    %v1012 = vadd.f32 0.0, %v1011
    %v1013 = vpop.f32.mrb[0].mxu0
    %1014 = vdwg.mxu0
    %v1015 = vld [vmem:[#allocation26] sm:$0xff]
    %v1016 = vld [vmem:[#allocation26 + $0x8] sm:$0xff]
    %v1017 = vld [vmem:[#allocation26 + $0x10] sm:$0xff]
    %v1018 = vld [vmem:[#allocation26 + $0x18] sm:$0xff]
    %1019 = vmatprep.subr.mxu0 0.0
    %1020 = vmatpush1.msra.mxu0 %v1015
    %1021 = vmatprep.subr.mxu0 0.0
    %1022 = vmatpush1.msra.mxu0 %v1016
    %1023 = vmatprep.subr.mxu0 0.0
    %1024 = vmatpush1.msra.mxu0 %v1017
    %1025 = vmatprep.subr.mxu0 0.0
    %1026 = vmatpush1.msra.mxu0 %v1018
    %1027 = vmatprep.subr.mxu0 0.0
    %1028 = vmatpush1.msra.mxu0 0.0
    %1029 = vmatprep.subr.mxu0 0.0
    %1030 = vmatpush1.msra.mxu0 0.0
    %1031 = vmatprep.subr.mxu0 0.0
    %1032 = vmatpush1.msra.mxu0 0.0
    %1033 = vmatprep.subr.mxu0 0.0
    %1034 = vmatpush1.msra.mxu0 0.0
    %1035 = vmatprep.subr.mxu0 0.0
    %1036 = vmatpush1.msra.mxu0 0.0
    %1037 = vmatprep.subr.mxu0 0.0
    %1038 = vmatpush1.msra.mxu0 0.0
    %1039 = vmatprep.subr.mxu0 0.0
    %1040 = vmatpush1.msra.mxu0 0.0
    %1041 = vmatprep.subr.mxu0 0.0
    %1042 = vmatpush1.msra.mxu0 0.0
    %1043 = vmatprep.subr.mxu0 0.0
    %1044 = vmatpush1.msra.mxu0 0.0
    %1045 = vmatprep.subr.mxu0 0.0
    %1046 = vmatpush1.msra.mxu0 0.0
    %1047 = vmatprep.subr.mxu0 0.0
    %1048 = vmatpush1.msra.mxu0 0.0
    %1049 = vmatprep.subr.mxu0 0.0
    %1050 = vmatpush1.msra.mxu0 0.0
    %1051 = vmatprep.subr.mxu0 0.0
    %1052 = vmatpush1.msra.mxu0 0.0
    %1053 = vmatprep.subr.mxu0 0.0
    %1054 = vmatpush1.msra.mxu0 0.0
    %1055 = vmatprep.subr.mxu0 0.0
    %1056 = vmatpush1.msra.mxu0 0.0
    %1057 = vmatprep.subr.mxu0 0.0
    %1058 = vmatpush1.msra.mxu0 0.0
    %1059 = vmatprep.subr.mxu0 0.0
    %1060 = vmatpush1.msra.mxu0 0.0
    %1061 = vmatprep.subr.mxu0 0.0
    %1062 = vmatpush1.msra.mxu0 0.0
    %1063 = vmatprep.subr.mxu0 0.0
    %1064 = vmatpush1.msra.mxu0 0.0
    %1065 = vmatprep.subr.mxu0 0.0
    %1066 = vmatpush1.msra.mxu0 0.0
    %1067 = vmatprep.subr.mxu0 0.0
    %1068 = vmatpush1.msra.mxu0 0.0
    %1069 = vmatprep.subr.mxu0 0.0
    %1070 = vmatpush1.msra.mxu0 0.0
    %1071 = vmatprep.subr.mxu0 0.0
    %1072 = vmatpush1.msra.mxu0 0.0
    %1073 = vmatprep.subr.mxu0 0.0
    %1074 = vmatpush1.msra.mxu0 0.0
    %1075 = vmatprep.subr.mxu0 0.0
    %1076 = vmatpush1.msra.mxu0 0.0
    %1077 = vmatprep.subr.mxu0 0.0
    %1078 = vmatpush1.msra.mxu0 0.0
    %1079 = vmatprep.subr.mxu0 0.0
    %1080 = vmatpush1.msra.mxu0 0.0
    %1081 = vmatprep.subr.mxu0 0.0
    %1082 = vmatpush1.msra.mxu0 0.0
    %1083 = vmatprep.mubr.f32.mxu0 0.0
    %1084 = vmatmul.mubr.f32.gmra.mrb[0].mxu0 %v856
    %v1085 = vpop.f32.mrb[0].mxu0
    %v1086 = vadd.f32 0.0, %v1085
    %v1087 = vpop.f32.mrb[0].mxu0
    %1088 = vmatprep.mubr.f32.mxu0 0.0
    %1089 = vmatmul.mubr.f32.gmra.mrb[0].mxu0 %v859
    %v1090 = vpop.f32.mrb[0].mxu0
    %v1091 = vadd.f32 0.0, %v1090
    %v1092 = vpop.f32.mrb[0].mxu0
    %1093 = vdwg.mxu0
    %v1095 = vsel %vm854, %v928, 0
    %v1098 = vsel %vm854, %v933, 0
    %v1101 = vsel %vm854, %v1007, 0
    %v1104 = vsel %vm854, %v1012, 0
    %1106 = vmatprep.subr.mxu0 0.0
    %1107 = vmatpush1.xpose.msra.mxu0 %v1101
    %1108 = vmatprep.subr.mxu0 0.0
    %1109 = vmatpush1.xpose.msra.mxu0 %v1104
    %1110 = vmatprep.subr.mxu0 0.0
    %1111 = vmatpush1.xpose.msra.mxu0 0.0
    %1112 = vmatprep.subr.mxu0 0.0
    %1113 = vmatpush1.xpose.msra.mxu0 0.0
    %1114 = vmatprep.subr.mxu0 0.0
    %1115 = vmatpush1.xpose.msra.mxu0 0.0
    %1116 = vmatprep.subr.mxu0 0.0
    %1117 = vmatpush1.xpose.msra.mxu0 0.0
    %1118 = vmatprep.subr.mxu0 0.0
    %1119 = vmatpush1.xpose.msra.mxu0 0.0
    %1120 = vmatprep.subr.mxu0 0.0
    %1121 = vmatpush1.xpose.msra.mxu0 0.0
    %1122 = vmatprep.subr.mxu0 0.0
    %1123 = vmatpush1.xpose.msra.mxu0 0.0
    %1124 = vmatprep.subr.mxu0 0.0
    %1125 = vmatpush1.xpose.msra.mxu0 0.0
    %1126 = vmatprep.subr.mxu0 0.0
    %1127 = vmatpush1.xpose.msra.mxu0 0.0
    %1128 = vmatprep.subr.mxu0 0.0
    %1129 = vmatpush1.xpose.msra.mxu0 0.0
    %1130 = vmatprep.subr.mxu0 0.0
    %1131 = vmatpush1.xpose.msra.mxu0 0.0
    %1132 = vmatprep.subr.mxu0 0.0
    %1133 = vmatpush1.xpose.msra.mxu0 0.0
    %1134 = vmatprep.subr.mxu0 0.0
    %1135 = vmatpush1.xpose.msra.mxu0 0.0
    %1136 = vmatprep.subr.mxu0 0.0
    %1137 = vmatpush1.xpose.msra.mxu0 0.0
    %1138 = vmatprep.subr.mxu0 0.0
    %1139 = vmatpush1.xpose.msra.mxu0 0.0
    %1140 = vmatprep.subr.mxu0 0.0
    %1141 = vmatpush1.xpose.msra.mxu0 0.0
    %1142 = vmatprep.subr.mxu0 0.0
    %1143 = vmatpush1.xpose.msra.mxu0 0.0
    %1144 = vmatprep.subr.mxu0 0.0
    %1145 = vmatpush1.xpose.msra.mxu0 0.0
    %1146 = vmatprep.subr.mxu0 0.0
    %1147 = vmatpush1.xpose.msra.mxu0 0.0
    %1148 = vmatprep.subr.mxu0 0.0
    %1149 = vmatpush1.xpose.msra.mxu0 0.0
    %1150 = vmatprep.subr.mxu0 0.0
    %1151 = vmatpush1.xpose.msra.mxu0 0.0
    %1152 = vmatprep.subr.mxu0 0.0
    %1153 = vmatpush1.xpose.msra.mxu0 0.0
    %1154 = vmatprep.subr.mxu0 0.0
    %1155 = vmatpush1.xpose.msra.mxu0 0.0
    %1156 = vmatprep.subr.mxu0 0.0
    %1157 = vmatpush1.xpose.msra.mxu0 0.0
    %1158 = vmatprep.subr.mxu0 0.0
    %1159 = vmatpush1.xpose.msra.mxu0 0.0
    %1160 = vmatprep.subr.mxu0 0.0
    %1161 = vmatpush1.xpose.msra.mxu0 0.0
    %1162 = vmatprep.subr.mxu0 0.0
    %1163 = vmatpush1.xpose.msra.mxu0 0.0
    %1164 = vmatprep.subr.mxu0 0.0
    %1165 = vmatpush1.xpose.msra.mxu0 0.0
    %1166 = vmatprep.subr.mxu0 0.0
    %1167 = vmatpush1.xpose.msra.mxu0 0.0
    %1168 = vmatprep.subr.mxu0 0.0
    %1169 = vmatpush1.xpose.msra.mxu0 0.0
    %1170 = vmatprep.mubr.f32.mxu0 0.0
    %1171 = vmatmul.mubr.f32.gmra.mrb[0].mxu0 %v1095
    %v1172 = vpop.f32.mrb[0].mxu0
    %v1173 = vadd.f32 0.0, %v1172
    %v1174 = vpop.f32.mrb[0].mxu0
    %1175 = vmatprep.mubr.f32.mxu0 0.0
    %1176 = vmatmul.mubr.f32.gmra.mrb[0].mxu0 %v1098
    %v1177 = vpop.f32.mrb[0].mxu0
    %v1178 = vadd.f32 0.0, %v1177
    %v1179 = vpop.f32.mrb[0].mxu0
    %1180 = vdwg.mxu0
    %v1181 = vsel %vm544, %v1173, -inf
    %1182 = vmax.xlane.f32.xlu0 %v1181
    %v1183 = vpop.xlane.xlu0 %1182
    %v1184 = vsel %vm544, %v1178, -inf
    %1185 = vmax.xlane.f32.xlu0 %v1184
    %v1186 = vpop.xlane.xlu0 %1185
    %v1187 = vsub.f32 %v1173, %v1183
    %v1188 = vsub.f32 %v1178, %v1186
    %v1189 = vmul.f32 %v1187, 1.442695
    %v1190 = vpow.pop %v1189
    %v1191 = vmul.f32 %v1188, 1.442695
    %v1192 = vpow.pop %v1191
    %v1193 = vsel %vm544, %v1190, 0.0
    %1194 = vadd.xlane.f32.xlu0 %v1193
    %v1195 = vpop.xlane.xlu0 %1194
    %v1196 = vsel %vm544, %v1192, 0.0
    %1197 = vadd.xlane.f32.xlu0 %v1196
    %v1198 = vpop.xlane.xlu0 %1197
    %v1199 = vrcp.pop %v1195
    %v1200 = vrcp.pop %v1198
    %v1201 = vmul.f32 %v1190, %v1199
    %v1202 = vmul.f32 %v1192, %v1200
    %v1204 = vsel %vm544, %v1201, 0
    %v1207 = vsel %vm544, %v1202, 0
    %1209 = vmatprep.subr.mxu0 0.0
    %1210 = vmatpush1.msra.mxu0 %v1086
    %1211 = vmatprep.subr.mxu0 0.0
    %1212 = vmatpush1.msra.mxu0 %v1091
    %1213 = vmatprep.subr.mxu0 0.0
    %1214 = vmatpush1.msra.mxu0 0.0
    %1215 = vmatprep.subr.mxu0 0.0
    %1216 = vmatpush1.msra.mxu0 0.0
    %1217 = vmatprep.subr.mxu0 0.0
    %1218 = vmatpush1.msra.mxu0 0.0
    %1219 = vmatprep.subr.mxu0 0.0
    %1220 = vmatpush1.msra.mxu0 0.0
    %1221 = vmatprep.subr.mxu0 0.0
    %1222 = vmatpush1.msra.mxu0 0.0
    %1223 = vmatprep.subr.mxu0 0.0
    %1224 = vmatpush1.msra.mxu0 0.0
    %1225 = vmatprep.subr.mxu0 0.0
    %1226 = vmatpush1.msra.mxu0 0.0
    %1227 = vmatprep.subr.mxu0 0.0
    %1228 = vmatpush1.msra.mxu0 0.0
    %1229 = vmatprep.subr.mxu0 0.0
    %1230 = vmatpush1.msra.mxu0 0.0
    %1231 = vmatprep.subr.mxu0 0.0
    %1232 = vmatpush1.msra.mxu0 0.0
    %1233 = vmatprep.subr.mxu0 0.0
    %1234 = vmatpush1.msra.mxu0 0.0
    %1235 = vmatprep.subr.mxu0 0.0
    %1236 = vmatpush1.msra.mxu0 0.0
    %1237 = vmatprep.subr.mxu0 0.0
    %1238 = vmatpush1.msra.mxu0 0.0
    %1239 = vmatprep.subr.mxu0 0.0
    %1240 = vmatpush1.msra.mxu0 0.0
    %1241 = vmatprep.subr.mxu0 0.0
    %1242 = vmatpush1.msra.mxu0 0.0
    %1243 = vmatprep.subr.mxu0 0.0
    %1244 = vmatpush1.msra.mxu0 0.0
    %1245 = vmatprep.subr.mxu0 0.0
    %1246 = vmatpush1.msra.mxu0 0.0
    %1247 = vmatprep.subr.mxu0 0.0
    %1248 = vmatpush1.msra.mxu0 0.0
    %1249 = vmatprep.subr.mxu0 0.0
    %1250 = vmatpush1.msra.mxu0 0.0
    %1251 = vmatprep.subr.mxu0 0.0
    %1252 = vmatpush1.msra.mxu0 0.0
    %1253 = vmatprep.subr.mxu0 0.0
    %1254 = vmatpush1.msra.mxu0 0.0
    %1255 = vmatprep.subr.mxu0 0.0
    %1256 = vmatpush1.msra.mxu0 0.0
    %1257 = vmatprep.subr.mxu0 0.0
    %1258 = vmatpush1.msra.mxu0 0.0
    %1259 = vmatprep.subr.mxu0 0.0
    %1260 = vmatpush1.msra.mxu0 0.0
    %1261 = vmatprep.subr.mxu0 0.0
    %1262 = vmatpush1.msra.mxu0 0.0
    %1263 = vmatprep.subr.mxu0 0.0
    %1264 = vmatpush1.msra.mxu0 0.0
    %1265 = vmatprep.subr.mxu0 0.0
    %1266 = vmatpush1.msra.mxu0 0.0
    %1267 = vmatprep.subr.mxu0 0.0
    %1268 = vmatpush1.msra.mxu0 0.0
    %1269 = vmatprep.subr.mxu0 0.0
    %1270 = vmatpush1.msra.mxu0 0.0
    %1271 = vmatprep.subr.mxu0 0.0
    %1272 = vmatpush1.msra.mxu0 0.0
    %1273 = vmatprep.mubr.f32.mxu0 0.0
    %1274 = vmatmul.mubr.f32.gmra.mrb[0].mxu0 %v1204
    %v1275 = vpop.f32.mrb[0].mxu0
    %v1276 = vadd.f32 0.0, %v1275
    %v1277 = vpop.f32.mrb[0].mxu0
    %1278 = vmatprep.mubr.f32.mxu0 0.0
    %1279 = vmatmul.mubr.f32.gmra.mrb[0].mxu0 %v1207
    %v1280 = vpop.f32.mrb[0].mxu0
    %v1281 = vadd.f32 0.0, %v1280
    %v1282 = vpop.f32.mrb[0].mxu0
    %1283 = vdwg.mxu0
    %v1284 = vld [vmem:[#allocation27] sm:$0xff]
    %v1285 = vld [vmem:[#allocation27 + $0x8] sm:$0xff]
    %v1286 = vld [vmem:[#allocation27 + $0x10] sm:$0xff]
    %v1287 = vld [vmem:[#allocation27 + $0x18] sm:$0xff]
    %v1289 = vsel %vm854, %v1276, 0
    %v1292 = vsel %vm854, %v1281, 0
    %1294 = vmatprep.subr.mxu0 0.0
    %1295 = vmatpush1.msra.mxu0 %v1284
    %1296 = vmatprep.subr.mxu0 0.0
    %1297 = vmatpush1.msra.mxu0 %v1285
    %1298 = vmatprep.subr.mxu0 0.0
    %1299 = vmatpush1.msra.mxu0 %v1286
    %1300 = vmatprep.subr.mxu0 0.0
    %1301 = vmatpush1.msra.mxu0 %v1287
    %1302 = vmatprep.subr.mxu0 0.0
    %1303 = vmatpush1.msra.mxu0 0.0
    %1304 = vmatprep.subr.mxu0 0.0
    %1305 = vmatpush1.msra.mxu0 0.0
    %1306 = vmatprep.subr.mxu0 0.0
    %1307 = vmatpush1.msra.mxu0 0.0
    %1308 = vmatprep.subr.mxu0 0.0
    %1309 = vmatpush1.msra.mxu0 0.0
    %1310 = vmatprep.subr.mxu0 0.0
    %1311 = vmatpush1.msra.mxu0 0.0
    %1312 = vmatprep.subr.mxu0 0.0
    %1313 = vmatpush1.msra.mxu0 0.0
    %1314 = vmatprep.subr.mxu0 0.0
    %1315 = vmatpush1.msra.mxu0 0.0
    %1316 = vmatprep.subr.mxu0 0.0
    %1317 = vmatpush1.msra.mxu0 0.0
    %1318 = vmatprep.subr.mxu0 0.0
    %1319 = vmatpush1.msra.mxu0 0.0
    %1320 = vmatprep.subr.mxu0 0.0
    %1321 = vmatpush1.msra.mxu0 0.0
    %1322 = vmatprep.subr.mxu0 0.0
    %1323 = vmatpush1.msra.mxu0 0.0
    %1324 = vmatprep.subr.mxu0 0.0
    %1325 = vmatpush1.msra.mxu0 0.0
    %1326 = vmatprep.subr.mxu0 0.0
    %1327 = vmatpush1.msra.mxu0 0.0
    %1328 = vmatprep.subr.mxu0 0.0
    %1329 = vmatpush1.msra.mxu0 0.0
    %1330 = vmatprep.subr.mxu0 0.0
    %1331 = vmatpush1.msra.mxu0 0.0
    %1332 = vmatprep.subr.mxu0 0.0
    %1333 = vmatpush1.msra.mxu0 0.0
    %1334 = vmatprep.subr.mxu0 0.0
    %1335 = vmatpush1.msra.mxu0 0.0
    %1336 = vmatprep.subr.mxu0 0.0
    %1337 = vmatpush1.msra.mxu0 0.0
    %1338 = vmatprep.subr.mxu0 0.0
    %1339 = vmatpush1.msra.mxu0 0.0
    %1340 = vmatprep.subr.mxu0 0.0
    %1341 = vmatpush1.msra.mxu0 0.0
    %1342 = vmatprep.subr.mxu0 0.0
    %1343 = vmatpush1.msra.mxu0 0.0
    %1344 = vmatprep.subr.mxu0 0.0
    %1345 = vmatpush1.msra.mxu0 0.0
    %1346 = vmatprep.subr.mxu0 0.0
    %1347 = vmatpush1.msra.mxu0 0.0
    %1348 = vmatprep.subr.mxu0 0.0
    %1349 = vmatpush1.msra.mxu0 0.0
    %1350 = vmatprep.subr.mxu0 0.0
    %1351 = vmatpush1.msra.mxu0 0.0
    %1352 = vmatprep.subr.mxu0 0.0
    %1353 = vmatpush1.msra.mxu0 0.0
    %1354 = vmatprep.subr.mxu0 0.0
    %1355 = vmatpush1.msra.mxu0 0.0
    %1356 = vmatprep.subr.mxu0 0.0
    %1357 = vmatpush1.msra.mxu0 0.0
    %1358 = vmatprep.mubr.f32.mxu0 0.0
    %1359 = vmatmul.mubr.f32.gmra.mrb[0].mxu0 %v1289
    %v1360 = vpop.f32.mrb[0].mxu0
    %v1361 = vadd.f32 0.0, %v1360
    %v1362 = vpop.f32.mrb[0].mxu0
    %1363 = vmatprep.mubr.f32.mxu0 0.0
    %1364 = vmatmul.mubr.f32.gmra.mrb[0].mxu0 %v1292
    %v1365 = vpop.f32.mrb[0].mxu0
    %v1366 = vadd.f32 0.0, %v1365
    %v1367 = vpop.f32.mrb[0].mxu0
    %1368 = vdwg.mxu0
    %v1369 = vadd.f32 %v618, %v1361
    %v1370 = vadd.f32 %v623, %v1366
    %v1371 = vld [vmem:[#allocation29] sm:$0xff]
    %v1372 = vld [vmem:[#allocation29 + $0x8] sm:$0xff]
    %v1373 = vld [vmem:[#allocation29 + $0x10] sm:$0xff]
    %v1374 = vld [vmem:[#allocation29 + $0x18] sm:$0xff]
    %v1375 = vld [vmem:[#allocation30] sm:$0x1]
    %v1377 = vlaneseq
    %v1378 = vshrl.u32 %v1377, 7
    %v1379 = vsub.s32 0, %v1378
    %v1380 = vrot.slane %v1375, %v1379
    %v1383 = vsel %vm854, %v1369, 0
    %v1386 = vsel %vm854, %v1370, 0
    %1388 = vmatprep.subr.mxu0 0.0
    %1389 = vmatpush1.msra.mxu0 %v1371
    %1390 = vmatprep.subr.mxu0 0.0
    %1391 = vmatpush1.msra.mxu0 %v1372
    %1392 = vmatprep.subr.mxu0 0.0
    %1393 = vmatpush1.msra.mxu0 %v1373
    %1394 = vmatprep.subr.mxu0 0.0
    %1395 = vmatpush1.msra.mxu0 %v1374
    %1396 = vmatprep.subr.mxu0 0.0
    %1397 = vmatpush1.msra.mxu0 0.0
    %1398 = vmatprep.subr.mxu0 0.0
    %1399 = vmatpush1.msra.mxu0 0.0
    %1400 = vmatprep.subr.mxu0 0.0
    %1401 = vmatpush1.msra.mxu0 0.0
    %1402 = vmatprep.subr.mxu0 0.0
    %1403 = vmatpush1.msra.mxu0 0.0
    %1404 = vmatprep.subr.mxu0 0.0
    %1405 = vmatpush1.msra.mxu0 0.0
    %1406 = vmatprep.subr.mxu0 0.0
    %1407 = vmatpush1.msra.mxu0 0.0
    %1408 = vmatprep.subr.mxu0 0.0
    %1409 = vmatpush1.msra.mxu0 0.0
    %1410 = vmatprep.subr.mxu0 0.0
    %1411 = vmatpush1.msra.mxu0 0.0
    %1412 = vmatprep.subr.mxu0 0.0
    %1413 = vmatpush1.msra.mxu0 0.0
    %1414 = vmatprep.subr.mxu0 0.0
    %1415 = vmatpush1.msra.mxu0 0.0
    %1416 = vmatprep.subr.mxu0 0.0
    %1417 = vmatpush1.msra.mxu0 0.0
    %1418 = vmatprep.subr.mxu0 0.0
    %1419 = vmatpush1.msra.mxu0 0.0
    %1420 = vmatprep.subr.mxu0 0.0
    %1421 = vmatpush1.msra.mxu0 0.0
    %1422 = vmatprep.subr.mxu0 0.0
    %1423 = vmatpush1.msra.mxu0 0.0
    %1424 = vmatprep.subr.mxu0 0.0
    %1425 = vmatpush1.msra.mxu0 0.0
    %1426 = vmatprep.subr.mxu0 0.0
    %1427 = vmatpush1.msra.mxu0 0.0
    %1428 = vmatprep.subr.mxu0 0.0
    %1429 = vmatpush1.msra.mxu0 0.0
    %1430 = vmatprep.subr.mxu0 0.0
    %1431 = vmatpush1.msra.mxu0 0.0
    %1432 = vmatprep.subr.mxu0 0.0
    %1433 = vmatpush1.msra.mxu0 0.0
    %1434 = vmatprep.subr.mxu0 0.0
    %1435 = vmatpush1.msra.mxu0 0.0
    %1436 = vmatprep.subr.mxu0 0.0
    %1437 = vmatpush1.msra.mxu0 0.0
    %1438 = vmatprep.subr.mxu0 0.0
    %1439 = vmatpush1.msra.mxu0 0.0
    %1440 = vmatprep.subr.mxu0 0.0
    %1441 = vmatpush1.msra.mxu0 0.0
    %1442 = vmatprep.subr.mxu0 0.0
    %1443 = vmatpush1.msra.mxu0 0.0
    %1444 = vmatprep.subr.mxu0 0.0
    %1445 = vmatpush1.msra.mxu0 0.0
    %1446 = vmatprep.subr.mxu0 0.0
    %1447 = vmatpush1.msra.mxu0 0.0
    %1448 = vmatprep.subr.mxu0 0.0
    %1449 = vmatpush1.msra.mxu0 0.0
    %1450 = vmatprep.subr.mxu0 0.0
    %1451 = vmatpush1.msra.mxu0 0.0
    %1452 = vmatprep.mubr.f32.mxu0 0.0
    %1453 = vmatmul.mubr.f32.gmra.mrb[0].mxu0 %v1383
    %v1454 = vpop.f32.mrb[0].mxu0
    %v1455 = vadd.f32 %v1380, %v1454
    %v1456 = vpop.f32.mrb[0].mxu0
    %1457 = vmatprep.mubr.f32.mxu0 0.0
    %1458 = vmatmul.mubr.f32.gmra.mrb[0].mxu0 %v1386
    %v1459 = vpop.f32.mrb[0].mxu0
    %v1460 = vadd.f32 %v1380, %v1459
    %v1461 = vpop.f32.mrb[0].mxu0
    %1462 = vdwg.mxu0
    %v1463 = vmax.f32 %v1455, 0.0
    %v1464 = vmax.f32 %v1460, 0.0
    %v1465 = vld [vmem:[#allocation32] sm:$0xff]
    %v1466 = vld [vmem:[#allocation32 + $0x8] sm:$0xff]
    %v1467 = vld [vmem:[#allocation32 + $0x10] sm:$0xff]
    %v1468 = vld [vmem:[#allocation32 + $0x18] sm:$0xff]
    %v1470 = vsel %vm854, %v1463, 0
    %v1473 = vsel %vm854, %v1464, 0
    %1475 = vmatprep.subr.mxu0 0.0
    %1476 = vmatpush1.msra.mxu0 %v1465
    %1477 = vmatprep.subr.mxu0 0.0
    %1478 = vmatpush1.msra.mxu0 %v1466
    %1479 = vmatprep.subr.mxu0 0.0
    %1480 = vmatpush1.msra.mxu0 %v1467
    %1481 = vmatprep.subr.mxu0 0.0
    %1482 = vmatpush1.msra.mxu0 %v1468
    %1483 = vmatprep.subr.mxu0 0.0
    %1484 = vmatpush1.msra.mxu0 0.0
    %1485 = vmatprep.subr.mxu0 0.0
    %1486 = vmatpush1.msra.mxu0 0.0
    %1487 = vmatprep.subr.mxu0 0.0
    %1488 = vmatpush1.msra.mxu0 0.0
    %1489 = vmatprep.subr.mxu0 0.0
    %1490 = vmatpush1.msra.mxu0 0.0
    %1491 = vmatprep.subr.mxu0 0.0
    %1492 = vmatpush1.msra.mxu0 0.0
    %1493 = vmatprep.subr.mxu0 0.0
    %1494 = vmatpush1.msra.mxu0 0.0
    %1495 = vmatprep.subr.mxu0 0.0
    %1496 = vmatpush1.msra.mxu0 0.0
    %1497 = vmatprep.subr.mxu0 0.0
    %1498 = vmatpush1.msra.mxu0 0.0
    %1499 = vmatprep.subr.mxu0 0.0
    %1500 = vmatpush1.msra.mxu0 0.0
    %1501 = vmatprep.subr.mxu0 0.0
    %1502 = vmatpush1.msra.mxu0 0.0
    %1503 = vmatprep.subr.mxu0 0.0
    %1504 = vmatpush1.msra.mxu0 0.0
    %1505 = vmatprep.subr.mxu0 0.0
    %1506 = vmatpush1.msra.mxu0 0.0
    %1507 = vmatprep.subr.mxu0 0.0
    %1508 = vmatpush1.msra.mxu0 0.0
    %1509 = vmatprep.subr.mxu0 0.0
    %1510 = vmatpush1.msra.mxu0 0.0
    %1511 = vmatprep.subr.mxu0 0.0
    %1512 = vmatpush1.msra.mxu0 0.0
    %1513 = vmatprep.subr.mxu0 0.0
    %1514 = vmatpush1.msra.mxu0 0.0
    %1515 = vmatprep.subr.mxu0 0.0
    %1516 = vmatpush1.msra.mxu0 0.0
    %1517 = vmatprep.subr.mxu0 0.0
    %1518 = vmatpush1.msra.mxu0 0.0
    %1519 = vmatprep.subr.mxu0 0.0
    %1520 = vmatpush1.msra.mxu0 0.0
    %1521 = vmatprep.subr.mxu0 0.0
    %1522 = vmatpush1.msra.mxu0 0.0
    %1523 = vmatprep.subr.mxu0 0.0
    %1524 = vmatpush1.msra.mxu0 0.0
    %1525 = vmatprep.subr.mxu0 0.0
    %1526 = vmatpush1.msra.mxu0 0.0
    %1527 = vmatprep.subr.mxu0 0.0
    %1528 = vmatpush1.msra.mxu0 0.0
    %1529 = vmatprep.subr.mxu0 0.0
    %1530 = vmatpush1.msra.mxu0 0.0
    %1531 = vmatprep.subr.mxu0 0.0
    %1532 = vmatpush1.msra.mxu0 0.0
    %1533 = vmatprep.subr.mxu0 0.0
    %1534 = vmatpush1.msra.mxu0 0.0
    %1535 = vmatprep.subr.mxu0 0.0
    %1536 = vmatpush1.msra.mxu0 0.0
    %1537 = vmatprep.subr.mxu0 0.0
    %1538 = vmatpush1.msra.mxu0 0.0
    %1539 = vmatprep.mubr.f32.mxu0 0.0
    %1540 = vmatmul.mubr.f32.gmra.mrb[0].mxu0 %v1470
    %v1541 = vpop.f32.mrb[0].mxu0
    %v1542 = vadd.f32 0.0, %v1541
    %v1543 = vpop.f32.mrb[0].mxu0
    %1544 = vmatprep.mubr.f32.mxu0 0.0
    %1545 = vmatmul.mubr.f32.gmra.mrb[0].mxu0 %v1473
    %v1546 = vpop.f32.mrb[0].mxu0
    %v1547 = vadd.f32 0.0, %v1546
    %v1548 = vpop.f32.mrb[0].mxu0
    %1549 = vdwg.mxu0
    %v1550 = vadd.f32 %v1369, %v1542
    %v1551 = vadd.f32 %v1370, %v1547
    %v1552 = vld [vmem:[#allocation33] sm:$0x1]
    %v1554 = vlaneseq
    %v1555 = vshrl.u32 %v1554, 7
    %v1556 = vsub.s32 0, %v1555
    %v1557 = vrot.slane %v1552, %v1556
    %v1559 = vadd.f32 %v1550, %v1557
    %v1560 = vadd.f32 %v1551, %v1557
    %v1561 = vld [vmem:[#allocation35] sm:$0xff]
    %v1562 = vld [vmem:[#allocation35 + $0x8] sm:$0xff]
    %v1563 = vld [vmem:[#allocation35 + $0x10] sm:$0xff]
    %v1564 = vld [vmem:[#allocation35 + $0x18] sm:$0xff]
    %v1565 = vld [vmem:[#allocation36] sm:$0x1]
    %v1567 = vlaneseq
    %v1568 = vshrl.u32 %v1567, 7
    %v1569 = vsub.s32 0, %v1568
    %v1570 = vrot.slane %v1565, %v1569
    %v1573 = vsel %vm854, %v832, 0
    %v1576 = vsel %vm854, %v837, 0
    %v1579 = vsel %vm854, %v842, 0
    %v1582 = vsel %vm854, %v847, 0
    %1584 = vmatprep.subr.mxu0 0.0
    %1585 = vmatpush1.msra.mxu0 %v1561
    %1586 = vmatprep.subr.mxu0 0.0
    %1587 = vmatpush1.msra.mxu0 %v1562
    %1588 = vmatprep.subr.mxu0 0.0
    %1589 = vmatpush1.msra.mxu0 %v1563
    %1590 = vmatprep.subr.mxu0 0.0
    %1591 = vmatpush1.msra.mxu0 %v1564
    %1592 = vmatprep.subr.mxu0 0.0
    %1593 = vmatpush1.msra.mxu0 0.0
    %1594 = vmatprep.subr.mxu0 0.0
    %1595 = vmatpush1.msra.mxu0 0.0
    %1596 = vmatprep.subr.mxu0 0.0
    %1597 = vmatpush1.msra.mxu0 0.0
    %1598 = vmatprep.subr.mxu0 0.0
    %1599 = vmatpush1.msra.mxu0 0.0
    %1600 = vmatprep.subr.mxu0 0.0
    %1601 = vmatpush1.msra.mxu0 0.0
    %1602 = vmatprep.subr.mxu0 0.0
    %1603 = vmatpush1.msra.mxu0 0.0
    %1604 = vmatprep.subr.mxu0 0.0
    %1605 = vmatpush1.msra.mxu0 0.0
    %1606 = vmatprep.subr.mxu0 0.0
    %1607 = vmatpush1.msra.mxu0 0.0
    %1608 = vmatprep.subr.mxu0 0.0
    %1609 = vmatpush1.msra.mxu0 0.0
    %1610 = vmatprep.subr.mxu0 0.0
    %1611 = vmatpush1.msra.mxu0 0.0
    %1612 = vmatprep.subr.mxu0 0.0
    %1613 = vmatpush1.msra.mxu0 0.0
    %1614 = vmatprep.subr.mxu0 0.0
    %1615 = vmatpush1.msra.mxu0 0.0
    %1616 = vmatprep.subr.mxu0 0.0
    %1617 = vmatpush1.msra.mxu0 0.0
    %1618 = vmatprep.subr.mxu0 0.0
    %1619 = vmatpush1.msra.mxu0 0.0
    %1620 = vmatprep.subr.mxu0 0.0
    %1621 = vmatpush1.msra.mxu0 0.0
    %1622 = vmatprep.subr.mxu0 0.0
    %1623 = vmatpush1.msra.mxu0 0.0
    %1624 = vmatprep.subr.mxu0 0.0
    %1625 = vmatpush1.msra.mxu0 0.0
    %1626 = vmatprep.subr.mxu0 0.0
    %1627 = vmatpush1.msra.mxu0 0.0
    %1628 = vmatprep.subr.mxu0 0.0
    %1629 = vmatpush1.msra.mxu0 0.0
    %1630 = vmatprep.subr.mxu0 0.0
    %1631 = vmatpush1.msra.mxu0 0.0
    %1632 = vmatprep.subr.mxu0 0.0
    %1633 = vmatpush1.msra.mxu0 0.0
    %1634 = vmatprep.subr.mxu0 0.0
    %1635 = vmatpush1.msra.mxu0 0.0
    %1636 = vmatprep.subr.mxu0 0.0
    %1637 = vmatpush1.msra.mxu0 0.0
    %1638 = vmatprep.subr.mxu0 0.0
    %1639 = vmatpush1.msra.mxu0 0.0
    %1640 = vmatprep.subr.mxu0 0.0
    %1641 = vmatpush1.msra.mxu0 0.0
    %1642 = vmatprep.subr.mxu0 0.0
    %1643 = vmatpush1.msra.mxu0 0.0
    %1644 = vmatprep.subr.mxu0 0.0
    %1645 = vmatpush1.msra.mxu0 0.0
    %1646 = vmatprep.subr.mxu0 0.0
    %1647 = vmatpush1.msra.mxu0 0.0
    %1648 = vmatprep.mubr.f32.mxu0 0.0
    %1649 = vmatmul.mubr.f32.gmra.mrb[0].mxu0 %v1573
    %v1650 = vpop.f32.mrb[0].mxu0
    %v1651 = vadd.f32 %v1570, %v1650
    %v1652 = vpop.f32.mrb[0].mxu0
    %1653 = vmatprep.mubr.f32.mxu0 0.0
    %1654 = vmatmul.mubr.f32.gmra.mrb[0].mxu0 %v1576
    %v1655 = vpop.f32.mrb[0].mxu0
    %v1656 = vadd.f32 %v1570, %v1655
    %v1657 = vpop.f32.mrb[0].mxu0
    %1658 = vmatprep.mubr.f32.mxu0 0.0
    %1659 = vmatmul.mubr.f32.gmra.mrb[0].mxu0 %v1579
    %v1660 = vpop.f32.mrb[0].mxu0
    %v1661 = vadd.f32 %v1570, %v1660
    %v1662 = vpop.f32.mrb[0].mxu0
    %1663 = vmatprep.mubr.f32.mxu0 0.0
    %1664 = vmatmul.mubr.f32.gmra.mrb[0].mxu0 %v1582
    %v1665 = vpop.f32.mrb[0].mxu0
    %v1666 = vadd.f32 %v1570, %v1665
    %v1667 = vpop.f32.mrb[0].mxu0
    %1668 = vdwg.mxu0
    %v1669 = vmax.f32 %v1651, 0.0
    %v1670 = vmax.f32 %v1656, 0.0
    %v1671 = vmax.f32 %v1661, 0.0
    %v1672 = vmax.f32 %v1666, 0.0
    %v1673 = vadd.f32 %v832, %v1669
    %v1674 = vadd.f32 %v837, %v1670
    %v1675 = vadd.f32 %v842, %v1671
    %v1676 = vadd.f32 %v847, %v1672
    %s1677 = scalar_lea.vmem [#allocation23], 32
    %v1678 = vld [vmem:[%s1677] sm:$0xff]
    %v1679 = vld [vmem:[%s1677 + $0x8] sm:$0xff]
    %v1680 = vld [vmem:[%s1677 + $0x10] sm:$0xff]
    %v1681 = vld [vmem:[%s1677 + $0x18] sm:$0xff]
    %v1683 = vsel %vm854, %v1559, 0
    %v1686 = vsel %vm854, %v1560, 0
    %1688 = vmatprep.subr.mxu0 0.0
    %1689 = vmatpush1.msra.mxu0 %v1678
    %1690 = vmatprep.subr.mxu0 0.0
    %1691 = vmatpush1.msra.mxu0 %v1679
    %1692 = vmatprep.subr.mxu0 0.0
    %1693 = vmatpush1.msra.mxu0 %v1680
    %1694 = vmatprep.subr.mxu0 0.0
    %1695 = vmatpush1.msra.mxu0 %v1681
    %1696 = vmatprep.subr.mxu0 0.0
    %1697 = vmatpush1.msra.mxu0 0.0
    %1698 = vmatprep.subr.mxu0 0.0
    %1699 = vmatpush1.msra.mxu0 0.0
    %1700 = vmatprep.subr.mxu0 0.0
    %1701 = vmatpush1.msra.mxu0 0.0
    %1702 = vmatprep.subr.mxu0 0.0
    %1703 = vmatpush1.msra.mxu0 0.0
    %1704 = vmatprep.subr.mxu0 0.0
    %1705 = vmatpush1.msra.mxu0 0.0
    %1706 = vmatprep.subr.mxu0 0.0
    %1707 = vmatpush1.msra.mxu0 0.0
    %1708 = vmatprep.subr.mxu0 0.0
    %1709 = vmatpush1.msra.mxu0 0.0
    %1710 = vmatprep.subr.mxu0 0.0
    %1711 = vmatpush1.msra.mxu0 0.0
    %1712 = vmatprep.subr.mxu0 0.0
    %1713 = vmatpush1.msra.mxu0 0.0
    %1714 = vmatprep.subr.mxu0 0.0
    %1715 = vmatpush1.msra.mxu0 0.0
    %1716 = vmatprep.subr.mxu0 0.0
    %1717 = vmatpush1.msra.mxu0 0.0
    %1718 = vmatprep.subr.mxu0 0.0
    %1719 = vmatpush1.msra.mxu0 0.0
    %1720 = vmatprep.subr.mxu0 0.0
    %1721 = vmatpush1.msra.mxu0 0.0
    %1722 = vmatprep.subr.mxu0 0.0
    %1723 = vmatpush1.msra.mxu0 0.0
    %1724 = vmatprep.subr.mxu0 0.0
    %1725 = vmatpush1.msra.mxu0 0.0
    %1726 = vmatprep.subr.mxu0 0.0
    %1727 = vmatpush1.msra.mxu0 0.0
    %1728 = vmatprep.subr.mxu0 0.0
    %1729 = vmatpush1.msra.mxu0 0.0
    %1730 = vmatprep.subr.mxu0 0.0
    %1731 = vmatpush1.msra.mxu0 0.0
    %1732 = vmatprep.subr.mxu0 0.0
    %1733 = vmatpush1.msra.mxu0 0.0
    %1734 = vmatprep.subr.mxu0 0.0
    %1735 = vmatpush1.msra.mxu0 0.0
    %1736 = vmatprep.subr.mxu0 0.0
    %1737 = vmatpush1.msra.mxu0 0.0
    %1738 = vmatprep.subr.mxu0 0.0
    %1739 = vmatpush1.msra.mxu0 0.0
    %1740 = vmatprep.subr.mxu0 0.0
    %1741 = vmatpush1.msra.mxu0 0.0
    %1742 = vmatprep.subr.mxu0 0.0
    %1743 = vmatpush1.msra.mxu0 0.0
    %1744 = vmatprep.subr.mxu0 0.0
    %1745 = vmatpush1.msra.mxu0 0.0
    %1746 = vmatprep.subr.mxu0 0.0
    %1747 = vmatpush1.msra.mxu0 0.0
    %1748 = vmatprep.subr.mxu0 0.0
    %1749 = vmatpush1.msra.mxu0 0.0
    %1750 = vmatprep.subr.mxu0 0.0
    %1751 = vmatpush1.msra.mxu0 0.0
    %1752 = vmatprep.mubr.f32.mxu0 0.0
    %1753 = vmatmul.mubr.f32.gmra.mrb[0].mxu0 %v1683
    %v1754 = vpop.f32.mrb[0].mxu0
    %v1755 = vadd.f32 0.0, %v1754
    %v1756 = vpop.f32.mrb[0].mxu0
    %1757 = vmatprep.mubr.f32.mxu0 0.0
    %1758 = vmatmul.mubr.f32.gmra.mrb[0].mxu0 %v1686
    %v1759 = vpop.f32.mrb[0].mxu0
    %v1760 = vadd.f32 0.0, %v1759
    %v1761 = vpop.f32.mrb[0].mxu0
    %1762 = vdwg.mxu0
    %s1763 = scalar_lea.vmem [#allocation24], 32
    %v1764 = vld [vmem:[%s1763] sm:$0xff]
    %v1765 = vld [vmem:[%s1763 + $0x8] sm:$0xff]
    %v1766 = vld [vmem:[%s1763 + $0x10] sm:$0xff]
    %v1767 = vld [vmem:[%s1763 + $0x18] sm:$0xff]
    %1768 = vmatprep.subr.mxu0 0.0
    %1769 = vmatpush1.msra.mxu0 %v1764
    %1770 = vmatprep.subr.mxu0 0.0
    %1771 = vmatpush1.msra.mxu0 %v1765
    %1772 = vmatprep.subr.mxu0 0.0
    %1773 = vmatpush1.msra.mxu0 %v1766
    %1774 = vmatprep.subr.mxu0 0.0
    %1775 = vmatpush1.msra.mxu0 %v1767
    %1776 = vmatprep.subr.mxu0 0.0
    %1777 = vmatpush1.msra.mxu0 0.0
    %1778 = vmatprep.subr.mxu0 0.0
    %1779 = vmatpush1.msra.mxu0 0.0
    %1780 = vmatprep.subr.mxu0 0.0
    %1781 = vmatpush1.msra.mxu0 0.0
    %1782 = vmatprep.subr.mxu0 0.0
    %1783 = vmatpush1.msra.mxu0 0.0
    %1784 = vmatprep.subr.mxu0 0.0
    %1785 = vmatpush1.msra.mxu0 0.0
    %1786 = vmatprep.subr.mxu0 0.0
    %1787 = vmatpush1.msra.mxu0 0.0
    %1788 = vmatprep.subr.mxu0 0.0
    %1789 = vmatpush1.msra.mxu0 0.0
    %1790 = vmatprep.subr.mxu0 0.0
    %1791 = vmatpush1.msra.mxu0 0.0
    %1792 = vmatprep.subr.mxu0 0.0
    %1793 = vmatpush1.msra.mxu0 0.0
    %1794 = vmatprep.subr.mxu0 0.0
    %1795 = vmatpush1.msra.mxu0 0.0
    %1796 = vmatprep.subr.mxu0 0.0
    %1797 = vmatpush1.msra.mxu0 0.0
    %1798 = vmatprep.subr.mxu0 0.0
    %1799 = vmatpush1.msra.mxu0 0.0
    %1800 = vmatprep.subr.mxu0 0.0
    %1801 = vmatpush1.msra.mxu0 0.0
    %1802 = vmatprep.subr.mxu0 0.0
    %1803 = vmatpush1.msra.mxu0 0.0
    %1804 = vmatprep.subr.mxu0 0.0
    %1805 = vmatpush1.msra.mxu0 0.0
    %1806 = vmatprep.subr.mxu0 0.0
    %1807 = vmatpush1.msra.mxu0 0.0
    %1808 = vmatprep.subr.mxu0 0.0
    %1809 = vmatpush1.msra.mxu0 0.0
    %1810 = vmatprep.subr.mxu0 0.0
    %1811 = vmatpush1.msra.mxu0 0.0
    %1812 = vmatprep.subr.mxu0 0.0
    %1813 = vmatpush1.msra.mxu0 0.0
    %1814 = vmatprep.subr.mxu0 0.0
    %1815 = vmatpush1.msra.mxu0 0.0
    %1816 = vmatprep.subr.mxu0 0.0
    %1817 = vmatpush1.msra.mxu0 0.0
    %1818 = vmatprep.subr.mxu0 0.0
    %1819 = vmatpush1.msra.mxu0 0.0
    %1820 = vmatprep.subr.mxu0 0.0
    %1821 = vmatpush1.msra.mxu0 0.0
    %1822 = vmatprep.subr.mxu0 0.0
    %1823 = vmatpush1.msra.mxu0 0.0
    %1824 = vmatprep.subr.mxu0 0.0
    %1825 = vmatpush1.msra.mxu0 0.0
    %1826 = vmatprep.subr.mxu0 0.0
    %1827 = vmatpush1.msra.mxu0 0.0
    %1828 = vmatprep.subr.mxu0 0.0
    %1829 = vmatpush1.msra.mxu0 0.0
    %1830 = vmatprep.subr.mxu0 0.0
    %1831 = vmatpush1.msra.mxu0 0.0
    %1832 = vmatprep.mubr.f32.mxu0 0.0
    %1833 = vmatmul.mubr.f32.gmra.mrb[0].mxu0 %v1683
    %v1834 = vpop.f32.mrb[0].mxu0
    %v1835 = vadd.f32 0.0, %v1834
    %v1836 = vpop.f32.mrb[0].mxu0
    %1837 = vmatprep.mubr.f32.mxu0 0.0
    %1838 = vmatmul.mubr.f32.gmra.mrb[0].mxu0 %v1686
    %v1839 = vpop.f32.mrb[0].mxu0
    %v1840 = vadd.f32 0.0, %v1839
    %v1841 = vpop.f32.mrb[0].mxu0
    %1842 = vdwg.mxu0
    %s1843 = scalar_lea.vmem [#allocation26], 32
    %v1844 = vld [vmem:[%s1843] sm:$0xff]
    %v1845 = vld [vmem:[%s1843 + $0x8] sm:$0xff]
    %v1846 = vld [vmem:[%s1843 + $0x10] sm:$0xff]
    %v1847 = vld [vmem:[%s1843 + $0x18] sm:$0xff]
    %1848 = vmatprep.subr.mxu0 0.0
    %1849 = vmatpush1.msra.mxu0 %v1844
    %1850 = vmatprep.subr.mxu0 0.0
    %1851 = vmatpush1.msra.mxu0 %v1845
    %1852 = vmatprep.subr.mxu0 0.0
    %1853 = vmatpush1.msra.mxu0 %v1846
    %1854 = vmatprep.subr.mxu0 0.0
    %1855 = vmatpush1.msra.mxu0 %v1847
    %1856 = vmatprep.subr.mxu0 0.0
    %1857 = vmatpush1.msra.mxu0 0.0
    %1858 = vmatprep.subr.mxu0 0.0
    %1859 = vmatpush1.msra.mxu0 0.0
    %1860 = vmatprep.subr.mxu0 0.0
    %1861 = vmatpush1.msra.mxu0 0.0
    %1862 = vmatprep.subr.mxu0 0.0
    %1863 = vmatpush1.msra.mxu0 0.0
    %1864 = vmatprep.subr.mxu0 0.0
    %1865 = vmatpush1.msra.mxu0 0.0
    %1866 = vmatprep.subr.mxu0 0.0
    %1867 = vmatpush1.msra.mxu0 0.0
    %1868 = vmatprep.subr.mxu0 0.0
    %1869 = vmatpush1.msra.mxu0 0.0
    %1870 = vmatprep.subr.mxu0 0.0
    %1871 = vmatpush1.msra.mxu0 0.0
    %1872 = vmatprep.subr.mxu0 0.0
    %1873 = vmatpush1.msra.mxu0 0.0
    %1874 = vmatprep.subr.mxu0 0.0
    %1875 = vmatpush1.msra.mxu0 0.0
    %1876 = vmatprep.subr.mxu0 0.0
    %1877 = vmatpush1.msra.mxu0 0.0
    %1878 = vmatprep.subr.mxu0 0.0
    %1879 = vmatpush1.msra.mxu0 0.0
    %1880 = vmatprep.subr.mxu0 0.0
    %1881 = vmatpush1.msra.mxu0 0.0
    %1882 = vmatprep.subr.mxu0 0.0
    %1883 = vmatpush1.msra.mxu0 0.0
    %1884 = vmatprep.subr.mxu0 0.0
    %1885 = vmatpush1.msra.mxu0 0.0
    %1886 = vmatprep.subr.mxu0 0.0
    %1887 = vmatpush1.msra.mxu0 0.0
    %1888 = vmatprep.subr.mxu0 0.0
    %1889 = vmatpush1.msra.mxu0 0.0
    %1890 = vmatprep.subr.mxu0 0.0
    %1891 = vmatpush1.msra.mxu0 0.0
    %1892 = vmatprep.subr.mxu0 0.0
    %1893 = vmatpush1.msra.mxu0 0.0
    %1894 = vmatprep.subr.mxu0 0.0
    %1895 = vmatpush1.msra.mxu0 0.0
    %1896 = vmatprep.subr.mxu0 0.0
    %1897 = vmatpush1.msra.mxu0 0.0
    %1898 = vmatprep.subr.mxu0 0.0
    %1899 = vmatpush1.msra.mxu0 0.0
    %1900 = vmatprep.subr.mxu0 0.0
    %1901 = vmatpush1.msra.mxu0 0.0
    %1902 = vmatprep.subr.mxu0 0.0
    %1903 = vmatpush1.msra.mxu0 0.0
    %1904 = vmatprep.subr.mxu0 0.0
    %1905 = vmatpush1.msra.mxu0 0.0
    %1906 = vmatprep.subr.mxu0 0.0
    %1907 = vmatpush1.msra.mxu0 0.0
    %1908 = vmatprep.subr.mxu0 0.0
    %1909 = vmatpush1.msra.mxu0 0.0
    %1910 = vmatprep.subr.mxu0 0.0
    %1911 = vmatpush1.msra.mxu0 0.0
    %1912 = vmatprep.mubr.f32.mxu0 0.0
    %1913 = vmatmul.mubr.f32.gmra.mrb[0].mxu0 %v1683
    %v1914 = vpop.f32.mrb[0].mxu0
    %v1915 = vadd.f32 0.0, %v1914
    %v1916 = vpop.f32.mrb[0].mxu0
    %1917 = vmatprep.mubr.f32.mxu0 0.0
    %1918 = vmatmul.mubr.f32.gmra.mrb[0].mxu0 %v1686
    %v1919 = vpop.f32.mrb[0].mxu0
    %v1920 = vadd.f32 0.0, %v1919
    %v1921 = vpop.f32.mrb[0].mxu0
    %1922 = vdwg.mxu0
    %v1924 = vsel %vm854, %v1755, 0
    %v1927 = vsel %vm854, %v1760, 0
    %v1930 = vsel %vm854, %v1835, 0
    %v1933 = vsel %vm854, %v1840, 0
    %1935 = vmatprep.subr.mxu0 0.0
    %1936 = vmatpush1.xpose.msra.mxu0 %v1930
    %1937 = vmatprep.subr.mxu0 0.0
    %1938 = vmatpush1.xpose.msra.mxu0 %v1933
    %1939 = vmatprep.subr.mxu0 0.0
    %1940 = vmatpush1.xpose.msra.mxu0 0.0
    %1941 = vmatprep.subr.mxu0 0.0
    %1942 = vmatpush1.xpose.msra.mxu0 0.0
    %1943 = vmatprep.subr.mxu0 0.0
    %1944 = vmatpush1.xpose.msra.mxu0 0.0
    %1945 = vmatprep.subr.mxu0 0.0
    %1946 = vmatpush1.xpose.msra.mxu0 0.0
    %1947 = vmatprep.subr.mxu0 0.0
    %1948 = vmatpush1.xpose.msra.mxu0 0.0
    %1949 = vmatprep.subr.mxu0 0.0
    %1950 = vmatpush1.xpose.msra.mxu0 0.0
    %1951 = vmatprep.subr.mxu0 0.0
    %1952 = vmatpush1.xpose.msra.mxu0 0.0
    %1953 = vmatprep.subr.mxu0 0.0
    %1954 = vmatpush1.xpose.msra.mxu0 0.0
    %1955 = vmatprep.subr.mxu0 0.0
    %1956 = vmatpush1.xpose.msra.mxu0 0.0
    %1957 = vmatprep.subr.mxu0 0.0
    %1958 = vmatpush1.xpose.msra.mxu0 0.0
    %1959 = vmatprep.subr.mxu0 0.0
    %1960 = vmatpush1.xpose.msra.mxu0 0.0
    %1961 = vmatprep.subr.mxu0 0.0
    %1962 = vmatpush1.xpose.msra.mxu0 0.0
    %1963 = vmatprep.subr.mxu0 0.0
    %1964 = vmatpush1.xpose.msra.mxu0 0.0
    %1965 = vmatprep.subr.mxu0 0.0
    %1966 = vmatpush1.xpose.msra.mxu0 0.0
    %1967 = vmatprep.subr.mxu0 0.0
    %1968 = vmatpush1.xpose.msra.mxu0 0.0
    %1969 = vmatprep.subr.mxu0 0.0
    %1970 = vmatpush1.xpose.msra.mxu0 0.0
    %1971 = vmatprep.subr.mxu0 0.0
    %1972 = vmatpush1.xpose.msra.mxu0 0.0
    %1973 = vmatprep.subr.mxu0 0.0
    %1974 = vmatpush1.xpose.msra.mxu0 0.0
    %1975 = vmatprep.subr.mxu0 0.0
    %1976 = vmatpush1.xpose.msra.mxu0 0.0
    %1977 = vmatprep.subr.mxu0 0.0
    %1978 = vmatpush1.xpose.msra.mxu0 0.0
    %1979 = vmatprep.subr.mxu0 0.0
    %1980 = vmatpush1.xpose.msra.mxu0 0.0
    %1981 = vmatprep.subr.mxu0 0.0
    %1982 = vmatpush1.xpose.msra.mxu0 0.0
    %1983 = vmatprep.subr.mxu0 0.0
    %1984 = vmatpush1.xpose.msra.mxu0 0.0
    %1985 = vmatprep.subr.mxu0 0.0
    %1986 = vmatpush1.xpose.msra.mxu0 0.0
    %1987 = vmatprep.subr.mxu0 0.0
    %1988 = vmatpush1.xpose.msra.mxu0 0.0
    %1989 = vmatprep.subr.mxu0 0.0
    %1990 = vmatpush1.xpose.msra.mxu0 0.0
    %1991 = vmatprep.subr.mxu0 0.0
    %1992 = vmatpush1.xpose.msra.mxu0 0.0
    %1993 = vmatprep.subr.mxu0 0.0
    %1994 = vmatpush1.xpose.msra.mxu0 0.0
    %1995 = vmatprep.subr.mxu0 0.0
    %1996 = vmatpush1.xpose.msra.mxu0 0.0
    %1997 = vmatprep.subr.mxu0 0.0
    %1998 = vmatpush1.xpose.msra.mxu0 0.0
    %1999 = vmatprep.mubr.f32.mxu0 0.0
    %2000 = vmatmul.mubr.f32.gmra.mrb[0].mxu0 %v1924
    %v2001 = vpop.f32.mrb[0].mxu0
    %v2002 = vadd.f32 0.0, %v2001
    %v2003 = vpop.f32.mrb[0].mxu0
    %2004 = vmatprep.mubr.f32.mxu0 0.0
    %2005 = vmatmul.mubr.f32.gmra.mrb[0].mxu0 %v1927
    %v2006 = vpop.f32.mrb[0].mxu0
    %v2007 = vadd.f32 0.0, %v2006
    %v2008 = vpop.f32.mrb[0].mxu0
    %2009 = vdwg.mxu0
    %v2010 = vsel %vm544, %v2002, -inf
    %2011 = vmax.xlane.f32.xlu0 %v2010
    %v2012 = vpop.xlane.xlu0 %2011
    %v2013 = vsel %vm544, %v2007, -inf
    %2014 = vmax.xlane.f32.xlu0 %v2013
    %v2015 = vpop.xlane.xlu0 %2014
    %v2016 = vsub.f32 %v2002, %v2012
    %v2017 = vsub.f32 %v2007, %v2015
    %v2018 = vmul.f32 %v2016, 1.442695
    %v2019 = vpow.pop %v2018
    %v2020 = vmul.f32 %v2017, 1.442695
    %v2021 = vpow.pop %v2020
    %v2022 = vsel %vm544, %v2019, 0.0
    %2023 = vadd.xlane.f32.xlu0 %v2022
    %v2024 = vpop.xlane.xlu0 %2023
    %v2025 = vsel %vm544, %v2021, 0.0
    %2026 = vadd.xlane.f32.xlu0 %v2025
    %v2027 = vpop.xlane.xlu0 %2026
    %v2028 = vrcp.pop %v2024
    %v2029 = vrcp.pop %v2027
    %v2030 = vmul.f32 %v2019, %v2028
    %v2031 = vmul.f32 %v2021, %v2029
    %v2033 = vsel %vm544, %v2030, 0
    %v2036 = vsel %vm544, %v2031, 0
    %2038 = vmatprep.subr.mxu0 0.0
    %2039 = vmatpush1.msra.mxu0 %v1915
    %2040 = vmatprep.subr.mxu0 0.0
    %2041 = vmatpush1.msra.mxu0 %v1920
    %2042 = vmatprep.subr.mxu0 0.0
    %2043 = vmatpush1.msra.mxu0 0.0
    %2044 = vmatprep.subr.mxu0 0.0
    %2045 = vmatpush1.msra.mxu0 0.0
    %2046 = vmatprep.subr.mxu0 0.0
    %2047 = vmatpush1.msra.mxu0 0.0
    %2048 = vmatprep.subr.mxu0 0.0
    %2049 = vmatpush1.msra.mxu0 0.0
    %2050 = vmatprep.subr.mxu0 0.0
    %2051 = vmatpush1.msra.mxu0 0.0
    %2052 = vmatprep.subr.mxu0 0.0
    %2053 = vmatpush1.msra.mxu0 0.0
    %2054 = vmatprep.subr.mxu0 0.0
    %2055 = vmatpush1.msra.mxu0 0.0
    %2056 = vmatprep.subr.mxu0 0.0
    %2057 = vmatpush1.msra.mxu0 0.0
    %2058 = vmatprep.subr.mxu0 0.0
    %2059 = vmatpush1.msra.mxu0 0.0
    %2060 = vmatprep.subr.mxu0 0.0
    %2061 = vmatpush1.msra.mxu0 0.0
    %2062 = vmatprep.subr.mxu0 0.0
    %2063 = vmatpush1.msra.mxu0 0.0
    %2064 = vmatprep.subr.mxu0 0.0
    %2065 = vmatpush1.msra.mxu0 0.0
    %2066 = vmatprep.subr.mxu0 0.0
    %2067 = vmatpush1.msra.mxu0 0.0
    %2068 = vmatprep.subr.mxu0 0.0
    %2069 = vmatpush1.msra.mxu0 0.0
    %2070 = vmatprep.subr.mxu0 0.0
    %2071 = vmatpush1.msra.mxu0 0.0
    %2072 = vmatprep.subr.mxu0 0.0
    %2073 = vmatpush1.msra.mxu0 0.0
    %2074 = vmatprep.subr.mxu0 0.0
    %2075 = vmatpush1.msra.mxu0 0.0
    %2076 = vmatprep.subr.mxu0 0.0
    %2077 = vmatpush1.msra.mxu0 0.0
    %2078 = vmatprep.subr.mxu0 0.0
    %2079 = vmatpush1.msra.mxu0 0.0
    %2080 = vmatprep.subr.mxu0 0.0
    %2081 = vmatpush1.msra.mxu0 0.0
    %2082 = vmatprep.subr.mxu0 0.0
    %2083 = vmatpush1.msra.mxu0 0.0
    %2084 = vmatprep.subr.mxu0 0.0
    %2085 = vmatpush1.msra.mxu0 0.0
    %2086 = vmatprep.subr.mxu0 0.0
    %2087 = vmatpush1.msra.mxu0 0.0
    %2088 = vmatprep.subr.mxu0 0.0
    %2089 = vmatpush1.msra.mxu0 0.0
    %2090 = vmatprep.subr.mxu0 0.0
    %2091 = vmatpush1.msra.mxu0 0.0
    %2092 = vmatprep.subr.mxu0 0.0
    %2093 = vmatpush1.msra.mxu0 0.0
    %2094 = vmatprep.subr.mxu0 0.0
    %2095 = vmatpush1.msra.mxu0 0.0
    %2096 = vmatprep.subr.mxu0 0.0
    %2097 = vmatpush1.msra.mxu0 0.0
    %2098 = vmatprep.subr.mxu0 0.0
    %2099 = vmatpush1.msra.mxu0 0.0
    %2100 = vmatprep.subr.mxu0 0.0
    %2101 = vmatpush1.msra.mxu0 0.0
    %2102 = vmatprep.mubr.f32.mxu0 0.0
    %2103 = vmatmul.mubr.f32.gmra.mrb[0].mxu0 %v2033
    %v2104 = vpop.f32.mrb[0].mxu0
    %v2105 = vadd.f32 0.0, %v2104
    %v2106 = vpop.f32.mrb[0].mxu0
    %2107 = vmatprep.mubr.f32.mxu0 0.0
    %2108 = vmatmul.mubr.f32.gmra.mrb[0].mxu0 %v2036
    %v2109 = vpop.f32.mrb[0].mxu0
    %v2110 = vadd.f32 0.0, %v2109
    %v2111 = vpop.f32.mrb[0].mxu0
    %2112 = vdwg.mxu0
    %s2113 = scalar_lea.vmem [#allocation27], 32
    %v2114 = vld [vmem:[%s2113] sm:$0xff]
    %v2115 = vld [vmem:[%s2113 + $0x8] sm:$0xff]
    %v2116 = vld [vmem:[%s2113 + $0x10] sm:$0xff]
    %v2117 = vld [vmem:[%s2113 + $0x18] sm:$0xff]
    %v2119 = vsel %vm854, %v2105, 0
    %v2122 = vsel %vm854, %v2110, 0
    %2124 = vmatprep.subr.mxu0 0.0
    %2125 = vmatpush1.msra.mxu0 %v2114
    %2126 = vmatprep.subr.mxu0 0.0
    %2127 = vmatpush1.msra.mxu0 %v2115
    %2128 = vmatprep.subr.mxu0 0.0
    %2129 = vmatpush1.msra.mxu0 %v2116
    %2130 = vmatprep.subr.mxu0 0.0
    %2131 = vmatpush1.msra.mxu0 %v2117
    %2132 = vmatprep.subr.mxu0 0.0
    %2133 = vmatpush1.msra.mxu0 0.0
    %2134 = vmatprep.subr.mxu0 0.0
    %2135 = vmatpush1.msra.mxu0 0.0
    %2136 = vmatprep.subr.mxu0 0.0
    %2137 = vmatpush1.msra.mxu0 0.0
    %2138 = vmatprep.subr.mxu0 0.0
    %2139 = vmatpush1.msra.mxu0 0.0
    %2140 = vmatprep.subr.mxu0 0.0
    %2141 = vmatpush1.msra.mxu0 0.0
    %2142 = vmatprep.subr.mxu0 0.0
    %2143 = vmatpush1.msra.mxu0 0.0
    %2144 = vmatprep.subr.mxu0 0.0
    %2145 = vmatpush1.msra.mxu0 0.0
    %2146 = vmatprep.subr.mxu0 0.0
    %2147 = vmatpush1.msra.mxu0 0.0
    %2148 = vmatprep.subr.mxu0 0.0
    %2149 = vmatpush1.msra.mxu0 0.0
    %2150 = vmatprep.subr.mxu0 0.0
    %2151 = vmatpush1.msra.mxu0 0.0
    %2152 = vmatprep.subr.mxu0 0.0
    %2153 = vmatpush1.msra.mxu0 0.0
    %2154 = vmatprep.subr.mxu0 0.0
    %2155 = vmatpush1.msra.mxu0 0.0
    %2156 = vmatprep.subr.mxu0 0.0
    %2157 = vmatpush1.msra.mxu0 0.0
    %2158 = vmatprep.subr.mxu0 0.0
    %2159 = vmatpush1.msra.mxu0 0.0
    %2160 = vmatprep.subr.mxu0 0.0
    %2161 = vmatpush1.msra.mxu0 0.0
    %2162 = vmatprep.subr.mxu0 0.0
    %2163 = vmatpush1.msra.mxu0 0.0
    %2164 = vmatprep.subr.mxu0 0.0
    %2165 = vmatpush1.msra.mxu0 0.0
    %2166 = vmatprep.subr.mxu0 0.0
    %2167 = vmatpush1.msra.mxu0 0.0
    %2168 = vmatprep.subr.mxu0 0.0
    %2169 = vmatpush1.msra.mxu0 0.0
    %2170 = vmatprep.subr.mxu0 0.0
    %2171 = vmatpush1.msra.mxu0 0.0
    %2172 = vmatprep.subr.mxu0 0.0
    %2173 = vmatpush1.msra.mxu0 0.0
    %2174 = vmatprep.subr.mxu0 0.0
    %2175 = vmatpush1.msra.mxu0 0.0
    %2176 = vmatprep.subr.mxu0 0.0
    %2177 = vmatpush1.msra.mxu0 0.0
    %2178 = vmatprep.subr.mxu0 0.0
    %2179 = vmatpush1.msra.mxu0 0.0
    %2180 = vmatprep.subr.mxu0 0.0
    %2181 = vmatpush1.msra.mxu0 0.0
    %2182 = vmatprep.subr.mxu0 0.0
    %2183 = vmatpush1.msra.mxu0 0.0
    %2184 = vmatprep.subr.mxu0 0.0
    %2185 = vmatpush1.msra.mxu0 0.0
    %2186 = vmatprep.subr.mxu0 0.0
    %2187 = vmatpush1.msra.mxu0 0.0
    %2188 = vmatprep.mubr.f32.mxu0 0.0
    %2189 = vmatmul.mubr.f32.gmra.mrb[0].mxu0 %v2119
    %v2190 = vpop.f32.mrb[0].mxu0
    %v2191 = vadd.f32 0.0, %v2190
    %v2192 = vpop.f32.mrb[0].mxu0
    %2193 = vmatprep.mubr.f32.mxu0 0.0
    %2194 = vmatmul.mubr.f32.gmra.mrb[0].mxu0 %v2122
    %v2195 = vpop.f32.mrb[0].mxu0
    %v2196 = vadd.f32 0.0, %v2195
    %v2197 = vpop.f32.mrb[0].mxu0
    %2198 = vdwg.mxu0
    %v2199 = vadd.f32 %v1559, %v2191
    %v2200 = vadd.f32 %v1560, %v2196
    %s2201 = scalar_lea.vmem [#allocation29], 32
    %v2202 = vld [vmem:[%s2201] sm:$0xff]
    %v2203 = vld [vmem:[%s2201 + $0x8] sm:$0xff]
    %v2204 = vld [vmem:[%s2201 + $0x10] sm:$0xff]
    %v2205 = vld [vmem:[%s2201 + $0x18] sm:$0xff]
    %s2206 = scalar_lea.vmem [#allocation30], 1
    %v2207 = vld [vmem:[%s2206] sm:$0x1]
    %v2209 = vlaneseq
    %v2210 = vshrl.u32 %v2209, 7
    %v2211 = vsub.s32 0, %v2210
    %v2212 = vrot.slane %v2207, %v2211
    %v2215 = vsel %vm854, %v2199, 0
    %v2218 = vsel %vm854, %v2200, 0
    %2220 = vmatprep.subr.mxu0 0.0
    %2221 = vmatpush1.msra.mxu0 %v2202
    %2222 = vmatprep.subr.mxu0 0.0
    %2223 = vmatpush1.msra.mxu0 %v2203
    %2224 = vmatprep.subr.mxu0 0.0
    %2225 = vmatpush1.msra.mxu0 %v2204
    %2226 = vmatprep.subr.mxu0 0.0
    %2227 = vmatpush1.msra.mxu0 %v2205
    %2228 = vmatprep.subr.mxu0 0.0
    %2229 = vmatpush1.msra.mxu0 0.0
    %2230 = vmatprep.subr.mxu0 0.0
    %2231 = vmatpush1.msra.mxu0 0.0
    %2232 = vmatprep.subr.mxu0 0.0
    %2233 = vmatpush1.msra.mxu0 0.0
    %2234 = vmatprep.subr.mxu0 0.0
    %2235 = vmatpush1.msra.mxu0 0.0
    %2236 = vmatprep.subr.mxu0 0.0
    %2237 = vmatpush1.msra.mxu0 0.0
    %2238 = vmatprep.subr.mxu0 0.0
    %2239 = vmatpush1.msra.mxu0 0.0
    %2240 = vmatprep.subr.mxu0 0.0
    %2241 = vmatpush1.msra.mxu0 0.0
    %2242 = vmatprep.subr.mxu0 0.0
    %2243 = vmatpush1.msra.mxu0 0.0
    %2244 = vmatprep.subr.mxu0 0.0
    %2245 = vmatpush1.msra.mxu0 0.0
    %2246 = vmatprep.subr.mxu0 0.0
    %2247 = vmatpush1.msra.mxu0 0.0
    %2248 = vmatprep.subr.mxu0 0.0
    %2249 = vmatpush1.msra.mxu0 0.0
    %2250 = vmatprep.subr.mxu0 0.0
    %2251 = vmatpush1.msra.mxu0 0.0
    %2252 = vmatprep.subr.mxu0 0.0
    %2253 = vmatpush1.msra.mxu0 0.0
    %2254 = vmatprep.subr.mxu0 0.0
    %2255 = vmatpush1.msra.mxu0 0.0
    %2256 = vmatprep.subr.mxu0 0.0
    %2257 = vmatpush1.msra.mxu0 0.0
    %2258 = vmatprep.subr.mxu0 0.0
    %2259 = vmatpush1.msra.mxu0 0.0
    %2260 = vmatprep.subr.mxu0 0.0
    %2261 = vmatpush1.msra.mxu0 0.0
    %2262 = vmatprep.subr.mxu0 0.0
    %2263 = vmatpush1.msra.mxu0 0.0
    %2264 = vmatprep.subr.mxu0 0.0
    %2265 = vmatpush1.msra.mxu0 0.0
    %2266 = vmatprep.subr.mxu0 0.0
    %2267 = vmatpush1.msra.mxu0 0.0
    %2268 = vmatprep.subr.mxu0 0.0
    %2269 = vmatpush1.msra.mxu0 0.0
    %2270 = vmatprep.subr.mxu0 0.0
    %2271 = vmatpush1.msra.mxu0 0.0
    %2272 = vmatprep.subr.mxu0 0.0
    %2273 = vmatpush1.msra.mxu0 0.0
    %2274 = vmatprep.subr.mxu0 0.0
    %2275 = vmatpush1.msra.mxu0 0.0
    %2276 = vmatprep.subr.mxu0 0.0
    %2277 = vmatpush1.msra.mxu0 0.0
    %2278 = vmatprep.subr.mxu0 0.0
    %2279 = vmatpush1.msra.mxu0 0.0
    %2280 = vmatprep.subr.mxu0 0.0
    %2281 = vmatpush1.msra.mxu0 0.0
    %2282 = vmatprep.subr.mxu0 0.0
    %2283 = vmatpush1.msra.mxu0 0.0
    %2284 = vmatprep.mubr.f32.mxu0 0.0
    %2285 = vmatmul.mubr.f32.gmra.mrb[0].mxu0 %v2215
    %v2286 = vpop.f32.mrb[0].mxu0
    %v2287 = vadd.f32 %v2212, %v2286
    %v2288 = vpop.f32.mrb[0].mxu0
    %2289 = vmatprep.mubr.f32.mxu0 0.0
    %2290 = vmatmul.mubr.f32.gmra.mrb[0].mxu0 %v2218
    %v2291 = vpop.f32.mrb[0].mxu0
    %v2292 = vadd.f32 %v2212, %v2291
    %v2293 = vpop.f32.mrb[0].mxu0
    %2294 = vdwg.mxu0
    %v2295 = vmax.f32 %v2287, 0.0
    %v2296 = vmax.f32 %v2292, 0.0
    %s2297 = scalar_lea.vmem [#allocation32], 32
    %v2298 = vld [vmem:[%s2297] sm:$0xff]
    %v2299 = vld [vmem:[%s2297 + $0x8] sm:$0xff]
    %v2300 = vld [vmem:[%s2297 + $0x10] sm:$0xff]
    %v2301 = vld [vmem:[%s2297 + $0x18] sm:$0xff]
    %v2303 = vsel %vm854, %v2295, 0
    %v2306 = vsel %vm854, %v2296, 0
    %2308 = vmatprep.subr.mxu0 0.0
    %2309 = vmatpush1.msra.mxu0 %v2298
    %2310 = vmatprep.subr.mxu0 0.0
    %2311 = vmatpush1.msra.mxu0 %v2299
    %2312 = vmatprep.subr.mxu0 0.0
    %2313 = vmatpush1.msra.mxu0 %v2300
    %2314 = vmatprep.subr.mxu0 0.0
    %2315 = vmatpush1.msra.mxu0 %v2301
    %2316 = vmatprep.subr.mxu0 0.0
    %2317 = vmatpush1.msra.mxu0 0.0
    %2318 = vmatprep.subr.mxu0 0.0
    %2319 = vmatpush1.msra.mxu0 0.0
    %2320 = vmatprep.subr.mxu0 0.0
    %2321 = vmatpush1.msra.mxu0 0.0
    %2322 = vmatprep.subr.mxu0 0.0
    %2323 = vmatpush1.msra.mxu0 0.0
    %2324 = vmatprep.subr.mxu0 0.0
    %2325 = vmatpush1.msra.mxu0 0.0
    %2326 = vmatprep.subr.mxu0 0.0
    %2327 = vmatpush1.msra.mxu0 0.0
    %2328 = vmatprep.subr.mxu0 0.0
    %2329 = vmatpush1.msra.mxu0 0.0
    %2330 = vmatprep.subr.mxu0 0.0
    %2331 = vmatpush1.msra.mxu0 0.0
    %2332 = vmatprep.subr.mxu0 0.0
    %2333 = vmatpush1.msra.mxu0 0.0
    %2334 = vmatprep.subr.mxu0 0.0
    %2335 = vmatpush1.msra.mxu0 0.0
    %2336 = vmatprep.subr.mxu0 0.0
    %2337 = vmatpush1.msra.mxu0 0.0
    %2338 = vmatprep.subr.mxu0 0.0
    %2339 = vmatpush1.msra.mxu0 0.0
    %2340 = vmatprep.subr.mxu0 0.0
    %2341 = vmatpush1.msra.mxu0 0.0
    %2342 = vmatprep.subr.mxu0 0.0
    %2343 = vmatpush1.msra.mxu0 0.0
    %2344 = vmatprep.subr.mxu0 0.0
    %2345 = vmatpush1.msra.mxu0 0.0
    %2346 = vmatprep.subr.mxu0 0.0
    %2347 = vmatpush1.msra.mxu0 0.0
    %2348 = vmatprep.subr.mxu0 0.0
    %2349 = vmatpush1.msra.mxu0 0.0
    %2350 = vmatprep.subr.mxu0 0.0
    %2351 = vmatpush1.msra.mxu0 0.0
    %2352 = vmatprep.subr.mxu0 0.0
    %2353 = vmatpush1.msra.mxu0 0.0
    %2354 = vmatprep.subr.mxu0 0.0
    %2355 = vmatpush1.msra.mxu0 0.0
    %2356 = vmatprep.subr.mxu0 0.0
    %2357 = vmatpush1.msra.mxu0 0.0
    %2358 = vmatprep.subr.mxu0 0.0
    %2359 = vmatpush1.msra.mxu0 0.0
    %2360 = vmatprep.subr.mxu0 0.0
    %2361 = vmatpush1.msra.mxu0 0.0
    %2362 = vmatprep.subr.mxu0 0.0
    %2363 = vmatpush1.msra.mxu0 0.0
    %2364 = vmatprep.subr.mxu0 0.0
    %2365 = vmatpush1.msra.mxu0 0.0
    %2366 = vmatprep.subr.mxu0 0.0
    %2367 = vmatpush1.msra.mxu0 0.0
    %2368 = vmatprep.subr.mxu0 0.0
    %2369 = vmatpush1.msra.mxu0 0.0
    %2370 = vmatprep.subr.mxu0 0.0
    %2371 = vmatpush1.msra.mxu0 0.0
    %2372 = vmatprep.mubr.f32.mxu0 0.0
    %2373 = vmatmul.mubr.f32.gmra.mrb[0].mxu0 %v2303
    %v2374 = vpop.f32.mrb[0].mxu0
    %v2375 = vadd.f32 0.0, %v2374
    %v2376 = vpop.f32.mrb[0].mxu0
    %2377 = vmatprep.mubr.f32.mxu0 0.0
    %2378 = vmatmul.mubr.f32.gmra.mrb[0].mxu0 %v2306
    %v2379 = vpop.f32.mrb[0].mxu0
    %v2380 = vadd.f32 0.0, %v2379
    %v2381 = vpop.f32.mrb[0].mxu0
    %2382 = vdwg.mxu0
    %v2383 = vadd.f32 %v2199, %v2375
    %v2384 = vadd.f32 %v2200, %v2380
    %s2385 = scalar_lea.vmem [#allocation33], 1
    %v2386 = vld [vmem:[%s2385] sm:$0x1]
    %v2388 = vlaneseq
    %v2389 = vshrl.u32 %v2388, 7
    %v2390 = vsub.s32 0, %v2389
    %v2391 = vrot.slane %v2386, %v2390
    %v2393 = vadd.f32 %v2383, %v2391
    %v2394 = vadd.f32 %v2384, %v2391
    %s2395 = scalar_lea.vmem [#allocation35], 32
    %v2396 = vld [vmem:[%s2395] sm:$0xff]
    %v2397 = vld [vmem:[%s2395 + $0x8] sm:$0xff]
    %v2398 = vld [vmem:[%s2395 + $0x10] sm:$0xff]
    %v2399 = vld [vmem:[%s2395 + $0x18] sm:$0xff]
    %s2400 = scalar_lea.vmem [#allocation36], 1
    %v2401 = vld [vmem:[%s2400] sm:$0x1]
    %v2403 = vlaneseq
    %v2404 = vshrl.u32 %v2403, 7
    %v2405 = vsub.s32 0, %v2404
    %v2406 = vrot.slane %v2401, %v2405
    %v2409 = vsel %vm854, %v1673, 0
    %v2412 = vsel %vm854, %v1674, 0
    %v2415 = vsel %vm854, %v1675, 0
    %v2418 = vsel %vm854, %v1676, 0
    %2420 = vmatprep.subr.mxu0 0.0
    %2421 = vmatpush1.msra.mxu0 %v2396
    %2422 = vmatprep.subr.mxu0 0.0
    %2423 = vmatpush1.msra.mxu0 %v2397
    %2424 = vmatprep.subr.mxu0 0.0
    %2425 = vmatpush1.msra.mxu0 %v2398
    %2426 = vmatprep.subr.mxu0 0.0
    %2427 = vmatpush1.msra.mxu0 %v2399
    %2428 = vmatprep.subr.mxu0 0.0
    %2429 = vmatpush1.msra.mxu0 0.0
    %2430 = vmatprep.subr.mxu0 0.0
    %2431 = vmatpush1.msra.mxu0 0.0
    %2432 = vmatprep.subr.mxu0 0.0
    %2433 = vmatpush1.msra.mxu0 0.0
    %2434 = vmatprep.subr.mxu0 0.0
    %2435 = vmatpush1.msra.mxu0 0.0
    %2436 = vmatprep.subr.mxu0 0.0
    %2437 = vmatpush1.msra.mxu0 0.0
    %2438 = vmatprep.subr.mxu0 0.0
    %2439 = vmatpush1.msra.mxu0 0.0
    %2440 = vmatprep.subr.mxu0 0.0
    %2441 = vmatpush1.msra.mxu0 0.0
    %2442 = vmatprep.subr.mxu0 0.0
    %2443 = vmatpush1.msra.mxu0 0.0
    %2444 = vmatprep.subr.mxu0 0.0
    %2445 = vmatpush1.msra.mxu0 0.0
    %2446 = vmatprep.subr.mxu0 0.0
    %2447 = vmatpush1.msra.mxu0 0.0
    %2448 = vmatprep.subr.mxu0 0.0
    %2449 = vmatpush1.msra.mxu0 0.0
    %2450 = vmatprep.subr.mxu0 0.0
    %2451 = vmatpush1.msra.mxu0 0.0
    %2452 = vmatprep.subr.mxu0 0.0
    %2453 = vmatpush1.msra.mxu0 0.0
    %2454 = vmatprep.subr.mxu0 0.0
    %2455 = vmatpush1.msra.mxu0 0.0
    %2456 = vmatprep.subr.mxu0 0.0
    %2457 = vmatpush1.msra.mxu0 0.0
    %2458 = vmatprep.subr.mxu0 0.0
    %2459 = vmatpush1.msra.mxu0 0.0
    %2460 = vmatprep.subr.mxu0 0.0
    %2461 = vmatpush1.msra.mxu0 0.0
    %2462 = vmatprep.subr.mxu0 0.0
    %2463 = vmatpush1.msra.mxu0 0.0
    %2464 = vmatprep.subr.mxu0 0.0
    %2465 = vmatpush1.msra.mxu0 0.0
    %2466 = vmatprep.subr.mxu0 0.0
    %2467 = vmatpush1.msra.mxu0 0.0
    %2468 = vmatprep.subr.mxu0 0.0
    %2469 = vmatpush1.msra.mxu0 0.0
    %2470 = vmatprep.subr.mxu0 0.0
    %2471 = vmatpush1.msra.mxu0 0.0
    %2472 = vmatprep.subr.mxu0 0.0
    %2473 = vmatpush1.msra.mxu0 0.0
    %2474 = vmatprep.subr.mxu0 0.0
    %2475 = vmatpush1.msra.mxu0 0.0
    %2476 = vmatprep.subr.mxu0 0.0
    %2477 = vmatpush1.msra.mxu0 0.0
    %2478 = vmatprep.subr.mxu0 0.0
    %2479 = vmatpush1.msra.mxu0 0.0
    %2480 = vmatprep.subr.mxu0 0.0
    %2481 = vmatpush1.msra.mxu0 0.0
    %2482 = vmatprep.subr.mxu0 0.0
    %2483 = vmatpush1.msra.mxu0 0.0
    %2484 = vmatprep.mubr.f32.mxu0 0.0
    %2485 = vmatmul.mubr.f32.gmra.mrb[0].mxu0 %v2409
    %v2486 = vpop.f32.mrb[0].mxu0
    %v2487 = vadd.f32 %v2406, %v2486
    %v2488 = vpop.f32.mrb[0].mxu0
    %2489 = vmatprep.mubr.f32.mxu0 0.0
    %2490 = vmatmul.mubr.f32.gmra.mrb[0].mxu0 %v2412
    %v2491 = vpop.f32.mrb[0].mxu0
    %v2492 = vadd.f32 %v2406, %v2491
    %v2493 = vpop.f32.mrb[0].mxu0
    %2494 = vmatprep.mubr.f32.mxu0 0.0
    %2495 = vmatmul.mubr.f32.gmra.mrb[0].mxu0 %v2415
    %v2496 = vpop.f32.mrb[0].mxu0
    %v2497 = vadd.f32 %v2406, %v2496
    %v2498 = vpop.f32.mrb[0].mxu0
    %2499 = vmatprep.mubr.f32.mxu0 0.0
    %2500 = vmatmul.mubr.f32.gmra.mrb[0].mxu0 %v2418
    %v2501 = vpop.f32.mrb[0].mxu0
    %v2502 = vadd.f32 %v2406, %v2501
    %v2503 = vpop.f32.mrb[0].mxu0
    %2504 = vdwg.mxu0
    %v2505 = vmax.f32 %v2487, 0.0
    %v2506 = vmax.f32 %v2492, 0.0
    %v2507 = vmax.f32 %v2497, 0.0
    %v2508 = vmax.f32 %v2502, 0.0
    %v2509 = vadd.f32 %v1673, %v2505
    %v2510 = vadd.f32 %v1674, %v2506
    %v2511 = vadd.f32 %v1675, %v2507
    %v2512 = vadd.f32 %v1676, %v2508
    %v2513 = vlaneseq
    %v2514 = vand.u32 %v2513, 127
    %v2515 = vld [vmem:[#allocation8] sm:$0xff]
    %v2516 = vld [vmem:[#allocation8 + $0x8] sm:$0xff]
    %v2517 = vld [vmem:[#allocation8 + $0x10] sm:$0xff]
    %v2518 = vld [vmem:[#allocation8 + $0x18] sm:$0xff]
    %2519 = vset.pattern.permute.xlu0 0
    %2520 = vperm.xlu0 %2519, %v2515
    %v2521 = vpop.permute.xlu0 %2520
    %2522 = vset.pattern.permute.xlu0 0
    %2523 = vperm.xlu0 %2522, %v2516
    %v2524 = vpop.permute.xlu0 %2523
    %2525 = vset.pattern.permute.xlu0 0
    %2526 = vperm.xlu0 %2525, %v2517
    %v2527 = vpop.permute.xlu0 %2526
    %2528 = vset.pattern.permute.xlu0 0
    %2529 = vperm.xlu0 %2528, %v2518
    %v2530 = vpop.permute.xlu0 %2529
    %vm2531 = vcmp.eq.s32.totalorder %v2514, %v2521
    %vm2532 = vcmp.eq.s32.totalorder %v2514, %v2524
    %vm2533 = vcmp.eq.s32.totalorder %v2514, %v2527
    %vm2534 = vcmp.eq.s32.totalorder %v2514, %v2530
    %v2535 = vsel %vm2531, 1, 0
    %v2536 = vsel %vm2532, 1, 0
    %v2537 = vsel %vm2533, 1, 0
    %v2538 = vsel %vm2534, 1, 0
    %v2539 = vcvt.s32.f32 %v2535
    %v2540 = vcvt.s32.f32 %v2536
    %v2541 = vcvt.s32.f32 %v2537
    %v2542 = vcvt.s32.f32 %v2538
    %v2543 = vld [vmem:[#allocation9] sm:$0xff]
    %v2544 = vld [vmem:[#allocation9 + $0x8] sm:$0xff]
    %v2545 = vld [vmem:[#allocation9 + $0x10] sm:$0xff]
    %v2546 = vld [vmem:[#allocation9 + $0x18] sm:$0xff]
    %2547 = vset.pattern.permute.xlu0 0
    %2548 = vperm.xlu0 %2547, %v2543
    %v2549 = vpop.permute.xlu0 %2548
    %2550 = vset.pattern.permute.xlu0 0
    %2551 = vperm.xlu0 %2550, %v2544
    %v2552 = vpop.permute.xlu0 %2551
    %2553 = vset.pattern.permute.xlu0 0
    %2554 = vperm.xlu0 %2553, %v2545
    %v2555 = vpop.permute.xlu0 %2554
    %2556 = vset.pattern.permute.xlu0 0
    %2557 = vperm.xlu0 %2556, %v2546
    %v2558 = vpop.permute.xlu0 %2557
    %vm2559 = vcmp.eq.s32.totalorder %v2514, %v2549
    %vm2560 = vcmp.eq.s32.totalorder %v2514, %v2552
    %vm2561 = vcmp.eq.s32.totalorder %v2514, %v2555
    %vm2562 = vcmp.eq.s32.totalorder %v2514, %v2558
    %v2563 = vsel %vm2559, 1, 0
    %v2564 = vsel %vm2560, 1, 0
    %v2565 = vsel %vm2561, 1, 0
    %v2566 = vsel %vm2562, 1, 0
    %v2567 = vcvt.s32.f32 %v2563
    %v2568 = vcvt.s32.f32 %v2564
    %v2569 = vcvt.s32.f32 %v2565
    %v2570 = vcvt.s32.f32 %v2566
    %v2572 = vsel %vm544, %v2539, 0
    %v2575 = vsel %vm544, %v2540, 0
    %v2578 = vsel %vm544, %v2541, 0
    %v2581 = vsel %vm544, %v2542, 0
    %2583 = vmatprep.subr.mxu0 0.0
    %2584 = vmatpush1.msra.mxu0 %v2393
    %2585 = vmatprep.subr.mxu0 0.0
    %2586 = vmatpush1.msra.mxu0 %v2394
    %2587 = vmatprep.subr.mxu0 0.0
    %2588 = vmatpush1.msra.mxu0 0.0
    %2589 = vmatprep.subr.mxu0 0.0
    %2590 = vmatpush1.msra.mxu0 0.0
    %2591 = vmatprep.subr.mxu0 0.0
    %2592 = vmatpush1.msra.mxu0 0.0
    %2593 = vmatprep.subr.mxu0 0.0
    %2594 = vmatpush1.msra.mxu0 0.0
    %2595 = vmatprep.subr.mxu0 0.0
    %2596 = vmatpush1.msra.mxu0 0.0
    %2597 = vmatprep.subr.mxu0 0.0
    %2598 = vmatpush1.msra.mxu0 0.0
    %2599 = vmatprep.subr.mxu0 0.0
    %2600 = vmatpush1.msra.mxu0 0.0
    %2601 = vmatprep.subr.mxu0 0.0
    %2602 = vmatpush1.msra.mxu0 0.0
    %2603 = vmatprep.subr.mxu0 0.0
    %2604 = vmatpush1.msra.mxu0 0.0
    %2605 = vmatprep.subr.mxu0 0.0
    %2606 = vmatpush1.msra.mxu0 0.0
    %2607 = vmatprep.subr.mxu0 0.0
    %2608 = vmatpush1.msra.mxu0 0.0
    %2609 = vmatprep.subr.mxu0 0.0
    %2610 = vmatpush1.msra.mxu0 0.0
    %2611 = vmatprep.subr.mxu0 0.0
    %2612 = vmatpush1.msra.mxu0 0.0
    %2613 = vmatprep.subr.mxu0 0.0
    %2614 = vmatpush1.msra.mxu0 0.0
    %2615 = vmatprep.subr.mxu0 0.0
    %2616 = vmatpush1.msra.mxu0 0.0
    %2617 = vmatprep.subr.mxu0 0.0
    %2618 = vmatpush1.msra.mxu0 0.0
    %2619 = vmatprep.subr.mxu0 0.0
    %2620 = vmatpush1.msra.mxu0 0.0
    %2621 = vmatprep.subr.mxu0 0.0
    %2622 = vmatpush1.msra.mxu0 0.0
    %2623 = vmatprep.subr.mxu0 0.0
    %2624 = vmatpush1.msra.mxu0 0.0
    %2625 = vmatprep.subr.mxu0 0.0
    %2626 = vmatpush1.msra.mxu0 0.0
    %2627 = vmatprep.subr.mxu0 0.0
    %2628 = vmatpush1.msra.mxu0 0.0
    %2629 = vmatprep.subr.mxu0 0.0
    %2630 = vmatpush1.msra.mxu0 0.0
    %2631 = vmatprep.subr.mxu0 0.0
    %2632 = vmatpush1.msra.mxu0 0.0
    %2633 = vmatprep.subr.mxu0 0.0
    %2634 = vmatpush1.msra.mxu0 0.0
    %2635 = vmatprep.subr.mxu0 0.0
    %2636 = vmatpush1.msra.mxu0 0.0
    %2637 = vmatprep.subr.mxu0 0.0
    %2638 = vmatpush1.msra.mxu0 0.0
    %2639 = vmatprep.subr.mxu0 0.0
    %2640 = vmatpush1.msra.mxu0 0.0
    %2641 = vmatprep.subr.mxu0 0.0
    %2642 = vmatpush1.msra.mxu0 0.0
    %2643 = vmatprep.subr.mxu0 0.0
    %2644 = vmatpush1.msra.mxu0 0.0
    %2645 = vmatprep.subr.mxu0 0.0
    %2646 = vmatpush1.msra.mxu0 0.0
    %2647 = vmatprep.mubr.f32.mxu0 0.0
    %2648 = vmatmul.mubr.f32.gmra.mrb[0].mxu0 %v2572
    %v2649 = vpop.f32.mrb[0].mxu0
    %v2650 = vadd.f32 0.0, %v2649
    %v2651 = vpop.f32.mrb[0].mxu0
    %2652 = vmatprep.mubr.f32.mxu0 0.0
    %2653 = vmatmul.mubr.f32.gmra.mrb[0].mxu0 %v2575
    %v2654 = vpop.f32.mrb[0].mxu0
    %v2655 = vadd.f32 0.0, %v2654
    %v2656 = vpop.f32.mrb[0].mxu0
    %2657 = vmatprep.mubr.f32.mxu0 0.0
    %2658 = vmatmul.mubr.f32.gmra.mrb[0].mxu0 %v2578
    %v2659 = vpop.f32.mrb[0].mxu0
    %v2660 = vadd.f32 0.0, %v2659
    %v2661 = vpop.f32.mrb[0].mxu0
    %2662 = vmatprep.mubr.f32.mxu0 0.0
    %2663 = vmatmul.mubr.f32.gmra.mrb[0].mxu0 %v2581
    %v2664 = vpop.f32.mrb[0].mxu0
    %v2665 = vadd.f32 0.0, %v2664
    %v2666 = vpop.f32.mrb[0].mxu0
    %2667 = vdwg.mxu0
    %v2669 = vsel %vm544, %v2567, 0
    %v2672 = vsel %vm544, %v2568, 0
    %v2675 = vsel %vm544, %v2569, 0
    %v2678 = vsel %vm544, %v2570, 0
    %2680 = vmatprep.subr.mxu0 0.0
    %2681 = vmatpush1.msra.mxu0 %v2393
    %2682 = vmatprep.subr.mxu0 0.0
    %2683 = vmatpush1.msra.mxu0 %v2394
    %2684 = vmatprep.subr.mxu0 0.0
    %2685 = vmatpush1.msra.mxu0 0.0
    %2686 = vmatprep.subr.mxu0 0.0
    %2687 = vmatpush1.msra.mxu0 0.0
    %2688 = vmatprep.subr.mxu0 0.0
    %2689 = vmatpush1.msra.mxu0 0.0
    %2690 = vmatprep.subr.mxu0 0.0
    %2691 = vmatpush1.msra.mxu0 0.0
    %2692 = vmatprep.subr.mxu0 0.0
    %2693 = vmatpush1.msra.mxu0 0.0
    %2694 = vmatprep.subr.mxu0 0.0
    %2695 = vmatpush1.msra.mxu0 0.0
    %2696 = vmatprep.subr.mxu0 0.0
    %2697 = vmatpush1.msra.mxu0 0.0
    %2698 = vmatprep.subr.mxu0 0.0
    %2699 = vmatpush1.msra.mxu0 0.0
    %2700 = vmatprep.subr.mxu0 0.0
    %2701 = vmatpush1.msra.mxu0 0.0
    %2702 = vmatprep.subr.mxu0 0.0
    %2703 = vmatpush1.msra.mxu0 0.0
    %2704 = vmatprep.subr.mxu0 0.0
    %2705 = vmatpush1.msra.mxu0 0.0
    %2706 = vmatprep.subr.mxu0 0.0
    %2707 = vmatpush1.msra.mxu0 0.0
    %2708 = vmatprep.subr.mxu0 0.0
    %2709 = vmatpush1.msra.mxu0 0.0
    %2710 = vmatprep.subr.mxu0 0.0
    %2711 = vmatpush1.msra.mxu0 0.0
    %2712 = vmatprep.subr.mxu0 0.0
    %2713 = vmatpush1.msra.mxu0 0.0
    %2714 = vmatprep.subr.mxu0 0.0
    %2715 = vmatpush1.msra.mxu0 0.0
    %2716 = vmatprep.subr.mxu0 0.0
    %2717 = vmatpush1.msra.mxu0 0.0
    %2718 = vmatprep.subr.mxu0 0.0
    %2719 = vmatpush1.msra.mxu0 0.0
    %2720 = vmatprep.subr.mxu0 0.0
    %2721 = vmatpush1.msra.mxu0 0.0
    %2722 = vmatprep.subr.mxu0 0.0
    %2723 = vmatpush1.msra.mxu0 0.0
    %2724 = vmatprep.subr.mxu0 0.0
    %2725 = vmatpush1.msra.mxu0 0.0
    %2726 = vmatprep.subr.mxu0 0.0
    %2727 = vmatpush1.msra.mxu0 0.0
    %2728 = vmatprep.subr.mxu0 0.0
    %2729 = vmatpush1.msra.mxu0 0.0
    %2730 = vmatprep.subr.mxu0 0.0
    %2731 = vmatpush1.msra.mxu0 0.0
    %2732 = vmatprep.subr.mxu0 0.0
    %2733 = vmatpush1.msra.mxu0 0.0
    %2734 = vmatprep.subr.mxu0 0.0
    %2735 = vmatpush1.msra.mxu0 0.0
    %2736 = vmatprep.subr.mxu0 0.0
    %2737 = vmatpush1.msra.mxu0 0.0
    %2738 = vmatprep.subr.mxu0 0.0
    %2739 = vmatpush1.msra.mxu0 0.0
    %2740 = vmatprep.subr.mxu0 0.0
    %2741 = vmatpush1.msra.mxu0 0.0
    %2742 = vmatprep.subr.mxu0 0.0
    %2743 = vmatpush1.msra.mxu0 0.0
    %2744 = vmatprep.mubr.f32.mxu0 0.0
    %2745 = vmatmul.mubr.f32.gmra.mrb[0].mxu0 %v2669
    %v2746 = vpop.f32.mrb[0].mxu0
    %v2747 = vadd.f32 0.0, %v2746
    %v2748 = vpop.f32.mrb[0].mxu0
    %2749 = vmatprep.mubr.f32.mxu0 0.0
    %2750 = vmatmul.mubr.f32.gmra.mrb[0].mxu0 %v2672
    %v2751 = vpop.f32.mrb[0].mxu0
    %v2752 = vadd.f32 0.0, %v2751
    %v2753 = vpop.f32.mrb[0].mxu0
    %2754 = vmatprep.mubr.f32.mxu0 0.0
    %2755 = vmatmul.mubr.f32.gmra.mrb[0].mxu0 %v2675
    %v2756 = vpop.f32.mrb[0].mxu0
    %v2757 = vadd.f32 0.0, %v2756
    %v2758 = vpop.f32.mrb[0].mxu0
    %2759 = vmatprep.mubr.f32.mxu0 0.0
    %2760 = vmatmul.mubr.f32.gmra.mrb[0].mxu0 %v2678
    %v2761 = vpop.f32.mrb[0].mxu0
    %v2762 = vadd.f32 0.0, %v2761
    %v2763 = vpop.f32.mrb[0].mxu0
    %2764 = vdwg.mxu0
    %v2765 = vld [vmem:[#allocation38] sm:$0xff]
    %v2766 = vld [vmem:[#allocation38 + $0x8] sm:$0xff]
    %v2767 = vld [vmem:[#allocation38 + $0x10] sm:$0xff]
    %v2768 = vld [vmem:[#allocation38 + $0x18] sm:$0xff]
    %v2769 = vld [vmem:[#allocation39] sm:$0xff]
    %v2770 = vld [vmem:[#allocation39 + $0x8] sm:$0xff]
    %v2771 = vld [vmem:[#allocation39 + $0x10] sm:$0xff]
    %v2772 = vld [vmem:[#allocation39 + $0x18] sm:$0xff]
    %v2774 = vsel %vm854, %v2747, 0
    %v2777 = vsel %vm854, %v2752, 0
    %v2780 = vsel %vm854, %v2757, 0
    %v2783 = vsel %vm854, %v2762, 0
    %2785 = vmatprep.subr.mxu0 0.0
    %2786 = vmatpush1.msra.mxu0 %v2769
    %2787 = vmatprep.subr.mxu0 0.0
    %2788 = vmatpush1.msra.mxu0 %v2770
    %2789 = vmatprep.subr.mxu0 0.0
    %2790 = vmatpush1.msra.mxu0 %v2771
    %2791 = vmatprep.subr.mxu0 0.0
    %2792 = vmatpush1.msra.mxu0 %v2772
    %2793 = vmatprep.subr.mxu0 0.0
    %2794 = vmatpush1.msra.mxu0 0.0
    %2795 = vmatprep.subr.mxu0 0.0
    %2796 = vmatpush1.msra.mxu0 0.0
    %2797 = vmatprep.subr.mxu0 0.0
    %2798 = vmatpush1.msra.mxu0 0.0
    %2799 = vmatprep.subr.mxu0 0.0
    %2800 = vmatpush1.msra.mxu0 0.0
    %2801 = vmatprep.subr.mxu0 0.0
    %2802 = vmatpush1.msra.mxu0 0.0
    %2803 = vmatprep.subr.mxu0 0.0
    %2804 = vmatpush1.msra.mxu0 0.0
    %2805 = vmatprep.subr.mxu0 0.0
    %2806 = vmatpush1.msra.mxu0 0.0
    %2807 = vmatprep.subr.mxu0 0.0
    %2808 = vmatpush1.msra.mxu0 0.0
    %2809 = vmatprep.subr.mxu0 0.0
    %2810 = vmatpush1.msra.mxu0 0.0
    %2811 = vmatprep.subr.mxu0 0.0
    %2812 = vmatpush1.msra.mxu0 0.0
    %2813 = vmatprep.subr.mxu0 0.0
    %2814 = vmatpush1.msra.mxu0 0.0
    %2815 = vmatprep.subr.mxu0 0.0
    %2816 = vmatpush1.msra.mxu0 0.0
    %2817 = vmatprep.subr.mxu0 0.0
    %2818 = vmatpush1.msra.mxu0 0.0
    %2819 = vmatprep.subr.mxu0 0.0
    %2820 = vmatpush1.msra.mxu0 0.0
    %2821 = vmatprep.subr.mxu0 0.0
    %2822 = vmatpush1.msra.mxu0 0.0
    %2823 = vmatprep.subr.mxu0 0.0
    %2824 = vmatpush1.msra.mxu0 0.0
    %2825 = vmatprep.subr.mxu0 0.0
    %2826 = vmatpush1.msra.mxu0 0.0
    %2827 = vmatprep.subr.mxu0 0.0
    %2828 = vmatpush1.msra.mxu0 0.0
    %2829 = vmatprep.subr.mxu0 0.0
    %2830 = vmatpush1.msra.mxu0 0.0
    %2831 = vmatprep.subr.mxu0 0.0
    %2832 = vmatpush1.msra.mxu0 0.0
    %2833 = vmatprep.subr.mxu0 0.0
    %2834 = vmatpush1.msra.mxu0 0.0
    %2835 = vmatprep.subr.mxu0 0.0
    %2836 = vmatpush1.msra.mxu0 0.0
    %2837 = vmatprep.subr.mxu0 0.0
    %2838 = vmatpush1.msra.mxu0 0.0
    %2839 = vmatprep.subr.mxu0 0.0
    %2840 = vmatpush1.msra.mxu0 0.0
    %2841 = vmatprep.subr.mxu0 0.0
    %2842 = vmatpush1.msra.mxu0 0.0
    %2843 = vmatprep.subr.mxu0 0.0
    %2844 = vmatpush1.msra.mxu0 0.0
    %2845 = vmatprep.subr.mxu0 0.0
    %2846 = vmatpush1.msra.mxu0 0.0
    %2847 = vmatprep.subr.mxu0 0.0
    %2848 = vmatpush1.msra.mxu0 0.0
    %2849 = vmatprep.mubr.f32.mxu0 0.0
    %2850 = vmatmul.mubr.f32.gmra.mrb[0].mxu0 %v2774
    %v2851 = vpop.f32.mrb[0].mxu0
    %v2852 = vadd.f32 0.0, %v2851
    %v2853 = vpop.f32.mrb[0].mxu0
    %2854 = vmatprep.mubr.f32.mxu0 0.0
    %2855 = vmatmul.mubr.f32.gmra.mrb[0].mxu0 %v2777
    %v2856 = vpop.f32.mrb[0].mxu0
    %v2857 = vadd.f32 0.0, %v2856
    %v2858 = vpop.f32.mrb[0].mxu0
    %2859 = vmatprep.mubr.f32.mxu0 0.0
    %2860 = vmatmul.mubr.f32.gmra.mrb[0].mxu0 %v2780
    %v2861 = vpop.f32.mrb[0].mxu0
    %v2862 = vadd.f32 0.0, %v2861
    %v2863 = vpop.f32.mrb[0].mxu0
    %2864 = vmatprep.mubr.f32.mxu0 0.0
    %2865 = vmatmul.mubr.f32.gmra.mrb[0].mxu0 %v2783
    %v2866 = vpop.f32.mrb[0].mxu0
    %v2867 = vadd.f32 0.0, %v2866
    %v2868 = vpop.f32.mrb[0].mxu0
    %2869 = vdwg.mxu0
    %v2871 = vsel %vm854, %v2650, 0
    %v2874 = vsel %vm854, %v2655, 0
    %v2877 = vsel %vm854, %v2660, 0
    %v2880 = vsel %vm854, %v2665, 0
    %2882 = vmatprep.subr.mxu0 0.0
    %2883 = vmatpush1.msra.mxu0 %v2765
    %2884 = vmatprep.subr.mxu0 0.0
    %2885 = vmatpush1.msra.mxu0 %v2766
    %2886 = vmatprep.subr.mxu0 0.0
    %2887 = vmatpush1.msra.mxu0 %v2767
    %2888 = vmatprep.subr.mxu0 0.0
    %2889 = vmatpush1.msra.mxu0 %v2768
    %2890 = vmatprep.subr.mxu0 0.0
    %2891 = vmatpush1.msra.mxu0 0.0
    %2892 = vmatprep.subr.mxu0 0.0
    %2893 = vmatpush1.msra.mxu0 0.0
    %2894 = vmatprep.subr.mxu0 0.0
    %2895 = vmatpush1.msra.mxu0 0.0
    %2896 = vmatprep.subr.mxu0 0.0
    %2897 = vmatpush1.msra.mxu0 0.0
    %2898 = vmatprep.subr.mxu0 0.0
    %2899 = vmatpush1.msra.mxu0 0.0
    %2900 = vmatprep.subr.mxu0 0.0
    %2901 = vmatpush1.msra.mxu0 0.0
    %2902 = vmatprep.subr.mxu0 0.0
    %2903 = vmatpush1.msra.mxu0 0.0
    %2904 = vmatprep.subr.mxu0 0.0
    %2905 = vmatpush1.msra.mxu0 0.0
    %2906 = vmatprep.subr.mxu0 0.0
    %2907 = vmatpush1.msra.mxu0 0.0
    %2908 = vmatprep.subr.mxu0 0.0
    %2909 = vmatpush1.msra.mxu0 0.0
    %2910 = vmatprep.subr.mxu0 0.0
    %2911 = vmatpush1.msra.mxu0 0.0
    %2912 = vmatprep.subr.mxu0 0.0
    %2913 = vmatpush1.msra.mxu0 0.0
    %2914 = vmatprep.subr.mxu0 0.0
    %2915 = vmatpush1.msra.mxu0 0.0
    %2916 = vmatprep.subr.mxu0 0.0
    %2917 = vmatpush1.msra.mxu0 0.0
    %2918 = vmatprep.subr.mxu0 0.0
    %2919 = vmatpush1.msra.mxu0 0.0
    %2920 = vmatprep.subr.mxu0 0.0
    %2921 = vmatpush1.msra.mxu0 0.0
    %2922 = vmatprep.subr.mxu0 0.0
    %2923 = vmatpush1.msra.mxu0 0.0
    %2924 = vmatprep.subr.mxu0 0.0
    %2925 = vmatpush1.msra.mxu0 0.0
    %2926 = vmatprep.subr.mxu0 0.0
    %2927 = vmatpush1.msra.mxu0 0.0
    %2928 = vmatprep.subr.mxu0 0.0
    %2929 = vmatpush1.msra.mxu0 0.0
    %2930 = vmatprep.subr.mxu0 0.0
    %2931 = vmatpush1.msra.mxu0 0.0
    %2932 = vmatprep.subr.mxu0 0.0
    %2933 = vmatpush1.msra.mxu0 0.0
    %2934 = vmatprep.subr.mxu0 0.0
    %2935 = vmatpush1.msra.mxu0 0.0
    %2936 = vmatprep.subr.mxu0 0.0
    %2937 = vmatpush1.msra.mxu0 0.0
    %2938 = vmatprep.subr.mxu0 0.0
    %2939 = vmatpush1.msra.mxu0 0.0
    %2940 = vmatprep.subr.mxu0 0.0
    %2941 = vmatpush1.msra.mxu0 0.0
    %2942 = vmatprep.subr.mxu0 0.0
    %2943 = vmatpush1.msra.mxu0 0.0
    %2944 = vmatprep.subr.mxu0 0.0
    %2945 = vmatpush1.msra.mxu0 0.0
    %2946 = vmatprep.mubr.f32.mxu0 0.0
    %2947 = vmatmul.mubr.f32.gmra.mrb[0].mxu0 %v2871
    %v2948 = vpop.f32.mrb[0].mxu0
    %v2949 = vadd.f32 %v2852, %v2948
    %v2950 = vpop.f32.mrb[0].mxu0
    %2951 = vmatprep.mubr.f32.mxu0 0.0
    %2952 = vmatmul.mubr.f32.gmra.mrb[0].mxu0 %v2874
    %v2953 = vpop.f32.mrb[0].mxu0
    %v2954 = vadd.f32 %v2857, %v2953
    %v2955 = vpop.f32.mrb[0].mxu0
    %2956 = vmatprep.mubr.f32.mxu0 0.0
    %2957 = vmatmul.mubr.f32.gmra.mrb[0].mxu0 %v2877
    %v2958 = vpop.f32.mrb[0].mxu0
    %v2959 = vadd.f32 %v2862, %v2958
    %v2960 = vpop.f32.mrb[0].mxu0
    %2961 = vmatprep.mubr.f32.mxu0 0.0
    %2962 = vmatmul.mubr.f32.gmra.mrb[0].mxu0 %v2880
    %v2963 = vpop.f32.mrb[0].mxu0
    %v2964 = vadd.f32 %v2867, %v2963
    %v2965 = vpop.f32.mrb[0].mxu0
    %2966 = vdwg.mxu0
    %v2967 = vld [vmem:[#allocation41] sm:$0xff]
    %v2968 = vld [vmem:[#allocation41 + $0x8] sm:$0xff]
    %v2969 = vld [vmem:[#allocation41 + $0x10] sm:$0xff]
    %v2970 = vld [vmem:[#allocation41 + $0x18] sm:$0xff]
    %v2972 = vsel %vm854, %v2509, 0
    %v2975 = vsel %vm854, %v2510, 0
    %v2978 = vsel %vm854, %v2511, 0
    %v2981 = vsel %vm854, %v2512, 0
    %2983 = vmatprep.subr.mxu0 0.0
    %2984 = vmatpush1.msra.mxu0 %v2967
    %2985 = vmatprep.subr.mxu0 0.0
    %2986 = vmatpush1.msra.mxu0 %v2968
    %2987 = vmatprep.subr.mxu0 0.0
    %2988 = vmatpush1.msra.mxu0 %v2969
    %2989 = vmatprep.subr.mxu0 0.0
    %2990 = vmatpush1.msra.mxu0 %v2970
    %2991 = vmatprep.subr.mxu0 0.0
    %2992 = vmatpush1.msra.mxu0 0.0
    %2993 = vmatprep.subr.mxu0 0.0
    %2994 = vmatpush1.msra.mxu0 0.0
    %2995 = vmatprep.subr.mxu0 0.0
    %2996 = vmatpush1.msra.mxu0 0.0
    %2997 = vmatprep.subr.mxu0 0.0
    %2998 = vmatpush1.msra.mxu0 0.0
    %2999 = vmatprep.subr.mxu0 0.0
    %3000 = vmatpush1.msra.mxu0 0.0
    %3001 = vmatprep.subr.mxu0 0.0
    %3002 = vmatpush1.msra.mxu0 0.0
    %3003 = vmatprep.subr.mxu0 0.0
    %3004 = vmatpush1.msra.mxu0 0.0
    %3005 = vmatprep.subr.mxu0 0.0
    %3006 = vmatpush1.msra.mxu0 0.0
    %3007 = vmatprep.subr.mxu0 0.0
    %3008 = vmatpush1.msra.mxu0 0.0
    %3009 = vmatprep.subr.mxu0 0.0
    %3010 = vmatpush1.msra.mxu0 0.0
    %3011 = vmatprep.subr.mxu0 0.0
    %3012 = vmatpush1.msra.mxu0 0.0
    %3013 = vmatprep.subr.mxu0 0.0
    %3014 = vmatpush1.msra.mxu0 0.0
    %3015 = vmatprep.subr.mxu0 0.0
    %3016 = vmatpush1.msra.mxu0 0.0
    %3017 = vmatprep.subr.mxu0 0.0
    %3018 = vmatpush1.msra.mxu0 0.0
    %3019 = vmatprep.subr.mxu0 0.0
    %3020 = vmatpush1.msra.mxu0 0.0
    %3021 = vmatprep.subr.mxu0 0.0
    %3022 = vmatpush1.msra.mxu0 0.0
    %3023 = vmatprep.subr.mxu0 0.0
    %3024 = vmatpush1.msra.mxu0 0.0
    %3025 = vmatprep.subr.mxu0 0.0
    %3026 = vmatpush1.msra.mxu0 0.0
    %3027 = vmatprep.subr.mxu0 0.0
    %3028 = vmatpush1.msra.mxu0 0.0
    %3029 = vmatprep.subr.mxu0 0.0
    %3030 = vmatpush1.msra.mxu0 0.0
    %3031 = vmatprep.subr.mxu0 0.0
    %3032 = vmatpush1.msra.mxu0 0.0
    %3033 = vmatprep.subr.mxu0 0.0
    %3034 = vmatpush1.msra.mxu0 0.0
    %3035 = vmatprep.subr.mxu0 0.0
    %3036 = vmatpush1.msra.mxu0 0.0
    %3037 = vmatprep.subr.mxu0 0.0
    %3038 = vmatpush1.msra.mxu0 0.0
    %3039 = vmatprep.subr.mxu0 0.0
    %3040 = vmatpush1.msra.mxu0 0.0
    %3041 = vmatprep.subr.mxu0 0.0
    %3042 = vmatpush1.msra.mxu0 0.0
    %3043 = vmatprep.subr.mxu0 0.0
    %3044 = vmatpush1.msra.mxu0 0.0
    %3045 = vmatprep.subr.mxu0 0.0
    %3046 = vmatpush1.msra.mxu0 0.0
    %3047 = vmatprep.mubr.f32.mxu0 0.0
    %3048 = vmatmul.mubr.f32.gmra.mrb[0].mxu0 %v2972
    %v3049 = vpop.f32.mrb[0].mxu0
    %v3050 = vadd.f32 0.0, %v3049
    %v3051 = vpop.f32.mrb[0].mxu0
    %3052 = vmatprep.mubr.f32.mxu0 0.0
    %3053 = vmatmul.mubr.f32.gmra.mrb[0].mxu0 %v2975
    %v3054 = vpop.f32.mrb[0].mxu0
    %v3055 = vadd.f32 0.0, %v3054
    %v3056 = vpop.f32.mrb[0].mxu0
    %3057 = vmatprep.mubr.f32.mxu0 0.0
    %3058 = vmatmul.mubr.f32.gmra.mrb[0].mxu0 %v2978
    %v3059 = vpop.f32.mrb[0].mxu0
    %v3060 = vadd.f32 0.0, %v3059
    %v3061 = vpop.f32.mrb[0].mxu0
    %3062 = vmatprep.mubr.f32.mxu0 0.0
    %3063 = vmatmul.mubr.f32.gmra.mrb[0].mxu0 %v2981
    %v3064 = vpop.f32.mrb[0].mxu0
    %v3065 = vadd.f32 0.0, %v3064
    %v3066 = vpop.f32.mrb[0].mxu0
    %3067 = vdwg.mxu0
    %v3068 = vadd.f32 %v2949, %v3050
    %v3069 = vadd.f32 %v2954, %v3055
    %v3070 = vadd.f32 %v2959, %v3060
    %v3071 = vadd.f32 %v2964, %v3065
    %v3072 = vld [vmem:[#allocation42] sm:$0x1]
    %v3074 = vlaneseq
    %v3075 = vshrl.u32 %v3074, 7
    %v3076 = vsub.s32 0, %v3075
    %v3077 = vrot.slane %v3072, %v3076
    %v3079 = vadd.f32 %v3068, %v3077
    %v3080 = vadd.f32 %v3069, %v3077
    %v3081 = vadd.f32 %v3070, %v3077
    %v3082 = vadd.f32 %v3071, %v3077
    %v3083 = vmax.f32 %v3079, 0.0
    %v3084 = vmax.f32 %v3080, 0.0
    %v3085 = vmax.f32 %v3081, 0.0
    %v3086 = vmax.f32 %v3082, 0.0
    %v3087 = vld [vmem:[#allocation44] sm:$0x1]
    %v3088 = vld [vmem:[#allocation2] sm:$0x1]
    %3090 = vset.pattern.permute.xlu0 0
    %3091 = vperm.xlu0 %3090, %v3088
    %v3092 = vpop.permute.xlu0 %3091
    %v3094 = vlaneseq
    %v3095 = vshrl.u32 %v3094, 7
    %v3096 = vsub.s32 0, %v3095
    %v3097 = vrot.slane %v3092, %v3096
    %v3099 = vsel %vm544, %v3087, 0
    %v3102 = vsel %vm544, %v3083, 0
    %v3105 = vsel %vm544, %v3084, 0
    %v3108 = vsel %vm544, %v3085, 0
    %v3111 = vsel %vm544, %v3086, 0
    %3113 = vmatprep.subr.mxu0 0.0
    %3114 = vmatpush1.xpose.msra.mxu0 %v3102
    %3115 = vmatprep.subr.mxu0 0.0
    %3116 = vmatpush1.xpose.msra.mxu0 %v3105
    %3117 = vmatprep.subr.mxu0 0.0
    %3118 = vmatpush1.xpose.msra.mxu0 %v3108
    %3119 = vmatprep.subr.mxu0 0.0
    %3120 = vmatpush1.xpose.msra.mxu0 %v3111
    %3121 = vmatprep.subr.mxu0 0.0
    %3122 = vmatpush1.xpose.msra.mxu0 0.0
    %3123 = vmatprep.subr.mxu0 0.0
    %3124 = vmatpush1.xpose.msra.mxu0 0.0
    %3125 = vmatprep.subr.mxu0 0.0
    %3126 = vmatpush1.xpose.msra.mxu0 0.0
    %3127 = vmatprep.subr.mxu0 0.0
    %3128 = vmatpush1.xpose.msra.mxu0 0.0
    %3129 = vmatprep.subr.mxu0 0.0
    %3130 = vmatpush1.xpose.msra.mxu0 0.0
    %3131 = vmatprep.subr.mxu0 0.0
    %3132 = vmatpush1.xpose.msra.mxu0 0.0
    %3133 = vmatprep.subr.mxu0 0.0
    %3134 = vmatpush1.xpose.msra.mxu0 0.0
    %3135 = vmatprep.subr.mxu0 0.0
    %3136 = vmatpush1.xpose.msra.mxu0 0.0
    %3137 = vmatprep.subr.mxu0 0.0
    %3138 = vmatpush1.xpose.msra.mxu0 0.0
    %3139 = vmatprep.subr.mxu0 0.0
    %3140 = vmatpush1.xpose.msra.mxu0 0.0
    %3141 = vmatprep.subr.mxu0 0.0
    %3142 = vmatpush1.xpose.msra.mxu0 0.0
    %3143 = vmatprep.subr.mxu0 0.0
    %3144 = vmatpush1.xpose.msra.mxu0 0.0
    %3145 = vmatprep.subr.mxu0 0.0
    %3146 = vmatpush1.xpose.msra.mxu0 0.0
    %3147 = vmatprep.subr.mxu0 0.0
    %3148 = vmatpush1.xpose.msra.mxu0 0.0
    %3149 = vmatprep.subr.mxu0 0.0
    %3150 = vmatpush1.xpose.msra.mxu0 0.0
    %3151 = vmatprep.subr.mxu0 0.0
    %3152 = vmatpush1.xpose.msra.mxu0 0.0
    %3153 = vmatprep.subr.mxu0 0.0
    %3154 = vmatpush1.xpose.msra.mxu0 0.0
    %3155 = vmatprep.subr.mxu0 0.0
    %3156 = vmatpush1.xpose.msra.mxu0 0.0
    %3157 = vmatprep.subr.mxu0 0.0
    %3158 = vmatpush1.xpose.msra.mxu0 0.0
    %3159 = vmatprep.subr.mxu0 0.0
    %3160 = vmatpush1.xpose.msra.mxu0 0.0
    %3161 = vmatprep.subr.mxu0 0.0
    %3162 = vmatpush1.xpose.msra.mxu0 0.0
    %3163 = vmatprep.subr.mxu0 0.0
    %3164 = vmatpush1.xpose.msra.mxu0 0.0
    %3165 = vmatprep.subr.mxu0 0.0
    %3166 = vmatpush1.xpose.msra.mxu0 0.0
    %3167 = vmatprep.subr.mxu0 0.0
    %3168 = vmatpush1.xpose.msra.mxu0 0.0
    %3169 = vmatprep.subr.mxu0 0.0
    %3170 = vmatpush1.xpose.msra.mxu0 0.0
    %3171 = vmatprep.subr.mxu0 0.0
    %3172 = vmatpush1.xpose.msra.mxu0 0.0
    %3173 = vmatprep.subr.mxu0 0.0
    %3174 = vmatpush1.xpose.msra.mxu0 0.0
    %3175 = vmatprep.subr.mxu0 0.0
    %3176 = vmatpush1.xpose.msra.mxu0 0.0
    %3177 = vmatprep.mubr.f32.mxu0 0.0
    %3178 = vmatmul.mubr.f32.gmra.mrb[0].mxu0 %v3099
    %v3179 = vpop.f32.mrb[0].mxu0
    %v3180 = vadd.f32 %v3097, %v3179
    %v3181 = vpop.f32.mrb[0].mxu0
    %3182 = vdwg.mxu0
    %vm3183 = vcmask 253952
    %3184 = vst.msk [vmem:[#allocation45] sm:$0x1] %vm3183, %v3180
    // Predicated region
    $region222: #{forward.1} parent=1 // pred_check
      _
    $region223: #{forward.1} parent=1 // pred_check_branch
      %3186 = sbr.rel (0) target = $region225
    $region224: #{forward.1} parent=1 // pred_region
      %s3188 = ssub.s32 16, 16
      %3189 = vsyncadd [#allocation5], %s3188
      %s3191 = sshll.u32 [#allocation45], 4
      %s3192 = int_to_ptr.vmem [resolvable:$true] %s3191
      %3194 = dma.vmem_to_hbm [thread:$0]  %s3192, 16, %s28, [#allocation5]
    $region225: #{forward.1} parent=1 // pred_fallthru
      _
    // Predicated region
    $region226: #{forward.1} parent=1 // pred_check
      _
    $region227: #{forward.1} parent=1 // pred_check_branch
      %3196 = sbr.rel (0) target = $region229
    $region228: #{forward.1} parent=1 // pred_region
      %3197 = dma.done [#allocation5], 16
    $region229: #{forward.1} parent=1 // pred_fallthru
      _
    %3198 = vsyncpa [#allocation4], 1
    %3199 = vsyncpa [#allocation7], 1
    %3200 = vsyncpa [#allocation10], 1
    %3201 = vsyncpa [#allocation13], 1
    %3202 = vsyncpa [#allocation16], 1
    %3203 = vsyncpa [#allocation19], 1
    %3204 = vsyncpa [#allocation22], 1
    %3205 = vsyncpa [#allocation25], 1
    %3206 = vsyncpa [#allocation28], 1
    %3207 = vsyncpa [#allocation31], 1
    %3208 = vsyncpa [#allocation34], 1
    %3209 = vsyncpa [#allocation37], 1
    %3210 = vsyncpa [#allocation40], 1
    %3211 = vsyncpa [#allocation43], 1
    %3212 = vsyncpa [#allocation5], 1

</llo_original>
